<compile_context>
chip_gen: v6e
topology: v6e:2x2x1
jax: 0.10.0
libtpu: 0.0.40
codegen_flags: <defaults>
</compile_context>

<pallas_src>
import math
from functools import partial

import jax
import jax.numpy as jnp
from jax.experimental import pallas as pl
from jax.experimental.pallas import tpu as pltpu

BN_EPS = 1e-5
EXPANSION = 4

# matmul tile caps (clamped per call to the padded problem size)
MAX_TM = 256
MAX_TN = 256
MAX_TK = 512


def _round_up(x, m):
    return (x + m - 1) // m * m


def _pick_tile(dim, cap):
    # tiles are multiples of 128 (>= bf16 min tile (16,128)), clamped to cap
    return min(cap, _round_up(dim, 128))


# -----------------------------------------------------------------------------
# Fused matmul kernel:  out = act(A @ B + bias [+ residual])
#   A: [M,K] bf16, B: [K,N] bf16, bias: [1,N] f32, residual: [M,N] bf16 (optional)
# -----------------------------------------------------------------------------
def _mm_kernel(a_ref, b_ref, bias_ref, *rest, act, has_res):
    if has_res:
        res_ref, o_ref, acc_ref = rest
    else:
        res_ref = None
        o_ref, acc_ref = rest

    k = pl.program_id(2)

    @pl.when(k == 0)
    def _():
        # fold bias into the accumulator instead of adding it every epilogue
        acc_ref[...] = jnp.broadcast_to(bias_ref[...], acc_ref.shape)

    acc_ref[...] += jnp.dot(a_ref[...], b_ref[...],
                            preferred_element_type=jnp.float32)

    @pl.when(k == pl.num_programs(2) - 1)
    def _():
        r = acc_ref[...]                       # f32 epilogue math (v5e-safe)
        if has_res:
            r = r + res_ref[...].astype(jnp.float32)
        if act == "elu":
            r = jnp.where(r > 0.0, r, jnp.exp(jnp.minimum(r, 0.0)) - 1.0)
        elif act == "relu":
            r = jnp.maximum(r, 0.0)
        o_ref[...] = r.astype(o_ref.dtype)


def matmul_bias_act(a, b, bias, residual=None, act="none",
                    out_dtype=jnp.bfloat16):
    """act(a @ b + bias [+ residual]); bf16 inputs, f32 accumulation on MXU."""
    M, K = a.shape
    K2, N = b.shape
    assert K == K2
    tm = _pick_tile(M, MAX_TM)
    tn = _pick_tile(N, MAX_TN)
    tk = _pick_tile(K, MAX_TK)
    Mp, Np, Kp = _round_up(M, tm), _round_up(N, tn), _round_up(K, tk)

    a_p = jnp.pad(a.astype(jnp.bfloat16), ((0, Mp - M), (0, Kp - K)))
    b_p = jnp.pad(b.astype(jnp.bfloat16), ((0, Kp - K), (0, Np - N)))
    bias_p = jnp.pad(bias.astype(jnp.float32), (0, Np - N)).reshape(1, Np)

    inputs = [a_p, b_p, bias_p]
    in_specs = [
        pl.BlockSpec((tm, tk), lambda i, j, k: (i, k)),
        pl.BlockSpec((tk, tn), lambda i, j, k: (k, j)),
        pl.BlockSpec((1, tn), lambda i, j, k: (0, j)),   # k-invariant: no refetch
    ]
    has_res = residual is not None
    if has_res:
        r_p = jnp.pad(residual.astype(jnp.bfloat16), ((0, Mp - M), (0, Np - N)))
        inputs.append(r_p)
        in_specs.append(pl.BlockSpec((tm, tn), lambda i, j, k: (i, j)))

    grid = (Mp // tm, Np // tn, Kp // tk)
    out = pl.pallas_call(
        partial(_mm_kernel, act=act, has_res=has_res),
        out_shape=jax.ShapeDtypeStruct((Mp, Np), out_dtype),
        grid_spec=pltpu.PrefetchScalarGridSpec(
            num_scalar_prefetch=0,
            grid=grid,
            in_specs=in_specs,
            out_specs=pl.BlockSpec((tm, tn), lambda i, j, k: (i, j)),
            scratch_shapes=[pltpu.VMEM((tm, tn), jnp.float32)],
        ),
        compiler_params=pltpu.CompilerParams(
            dimension_semantics=("parallel", "parallel", "arbitrary")),
    )(*inputs)

    if Mp != M or Np != N:
        out = out[:M, :N]
    return out


# -----------------------------------------------------------------------------
# Conv wrappers (NHWC, channels-last -> lane-dense; no transposes around convs)
# -----------------------------------------------------------------------------
def _im2col_nhwc(x, kh, kw, stride, pad):
    N, H, W, C = x.shape
    xp = jnp.pad(x, ((0, 0), (pad, pad), (pad, pad), (0, 0)))
    OH = (H + 2 * pad - kh) // stride + 1
    OW = (W + 2 * pad - kw) // stride + 1
    cols = []
    for i in range(kh):
        for j in range(kw):
            cols.append(xp[:, i:i + stride * OH:stride,
                           j:j + stride * OW:stride, :])
    patches = jnp.concatenate(cols, axis=-1)          # (N, OH, OW, kh*kw*C)
    return patches.reshape(N * OH * OW, kh * kw * C), OH, OW


def conv_bn(x, wmat, bias, kh, kw, stride, pad, act="none", residual=None):
    """x: NHWC bf16, wmat: [kh*kw*Cin, Cout] bf16 (BN pre-folded), bias: [Cout] f32."""
    N, H, W, C = x.shape
    if kh == 1 and kw == 1:
        xs = x[:, ::stride, ::stride, :] if stride > 1 else x
        OH, OW = xs.shape[1], xs.shape[2]
        patches = xs.reshape(N * OH * OW, C)
    else:
        patches, OH, OW = _im2col_nhwc(x, kh, kw, stride, pad)

    Cout = wmat.shape[1]
    res2 = None
    if residual is not None:
        res2 = residual.reshape(N * OH * OW, Cout)     # NHWC -> flat, no relayout

    out = matmul_bias_act(patches, wmat, bias, residual=res2, act=act)
    return out.reshape(N, OH, OW, Cout)


# -----------------------------------------------------------------------------
# Bottleneck module
# -----------------------------------------------------------------------------
def bottleneck_apply(x, fp, stride, has_downsample):
    """x: NHWC bf16. conv1(1x1)+BN+ELU -> conv2(3x3,s)+BN+ELU -> conv3(1x1)+BN
    with the residual add + final ELU fused into conv3's epilogue."""
    out = conv_bn(x, fp["w1"], fp["b1"], 1, 1, 1, 0, act="elu")
    out = conv_bn(out, fp["w2"], fp["b2"], 3, 3, stride, 1, act="elu")
    if has_downsample:
        res = conv_bn(x, fp["wd"], fp["bd"], 1, 1, stride, 0, act="none")
    else:
        res = x
    out = conv_bn(out, fp["w3"], fp["b3"], 1, 1, 1, 0, act="elu", residual=res)
    return out


@partial(jax.jit, static_argnames=("stride1", "stride2", "ds1", "ds2"))
def forward(x_nchw, fp1, fp2, stride1, stride2, ds1, ds2):
    # single NCHW->NHWC relayout + bf16 cast at the boundary
    x = jnp.transpose(x_nchw, (0, 2, 3, 1)).astype(jnp.bfloat16)
    x = bottleneck_apply(x, fp1, stride1, ds1)
    x = bottleneck_apply(x, fp2, stride2, ds2)
    return jnp.transpose(x, (0, 3, 1, 2)).astype(jnp.float32)


# -----------------------------------------------------------------------------
# Parameter construction + one-time BN fold / reshape / bf16 cast
# -----------------------------------------------------------------------------
def _conv_w(key, cout, cin, kh, kw):
    std = math.sqrt(2.0 / (kh * kw * cout))   # matches m.weight.data.normal_(0, sqrt(2/n))
    return jax.random.normal(key, (cout, cin, kh, kw), jnp.float32) * std


def _bn(c):  # PyTorch defaults: gamma=1, beta=0, running_mean=0, running_var=1
    return dict(gamma=jnp.ones((c,), jnp.float32), beta=jnp.zeros((c,), jnp.float32),
                mean=jnp.zeros((c,), jnp.float32), var=jnp.ones((c,), jnp.float32))


def init_bottleneck(key, inplanes, planes, stride):
    ks = jax.random.split(key, 4)
    raw = {
        "w1": _conv_w(ks[0], planes, inplanes, 1, 1), "bn1": _bn(planes),
        "w2": _conv_w(ks[1], planes, planes, 3, 3), "bn2": _bn(planes),
        "w3": _conv_w(ks[2], planes * EXPANSION, planes, 1, 1),
        "bn3": _bn(planes * EXPANSION),
    }
    has_ds = stride != 1 or inplanes != planes * EXPANSION
    if has_ds:  # standard ResNet downsample: 1x1 conv (stride) + BN
        raw["wd"] = _conv_w(ks[3], planes * EXPANSION, inplanes, 1, 1)
        raw["bnd"] = _bn(planes * EXPANSION)
    return raw, has_ds


def _fold_conv_bn(w, bn):
    """Fold BN(running stats) into the conv; reshape to [kh*kw*Cin, Cout]; cast bf16."""
    scale = bn["gamma"] / jnp.sqrt(bn["var"] + BN_EPS)
    w_f = w * scale[:, None, None, None]
    b_f = bn["beta"] - bn["mean"] * scale
    cout, cin, kh, kw = w.shape
    wmat = jnp.transpose(w_f, (2, 3, 1, 0)).reshape(kh * kw * cin, cout)
    return wmat.astype(jnp.bfloat16), b_f.astype(jnp.float32)


def fold_bottleneck(raw, has_ds):
    fp = {}
    fp["w1"], fp["b1"] = _fold_conv_bn(raw["w1"], raw["bn1"])
    fp["w2"], fp["b2"] = _fold_conv_bn(raw["w2"], raw["bn2"])
    fp["w3"], fp["b3"] = _fold_conv_bn(raw["w3"], raw["bn3"])
    if has_ds:
        fp["wd"], fp["bd"] = _fold_conv_bn(raw["wd"], raw["bnd"])
    return fp


# -----------------------------------------------------------------------------
if __name__ == "__main__":
    key = jax.random.PRNGKey(0)
    k1, k2, kx = jax.random.split(key, 3)

    # Block 1: identity residual (inplanes == planes*4, stride 1)
    raw1, ds1 = init_bottleneck(k1, inplanes=64, planes=16, stride=1)
    # Block 2: stride-2 with 1x1-conv+BN downsample
    raw2, ds2 = init_bottleneck(k2, inplanes=64, planes=32, stride=2)

    fp1 = fold_bottleneck(raw1, ds1)   # one-time BN fold / reshape / bf16 cast
    fp2 = fold_bottleneck(raw2, ds2)

    x = jax.random.normal(kx, (2, 64, 16, 16), jnp.float32)   # NCHW like PyTorch

    out = forward(x, fp1, fp2, 1, 2, ds1, ds2)
    jax.block_until_ready(out)

    assert out.shape == (2, 32 * EXPANSION, 8, 8)
    assert bool(jnp.isfinite(out).all())
    print("KERNEL_OK")
</pallas_src>

<mosaic_0001>
module attributes {stable_mosaic.version = 11 : i64} {
  func.func @_mm_kernel(%arg0: i32, %arg1: i32, %arg2: i32, %arg3: memref<256x128xbf16, #tpu.memory_space<vmem>>, %arg4: memref<128x128xbf16, #tpu.memory_space<vmem>>, %arg5: memref<1x128xf32, #tpu.memory_space<vmem>>, %arg6: memref<256x128xbf16, #tpu.memory_space<vmem>>, %arg7: memref<256x128xf32, #tpu.memory_space<vmem>>) attributes {dimension_semantics = [#tpu.dimension_semantics<parallel>, #tpu.dimension_semantics<parallel>, #tpu.dimension_semantics<arbitrary>], iteration_bounds = array<i64: 2, 1, 1>, scalar_prefetch = 0 : i64, scratch_operands = 1 : i64, tpu.core_type = #tpu.core_type<tc>, window_params = [{transform_indices = @transform_0, window_bounds = array<i64: 256, 128>}, {transform_indices = @transform_1, window_bounds = array<i64: 128, 128>}, {transform_indices = @transform_2, window_bounds = array<i64: 1, 128>}, {transform_indices = @transform_3, window_bounds = array<i64: 256, 128>}]} {
    %c0_i32 = arith.constant 0 : i32
    %0 = arith.cmpi eq, %arg2, %c0_i32 : i32
    %1 = arith.extui %0 : i1 to i32
    %c0_i32_0 = arith.constant 0 : i32
    %2 = arith.cmpi ne, %1, %c0_i32_0 : i32
    scf.if %2 {
      %c0_10 = arith.constant 0 : index
      %c0_11 = arith.constant 0 : index
      %12 = vector.load %arg5[%c0_10, %c0_11] : memref<1x128xf32, #tpu.memory_space<vmem>>, vector<1x128xf32>
      %13 = vector.shape_cast %12 : vector<1x128xf32> to vector<1x128xf32>
      %14 = vector.broadcast %13 : vector<1x128xf32> to vector<256x128xf32>
      %c0_12 = arith.constant 0 : index
      %c0_13 = arith.constant 0 : index
      %15 = vector.load %arg7[%c0_12, %c0_13] : memref<256x128xf32, #tpu.memory_space<vmem>>, vector<256x128xf32>
      tpu.vector_store %arg7[%c0_12, %c0_13], %14 {strides = array<i32>} : memref<256x128xf32, #tpu.memory_space<vmem>>, vector<256x128xf32>,
    } else {
    }
    %c0 = arith.constant 0 : index
    %c0_1 = arith.constant 0 : index
    %3 = vector.load %arg7[%c0, %c0_1] : memref<256x128xf32, #tpu.memory_space<vmem>>, vector<256x128xf32>
    %c0_2 = arith.constant 0 : index
    %c0_3 = arith.constant 0 : index
    %4 = vector.load %arg3[%c0_2, %c0_3] : memref<256x128xbf16, #tpu.memory_space<vmem>>, vector<256x128xbf16>
    %c0_4 = arith.constant 0 : index
    %c0_5 = arith.constant 0 : index
    %5 = vector.load %arg4[%c0_4, %c0_5] : memref<128x128xbf16, #tpu.memory_space<vmem>>, vector<128x128xbf16>
    %cst = arith.constant dense<0.000000e+00> : vector<256x128xf32>
    %6 = tpu.matmul %4, %5, %cst {dimension_numbers = #tpu.dot_dimension_numbers<[1], [0], [0], [1], [0, 0, 1, 1], [], []>} : vector<256x128xbf16>, vector<128x128xbf16>, vector<256x128xf32> -> vector<256x128xf32>
    %7 = arith.addf %3, %6 : vector<256x128xf32>
    %c0_6 = arith.constant 0 : index
    %c0_7 = arith.constant 0 : index
    %8 = vector.load %arg7[%c0_6, %c0_7] : memref<256x128xf32, #tpu.memory_space<vmem>>, vector<256x128xf32>
    tpu.vector_store %arg7[%c0_6, %c0_7], %7 {strides = array<i32>} : memref<256x128xf32, #tpu.memory_space<vmem>>, vector<256x128xf32>,
    %c0_i32_8 = arith.constant 0 : i32
    %9 = arith.cmpi eq, %arg2, %c0_i32_8 : i32
    %10 = arith.extui %9 : i1 to i32
    %c0_i32_9 = arith.constant 0 : i32
    %11 = arith.cmpi ne, %10, %c0_i32_9 : i32
    scf.if %11 {
      %c0_10 = arith.constant 0 : index
      %c0_11 = arith.constant 0 : index
      %12 = vector.load %arg7[%c0_10, %c0_11] : memref<256x128xf32, #tpu.memory_space<vmem>>, vector<256x128xf32>
      %cst_12 = arith.constant 0.000000e+00 : f32
      %13 = vector.broadcast %cst_12 : f32 to vector<256x128xf32>
      %14 = arith.cmpf ogt, %12, %13 : vector<256x128xf32>
      %cst_13 = arith.constant 0.000000e+00 : f32
      %15 = vector.broadcast %cst_13 : f32 to vector<256x128xf32>
      %16 = arith.minimumf %12, %15 : vector<256x128xf32>
      %17 = math.exp %16 : vector<256x128xf32>
      %cst_14 = arith.constant 1.000000e+00 : f32
      %18 = vector.broadcast %cst_14 : f32 to vector<256x128xf32>
      %19 = arith.subf %17, %18 : vector<256x128xf32>
      %20 = arith.select %14, %12, %19 : vector<256x128xi1>, vector<256x128xf32>
      %21 = arith.truncf %20 : vector<256x128xf32> to vector<256x128xbf16>
      %c0_15 = arith.constant 0 : index
      %c0_16 = arith.constant 0 : index
      %22 = vector.load %arg6[%c0_15, %c0_16] : memref<256x128xbf16, #tpu.memory_space<vmem>>, vector<256x128xbf16>
      tpu.vector_store %arg6[%c0_15, %c0_16], %21 {strides = array<i32>} : memref<256x128xbf16, #tpu.memory_space<vmem>>, vector<256x128xbf16>,
    } else {
    }
    return
  }
  func.func @transform_0(%arg0: i32, %arg1: i32, %arg2: i32) -> (i32, i32) {
    %c0_i32 = arith.constant 0 : i32
    return %arg0, %arg2 : i32, i32
  }
  func.func @transform_1(%arg0: i32, %arg1: i32, %arg2: i32) -> (i32, i32) {
    %c0_i32 = arith.constant 0 : i32
    return %arg2, %arg1 : i32, i32
  }
  func.func @transform_2(%arg0: i32, %arg1: i32, %arg2: i32) -> (i32, i32) {
    %c0_i32 = arith.constant 0 : i32
    %c0_i32_0 = arith.constant 0 : i32
    return %c0_i32, %arg1 : i32, i32
  }
  func.func @transform_3(%arg0: i32, %arg1: i32, %arg2: i32) -> (i32, i32) {
    %c0_i32 = arith.constant 0 : i32
    return %arg0, %arg1 : i32, i32
  }
}

module attributes {stable_mosaic.version = 11 : i64} {
  func.func @_mm_kernel(%arg0: i32, %arg1: i32, %arg2: i32, %arg3: memref<256x256xbf16, #tpu.memory_space<vmem>>, %arg4: memref<256x128xbf16, #tpu.memory_space<vmem>>, %arg5: memref<1x128xf32, #tpu.memory_space<vmem>>, %arg6: memref<256x128xbf16, #tpu.memory_space<vmem>>, %arg7: memref<256x128xf32, #tpu.memory_space<vmem>>) attributes {dimension_semantics = [#tpu.dimension_semantics<parallel>, #tpu.dimension_semantics<parallel>, #tpu.dimension_semantics<arbitrary>], iteration_bounds = array<i64: 2, 1, 1>, scalar_prefetch = 0 : i64, scratch_operands = 1 : i64, tpu.core_type = #tpu.core_type<tc>, window_params = [{transform_indices = @transform_0, window_bounds = array<i64: 256, 256>}, {transform_indices = @transform_1, window_bounds = array<i64: 256, 128>}, {transform_indices = @transform_2, window_bounds = array<i64: 1, 128>}, {transform_indices = @transform_3, window_bounds = array<i64: 256, 128>}]} {
    %c0_i32 = arith.constant 0 : i32
    %0 = arith.cmpi eq, %arg2, %c0_i32 : i32
    %1 = arith.extui %0 : i1 to i32
    %c0_i32_0 = arith.constant 0 : i32
    %2 = arith.cmpi ne, %1, %c0_i32_0 : i32
    scf.if %2 {
      %c0_10 = arith.constant 0 : index
      %c0_11 = arith.constant 0 : index
      %12 = vector.load %arg5[%c0_10, %c0_11] : memref<1x128xf32, #tpu.memory_space<vmem>>, vector<1x128xf32>
      %13 = vector.shape_cast %12 : vector<1x128xf32> to vector<1x128xf32>
      %14 = vector.broadcast %13 : vector<1x128xf32> to vector<256x128xf32>
      %c0_12 = arith.constant 0 : index
      %c0_13 = arith.constant 0 : index
      %15 = vector.load %arg7[%c0_12, %c0_13] : memref<256x128xf32, #tpu.memory_space<vmem>>, vector<256x128xf32>
      tpu.vector_store %arg7[%c0_12, %c0_13], %14 {strides = array<i32>} : memref<256x128xf32, #tpu.memory_space<vmem>>, vector<256x128xf32>,
    } else {
    }
    %c0 = arith.constant 0 : index
    %c0_1 = arith.constant 0 : index
    %3 = vector.load %arg7[%c0, %c0_1] : memref<256x128xf32, #tpu.memory_space<vmem>>, vector<256x128xf32>
    %c0_2 = arith.constant 0 : index
    %c0_3 = arith.constant 0 : index
    %4 = vector.load %arg3[%c0_2, %c0_3] : memref<256x256xbf16, #tpu.memory_space<vmem>>, vector<256x256xbf16>
    %c0_4 = arith.constant 0 : index
    %c0_5 = arith.constant 0 : index
    %5 = vector.load %arg4[%c0_4, %c0_5] : memref<256x128xbf16, #tpu.memory_space<vmem>>, vector<256x128xbf16>
    %cst = arith.constant dense<0.000000e+00> : vector<256x128xf32>
    %6 = tpu.matmul %4, %5, %cst {dimension_numbers = #tpu.dot_dimension_numbers<[1], [0], [0], [1], [0, 0, 1, 1], [], []>} : vector<256x256xbf16>, vector<256x128xbf16>, vector<256x128xf32> -> vector<256x128xf32>
    %7 = arith.addf %3, %6 : vector<256x128xf32>
    %c0_6 = arith.constant 0 : index
    %c0_7 = arith.constant 0 : index
    %8 = vector.load %arg7[%c0_6, %c0_7] : memref<256x128xf32, #tpu.memory_space<vmem>>, vector<256x128xf32>
    tpu.vector_store %arg7[%c0_6, %c0_7], %7 {strides = array<i32>} : memref<256x128xf32, #tpu.memory_space<vmem>>, vector<256x128xf32>,
    %c0_i32_8 = arith.constant 0 : i32
    %9 = arith.cmpi eq, %arg2, %c0_i32_8 : i32
    %10 = arith.extui %9 : i1 to i32
    %c0_i32_9 = arith.constant 0 : i32
    %11 = arith.cmpi ne, %10, %c0_i32_9 : i32
    scf.if %11 {
      %c0_10 = arith.constant 0 : index
      %c0_11 = arith.constant 0 : index
      %12 = vector.load %arg7[%c0_10, %c0_11] : memref<256x128xf32, #tpu.memory_space<vmem>>, vector<256x128xf32>
      %cst_12 = arith.constant 0.000000e+00 : f32
      %13 = vector.broadcast %cst_12 : f32 to vector<256x128xf32>
      %14 = arith.cmpf ogt, %12, %13 : vector<256x128xf32>
      %cst_13 = arith.constant 0.000000e+00 : f32
      %15 = vector.broadcast %cst_13 : f32 to vector<256x128xf32>
      %16 = arith.minimumf %12, %15 : vector<256x128xf32>
      %17 = math.exp %16 : vector<256x128xf32>
      %cst_14 = arith.constant 1.000000e+00 : f32
      %18 = vector.broadcast %cst_14 : f32 to vector<256x128xf32>
      %19 = arith.subf %17, %18 : vector<256x128xf32>
      %20 = arith.select %14, %12, %19 : vector<256x128xi1>, vector<256x128xf32>
      %21 = arith.truncf %20 : vector<256x128xf32> to vector<256x128xbf16>
      %c0_15 = arith.constant 0 : index
      %c0_16 = arith.constant 0 : index
      %22 = vector.load %arg6[%c0_15, %c0_16] : memref<256x128xbf16, #tpu.memory_space<vmem>>, vector<256x128xbf16>
      tpu.vector_store %arg6[%c0_15, %c0_16], %21 {strides = array<i32>} : memref<256x128xbf16, #tpu.memory_space<vmem>>, vector<256x128xbf16>,
    } else {
    }
    return
  }
  func.func @transform_0(%arg0: i32, %arg1: i32, %arg2: i32) -> (i32, i32) {
    %c0_i32 = arith.constant 0 : i32
    return %arg0, %arg2 : i32, i32
  }
  func.func @transform_1(%arg0: i32, %arg1: i32, %arg2: i32) -> (i32, i32) {
    %c0_i32 = arith.constant 0 : i32
    return %arg2, %arg1 : i32, i32
  }
  func.func @transform_2(%arg0: i32, %arg1: i32, %arg2: i32) -> (i32, i32) {
    %c0_i32 = arith.constant 0 : i32
    %c0_i32_0 = arith.constant 0 : i32
    return %c0_i32, %arg1 : i32, i32
  }
  func.func @transform_3(%arg0: i32, %arg1: i32, %arg2: i32) -> (i32, i32) {
    %c0_i32 = arith.constant 0 : i32
    return %arg0, %arg1 : i32, i32
  }
}

module attributes {stable_mosaic.version = 11 : i64} {
  func.func @_mm_kernel(%arg0: i32, %arg1: i32, %arg2: i32, %arg3: memref<256x128xbf16, #tpu.memory_space<vmem>>, %arg4: memref<128x128xbf16, #tpu.memory_space<vmem>>, %arg5: memref<1x128xf32, #tpu.memory_space<vmem>>, %arg6: memref<256x128xbf16, #tpu.memory_space<vmem>>, %arg7: memref<256x128xbf16, #tpu.memory_space<vmem>>, %arg8: memref<256x128xf32, #tpu.memory_space<vmem>>) attributes {dimension_semantics = [#tpu.dimension_semantics<parallel>, #tpu.dimension_semantics<parallel>, #tpu.dimension_semantics<arbitrary>], iteration_bounds = array<i64: 2, 1, 1>, scalar_prefetch = 0 : i64, scratch_operands = 1 : i64, tpu.core_type = #tpu.core_type<tc>, window_params = [{transform_indices = @transform_0, window_bounds = array<i64: 256, 128>}, {transform_indices = @transform_1, window_bounds = array<i64: 128, 128>}, {transform_indices = @transform_2, window_bounds = array<i64: 1, 128>}, {transform_indices = @transform_3, window_bounds = array<i64: 256, 128>}, {transform_indices = @transform_4, window_bounds = array<i64: 256, 128>}]} {
    %c0_i32 = arith.constant 0 : i32
    %0 = arith.cmpi eq, %arg2, %c0_i32 : i32
    %1 = arith.extui %0 : i1 to i32
    %c0_i32_0 = arith.constant 0 : i32
    %2 = arith.cmpi ne, %1, %c0_i32_0 : i32
    scf.if %2 {
      %c0_10 = arith.constant 0 : index
      %c0_11 = arith.constant 0 : index
      %12 = vector.load %arg5[%c0_10, %c0_11] : memref<1x128xf32, #tpu.memory_space<vmem>>, vector<1x128xf32>
      %13 = vector.shape_cast %12 : vector<1x128xf32> to vector<1x128xf32>
      %14 = vector.broadcast %13 : vector<1x128xf32> to vector<256x128xf32>
      %c0_12 = arith.constant 0 : index
      %c0_13 = arith.constant 0 : index
      %15 = vector.load %arg8[%c0_12, %c0_13] : memref<256x128xf32, #tpu.memory_space<vmem>>, vector<256x128xf32>
      tpu.vector_store %arg8[%c0_12, %c0_13], %14 {strides = array<i32>} : memref<256x128xf32, #tpu.memory_space<vmem>>, vector<256x128xf32>,
    } else {
    }
    %c0 = arith.constant 0 : index
    %c0_1 = arith.constant 0 : index
    %3 = vector.load %arg8[%c0, %c0_1] : memref<256x128xf32, #tpu.memory_space<vmem>>, vector<256x128xf32>
    %c0_2 = arith.constant 0 : index
    %c0_3 = arith.constant 0 : index
    %4 = vector.load %arg3[%c0_2, %c0_3] : memref<256x128xbf16, #tpu.memory_space<vmem>>, vector<256x128xbf16>
    %c0_4 = arith.constant 0 : index
    %c0_5 = arith.constant 0 : index
    %5 = vector.load %arg4[%c0_4, %c0_5] : memref<128x128xbf16, #tpu.memory_space<vmem>>, vector<128x128xbf16>
    %cst = arith.constant dense<0.000000e+00> : vector<256x128xf32>
    %6 = tpu.matmul %4, %5, %cst {dimension_numbers = #tpu.dot_dimension_numbers<[1], [0], [0], [1], [0, 0, 1, 1], [], []>} : vector<256x128xbf16>, vector<128x128xbf16>, vector<256x128xf32> -> vector<256x128xf32>
    %7 = arith.addf %3, %6 : vector<256x128xf32>
    %c0_6 = arith.constant 0 : index
    %c0_7 = arith.constant 0 : index
    %8 = vector.load %arg8[%c0_6, %c0_7] : memref<256x128xf32, #tpu.memory_space<vmem>>, vector<256x128xf32>
    tpu.vector_store %arg8[%c0_6, %c0_7], %7 {strides = array<i32>} : memref<256x128xf32, #tpu.memory_space<vmem>>, vector<256x128xf32>,
    %c0_i32_8 = arith.constant 0 : i32
    %9 = arith.cmpi eq, %arg2, %c0_i32_8 : i32
    %10 = arith.extui %9 : i1 to i32
    %c0_i32_9 = arith.constant 0 : i32
    %11 = arith.cmpi ne, %10, %c0_i32_9 : i32
    scf.if %11 {
      %c0_10 = arith.constant 0 : index
      %c0_11 = arith.constant 0 : index
      %12 = vector.load %arg8[%c0_10, %c0_11] : memref<256x128xf32, #tpu.memory_space<vmem>>, vector<256x128xf32>
      %c0_12 = arith.constant 0 : index
      %c0_13 = arith.constant 0 : index
      %13 = vector.load %arg6[%c0_12, %c0_13] : memref<256x128xbf16, #tpu.memory_space<vmem>>, vector<256x128xbf16>
      %14 = arith.extf %13 : vector<256x128xbf16> to vector<256x128xf32>
      %15 = arith.addf %12, %14 : vector<256x128xf32>
      %cst_14 = arith.constant 0.000000e+00 : f32
      %16 = vector.broadcast %cst_14 : f32 to vector<256x128xf32>
      %17 = arith.cmpf ogt, %15, %16 : vector<256x128xf32>
      %cst_15 = arith.constant 0.000000e+00 : f32
      %18 = vector.broadcast %cst_15 : f32 to vector<256x128xf32>
      %19 = arith.minimumf %15, %18 : vector<256x128xf32>
      %20 = math.exp %19 : vector<256x128xf32>
      %cst_16 = arith.constant 1.000000e+00 : f32
      %21 = vector.broadcast %cst_16 : f32 to vector<256x128xf32>
      %22 = arith.subf %20, %21 : vector<256x128xf32>
      %23 = arith.select %17, %15, %22 : vector<256x128xi1>, vector<256x128xf32>
      %24 = arith.truncf %23 : vector<256x128xf32> to vector<256x128xbf16>
      %c0_17 = arith.constant 0 : index
      %c0_18 = arith.constant 0 : index
      %25 = vector.load %arg7[%c0_17, %c0_18] : memref<256x128xbf16, #tpu.memory_space<vmem>>, vector<256x128xbf16>
      tpu.vector_store %arg7[%c0_17, %c0_18], %24 {strides = array<i32>} : memref<256x128xbf16, #tpu.memory_space<vmem>>, vector<256x128xbf16>,
    } else {
    }
    return
  }
  func.func @transform_0(%arg0: i32, %arg1: i32, %arg2: i32) -> (i32, i32) {
    %c0_i32 = arith.constant 0 : i32
    return %arg0, %arg2 : i32, i32
  }
  func.func @transform_1(%arg0: i32, %arg1: i32, %arg2: i32) -> (i32, i32) {
    %c0_i32 = arith.constant 0 : i32
    return %arg2, %arg1 : i32, i32
  }
  func.func @transform_2(%arg0: i32, %arg1: i32, %arg2: i32) -> (i32, i32) {
    %c0_i32 = arith.constant 0 : i32
    %c0_i32_0 = arith.constant 0 : i32
    return %c0_i32, %arg1 : i32, i32
  }
  func.func @transform_3(%arg0: i32, %arg1: i32, %arg2: i32) -> (i32, i32) {
    %c0_i32 = arith.constant 0 : i32
    return %arg0, %arg1 : i32, i32
  }
  func.func @transform_4(%arg0: i32, %arg1: i32, %arg2: i32) -> (i32, i32) {
    %c0_i32 = arith.constant 0 : i32
    return %arg0, %arg1 : i32, i32
  }
}

module attributes {stable_mosaic.version = 11 : i64} {
  func.func @_mm_kernel(%arg0: i32, %arg1: i32, %arg2: i32, %arg3: memref<128x384xbf16, #tpu.memory_space<vmem>>, %arg4: memref<384x128xbf16, #tpu.memory_space<vmem>>, %arg5: memref<1x128xf32, #tpu.memory_space<vmem>>, %arg6: memref<128x128xbf16, #tpu.memory_space<vmem>>, %arg7: memref<128x128xf32, #tpu.memory_space<vmem>>) attributes {dimension_semantics = [#tpu.dimension_semantics<parallel>, #tpu.dimension_semantics<parallel>, #tpu.dimension_semantics<arbitrary>], iteration_bounds = array<i64: 1, 1, 1>, scalar_prefetch = 0 : i64, scratch_operands = 1 : i64, tpu.core_type = #tpu.core_type<tc>, window_params = [{transform_indices = @transform_0, window_bounds = array<i64: 128, 384>}, {transform_indices = @transform_1, window_bounds = array<i64: 384, 128>}, {transform_indices = @transform_2, window_bounds = array<i64: 1, 128>}, {transform_indices = @transform_3, window_bounds = array<i64: 128, 128>}]} {
    %c0_i32 = arith.constant 0 : i32
    %0 = arith.cmpi eq, %arg2, %c0_i32 : i32
    %1 = arith.extui %0 : i1 to i32
    %c0_i32_0 = arith.constant 0 : i32
    %2 = arith.cmpi ne, %1, %c0_i32_0 : i32
    scf.if %2 {
      %c0_10 = arith.constant 0 : index
      %c0_11 = arith.constant 0 : index
      %12 = vector.load %arg5[%c0_10, %c0_11] : memref<1x128xf32, #tpu.memory_space<vmem>>, vector<1x128xf32>
      %13 = vector.shape_cast %12 : vector<1x128xf32> to vector<1x128xf32>
      %14 = vector.broadcast %13 : vector<1x128xf32> to vector<128x128xf32>
      %c0_12 = arith.constant 0 : index
      %c0_13 = arith.constant 0 : index
      %15 = vector.load %arg7[%c0_12, %c0_13] : memref<128x128xf32, #tpu.memory_space<vmem>>, vector<128x128xf32>
      tpu.vector_store %arg7[%c0_12, %c0_13], %14 {strides = array<i32>} : memref<128x128xf32, #tpu.memory_space<vmem>>, vector<128x128xf32>,
    } else {
    }
    %c0 = arith.constant 0 : index
    %c0_1 = arith.constant 0 : index
    %3 = vector.load %arg7[%c0, %c0_1] : memref<128x128xf32, #tpu.memory_space<vmem>>, vector<128x128xf32>
    %c0_2 = arith.constant 0 : index
    %c0_3 = arith.constant 0 : index
    %4 = vector.load %arg3[%c0_2, %c0_3] : memref<128x384xbf16, #tpu.memory_space<vmem>>, vector<128x384xbf16>
    %c0_4 = arith.constant 0 : index
    %c0_5 = arith.constant 0 : index
    %5 = vector.load %arg4[%c0_4, %c0_5] : memref<384x128xbf16, #tpu.memory_space<vmem>>, vector<384x128xbf16>
    %cst = arith.constant dense<0.000000e+00> : vector<128x128xf32>
    %6 = tpu.matmul %4, %5, %cst {dimension_numbers = #tpu.dot_dimension_numbers<[1], [0], [0], [1], [0, 0, 1, 1], [], []>} : vector<128x384xbf16>, vector<384x128xbf16>, vector<128x128xf32> -> vector<128x128xf32>
    %7 = arith.addf %3, %6 : vector<128x128xf32>
    %c0_6 = arith.constant 0 : index
    %c0_7 = arith.constant 0 : index
    %8 = vector.load %arg7[%c0_6, %c0_7] : memref<128x128xf32, #tpu.memory_space<vmem>>, vector<128x128xf32>
    tpu.vector_store %arg7[%c0_6, %c0_7], %7 {strides = array<i32>} : memref<128x128xf32, #tpu.memory_space<vmem>>, vector<128x128xf32>,
    %c0_i32_8 = arith.constant 0 : i32
    %9 = arith.cmpi eq, %arg2, %c0_i32_8 : i32
    %10 = arith.extui %9 : i1 to i32
    %c0_i32_9 = arith.constant 0 : i32
    %11 = arith.cmpi ne, %10, %c0_i32_9 : i32
    scf.if %11 {
      %c0_10 = arith.constant 0 : index
      %c0_11 = arith.constant 0 : index
      %12 = vector.load %arg7[%c0_10, %c0_11] : memref<128x128xf32, #tpu.memory_space<vmem>>, vector<128x128xf32>
      %cst_12 = arith.constant 0.000000e+00 : f32
      %13 = vector.broadcast %cst_12 : f32 to vector<128x128xf32>
      %14 = arith.cmpf ogt, %12, %13 : vector<128x128xf32>
      %cst_13 = arith.constant 0.000000e+00 : f32
      %15 = vector.broadcast %cst_13 : f32 to vector<128x128xf32>
      %16 = arith.minimumf %12, %15 : vector<128x128xf32>
      %17 = math.exp %16 : vector<128x128xf32>
      %cst_14 = arith.constant 1.000000e+00 : f32
      %18 = vector.broadcast %cst_14 : f32 to vector<128x128xf32>
      %19 = arith.subf %17, %18 : vector<128x128xf32>
      %20 = arith.select %14, %12, %19 : vector<128x128xi1>, vector<128x128xf32>
      %21 = arith.truncf %20 : vector<128x128xf32> to vector<128x128xbf16>
      %c0_15 = arith.constant 0 : index
      %c0_16 = arith.constant 0 : index
      %22 = vector.load %arg6[%c0_15, %c0_16] : memref<128x128xbf16, #tpu.memory_space<vmem>>, vector<128x128xbf16>
      tpu.vector_store %arg6[%c0_15, %c0_16], %21 {strides = array<i32>} : memref<128x128xbf16, #tpu.memory_space<vmem>>, vector<128x128xbf16>,
    } else {
    }
    return
  }
  func.func @transform_0(%arg0: i32, %arg1: i32, %arg2: i32) -> (i32, i32) {
    %c0_i32 = arith.constant 0 : i32
    return %arg0, %arg2 : i32, i32
  }
  func.func @transform_1(%arg0: i32, %arg1: i32, %arg2: i32) -> (i32, i32) {
    %c0_i32 = arith.constant 0 : i32
    return %arg2, %arg1 : i32, i32
  }
  func.func @transform_2(%arg0: i32, %arg1: i32, %arg2: i32) -> (i32, i32) {
    %c0_i32 = arith.constant 0 : i32
    %c0_i32_0 = arith.constant 0 : i32
    return %c0_i32, %arg1 : i32, i32
  }
  func.func @transform_3(%arg0: i32, %arg1: i32, %arg2: i32) -> (i32, i32) {
    %c0_i32 = arith.constant 0 : i32
    return %arg0, %arg1 : i32, i32
  }
}

module attributes {stable_mosaic.version = 11 : i64} {
  func.func @_mm_kernel(%arg0: i32, %arg1: i32, %arg2: i32, %arg3: memref<128x128xbf16, #tpu.memory_space<vmem>>, %arg4: memref<128x128xbf16, #tpu.memory_space<vmem>>, %arg5: memref<1x128xf32, #tpu.memory_space<vmem>>, %arg6: memref<128x128xbf16, #tpu.memory_space<vmem>>, %arg7: memref<128x128xf32, #tpu.memory_space<vmem>>) attributes {dimension_semantics = [#tpu.dimension_semantics<parallel>, #tpu.dimension_semantics<parallel>, #tpu.dimension_semantics<arbitrary>], iteration_bounds = array<i64: 1, 1, 1>, scalar_prefetch = 0 : i64, scratch_operands = 1 : i64, tpu.core_type = #tpu.core_type<tc>, window_params = [{transform_indices = @transform_0, window_bounds = array<i64: 128, 128>}, {transform_indices = @transform_1, window_bounds = array<i64: 128, 128>}, {transform_indices = @transform_2, window_bounds = array<i64: 1, 128>}, {transform_indices = @transform_3, window_bounds = array<i64: 128, 128>}]} {
    %c0_i32 = arith.constant 0 : i32
    %0 = arith.cmpi eq, %arg2, %c0_i32 : i32
    %1 = arith.extui %0 : i1 to i32
    %c0_i32_0 = arith.constant 0 : i32
    %2 = arith.cmpi ne, %1, %c0_i32_0 : i32
    scf.if %2 {
      %c0_10 = arith.constant 0 : index
      %c0_11 = arith.constant 0 : index
      %12 = vector.load %arg5[%c0_10, %c0_11] : memref<1x128xf32, #tpu.memory_space<vmem>>, vector<1x128xf32>
      %13 = vector.shape_cast %12 : vector<1x128xf32> to vector<1x128xf32>
      %14 = vector.broadcast %13 : vector<1x128xf32> to vector<128x128xf32>
      %c0_12 = arith.constant 0 : index
      %c0_13 = arith.constant 0 : index
      %15 = vector.load %arg7[%c0_12, %c0_13] : memref<128x128xf32, #tpu.memory_space<vmem>>, vector<128x128xf32>
      tpu.vector_store %arg7[%c0_12, %c0_13], %14 {strides = array<i32>} : memref<128x128xf32, #tpu.memory_space<vmem>>, vector<128x128xf32>,
    } else {
    }
    %c0 = arith.constant 0 : index
    %c0_1 = arith.constant 0 : index
    %3 = vector.load %arg7[%c0, %c0_1] : memref<128x128xf32, #tpu.memory_space<vmem>>, vector<128x128xf32>
    %c0_2 = arith.constant 0 : index
    %c0_3 = arith.constant 0 : index
    %4 = vector.load %arg3[%c0_2, %c0_3] : memref<128x128xbf16, #tpu.memory_space<vmem>>, vector<128x128xbf16>
    %c0_4 = arith.constant 0 : index
    %c0_5 = arith.constant 0 : index
    %5 = vector.load %arg4[%c0_4, %c0_5] : memref<128x128xbf16, #tpu.memory_space<vmem>>, vector<128x128xbf16>
    %cst = arith.constant dense<0.000000e+00> : vector<128x128xf32>
    %6 = tpu.matmul %4, %5, %cst {dimension_numbers = #tpu.dot_dimension_numbers<[1], [0], [0], [1], [0, 0, 1, 1], [], []>} : vector<128x128xbf16>, vector<128x128xbf16>, vector<128x128xf32> -> vector<128x128xf32>
    %7 = arith.addf %3, %6 : vector<128x128xf32>
    %c0_6 = arith.constant 0 : index
    %c0_7 = arith.constant 0 : index
    %8 = vector.load %arg7[%c0_6, %c0_7] : memref<128x128xf32, #tpu.memory_space<vmem>>, vector<128x128xf32>
    tpu.vector_store %arg7[%c0_6, %c0_7], %7 {strides = array<i32>} : memref<128x128xf32, #tpu.memory_space<vmem>>, vector<128x128xf32>,
    %c0_i32_8 = arith.constant 0 : i32
    %9 = arith.cmpi eq, %arg2, %c0_i32_8 : i32
    %10 = arith.extui %9 : i1 to i32
    %c0_i32_9 = arith.constant 0 : i32
    %11 = arith.cmpi ne, %10, %c0_i32_9 : i32
    scf.if %11 {
      %c0_10 = arith.constant 0 : index
      %c0_11 = arith.constant 0 : index
      %12 = vector.load %arg7[%c0_10, %c0_11] : memref<128x128xf32, #tpu.memory_space<vmem>>, vector<128x128xf32>
      %13 = arith.truncf %12 : vector<128x128xf32> to vector<128x128xbf16>
      %c0_12 = arith.constant 0 : index
      %c0_13 = arith.constant 0 : index
      %14 = vector.load %arg6[%c0_12, %c0_13] : memref<128x128xbf16, #tpu.memory_space<vmem>>, vector<128x128xbf16>
      tpu.vector_store %arg6[%c0_12, %c0_13], %13 {strides = array<i32>} : memref<128x128xbf16, #tpu.memory_space<vmem>>, vector<128x128xbf16>,
    } else {
    }
    return
  }
  func.func @transform_0(%arg0: i32, %arg1: i32, %arg2: i32) -> (i32, i32) {
    %c0_i32 = arith.constant 0 : i32
    return %arg0, %arg2 : i32, i32
  }
  func.func @transform_1(%arg0: i32, %arg1: i32, %arg2: i32) -> (i32, i32) {
    %c0_i32 = arith.constant 0 : i32
    return %arg2, %arg1 : i32, i32
  }
  func.func @transform_2(%arg0: i32, %arg1: i32, %arg2: i32) -> (i32, i32) {
    %c0_i32 = arith.constant 0 : i32
    %c0_i32_0 = arith.constant 0 : i32
    return %c0_i32, %arg1 : i32, i32
  }
  func.func @transform_3(%arg0: i32, %arg1: i32, %arg2: i32) -> (i32, i32) {
    %c0_i32 = arith.constant 0 : i32
    return %arg0, %arg1 : i32, i32
  }
}

module attributes {stable_mosaic.version = 11 : i64} {
  func.func @_mm_kernel(%arg0: i32, %arg1: i32, %arg2: i32, %arg3: memref<128x128xbf16, #tpu.memory_space<vmem>>, %arg4: memref<128x128xbf16, #tpu.memory_space<vmem>>, %arg5: memref<1x128xf32, #tpu.memory_space<vmem>>, %arg6: memref<128x128xbf16, #tpu.memory_space<vmem>>, %arg7: memref<128x128xbf16, #tpu.memory_space<vmem>>, %arg8: memref<128x128xf32, #tpu.memory_space<vmem>>) attributes {dimension_semantics = [#tpu.dimension_semantics<parallel>, #tpu.dimension_semantics<parallel>, #tpu.dimension_semantics<arbitrary>], iteration_bounds = array<i64: 1, 1, 1>, scalar_prefetch = 0 : i64, scratch_operands = 1 : i64, tpu.core_type = #tpu.core_type<tc>, window_params = [{transform_indices = @transform_0, window_bounds = array<i64: 128, 128>}, {transform_indices = @transform_1, window_bounds = array<i64: 128, 128>}, {transform_indices = @transform_2, window_bounds = array<i64: 1, 128>}, {transform_indices = @transform_3, window_bounds = array<i64: 128, 128>}, {transform_indices = @transform_4, window_bounds = array<i64: 128, 128>}]} {
    %c0_i32 = arith.constant 0 : i32
    %0 = arith.cmpi eq, %arg2, %c0_i32 : i32
    %1 = arith.extui %0 : i1 to i32
    %c0_i32_0 = arith.constant 0 : i32
    %2 = arith.cmpi ne, %1, %c0_i32_0 : i32
    scf.if %2 {
      %c0_10 = arith.constant 0 : index
      %c0_11 = arith.constant 0 : index
      %12 = vector.load %arg5[%c0_10, %c0_11] : memref<1x128xf32, #tpu.memory_space<vmem>>, vector<1x128xf32>
      %13 = vector.shape_cast %12 : vector<1x128xf32> to vector<1x128xf32>
      %14 = vector.broadcast %13 : vector<1x128xf32> to vector<128x128xf32>
      %c0_12 = arith.constant 0 : index
      %c0_13 = arith.constant 0 : index
      %15 = vector.load %arg8[%c0_12, %c0_13] : memref<128x128xf32, #tpu.memory_space<vmem>>, vector<128x128xf32>
      tpu.vector_store %arg8[%c0_12, %c0_13], %14 {strides = array<i32>} : memref<128x128xf32, #tpu.memory_space<vmem>>, vector<128x128xf32>,
    } else {
    }
    %c0 = arith.constant 0 : index
    %c0_1 = arith.constant 0 : index
    %3 = vector.load %arg8[%c0, %c0_1] : memref<128x128xf32, #tpu.memory_space<vmem>>, vector<128x128xf32>
    %c0_2 = arith.constant 0 : index
    %c0_3 = arith.constant 0 : index
    %4 = vector.load %arg3[%c0_2, %c0_3] : memref<128x128xbf16, #tpu.memory_space<vmem>>, vector<128x128xbf16>
    %c0_4 = arith.constant 0 : index
    %c0_5 = arith.constant 0 : index
    %5 = vector.load %arg4[%c0_4, %c0_5] : memref<128x128xbf16, #tpu.memory_space<vmem>>, vector<128x128xbf16>
    %cst = arith.constant dense<0.000000e+00> : vector<128x128xf32>
    %6 = tpu.matmul %4, %5, %cst {dimension_numbers = #tpu.dot_dimension_numbers<[1], [0], [0], [1], [0, 0, 1, 1], [], []>} : vector<128x128xbf16>, vector<128x128xbf16>, vector<128x128xf32> -> vector<128x128xf32>
    %7 = arith.addf %3, %6 : vector<128x128xf32>
    %c0_6 = arith.constant 0 : index
    %c0_7 = arith.constant 0 : index
    %8 = vector.load %arg8[%c0_6, %c0_7] : memref<128x128xf32, #tpu.memory_space<vmem>>, vector<128x128xf32>
    tpu.vector_store %arg8[%c0_6, %c0_7], %7 {strides = array<i32>} : memref<128x128xf32, #tpu.memory_space<vmem>>, vector<128x128xf32>,
    %c0_i32_8 = arith.constant 0 : i32
    %9 = arith.cmpi eq, %arg2, %c0_i32_8 : i32
    %10 = arith.extui %9 : i1 to i32
    %c0_i32_9 = arith.constant 0 : i32
    %11 = arith.cmpi ne, %10, %c0_i32_9 : i32
    scf.if %11 {
      %c0_10 = arith.constant 0 : index
      %c0_11 = arith.constant 0 : index
      %12 = vector.load %arg8[%c0_10, %c0_11] : memref<128x128xf32, #tpu.memory_space<vmem>>, vector<128x128xf32>
      %c0_12 = arith.constant 0 : index
      %c0_13 = arith.constant 0 : index
      %13 = vector.load %arg6[%c0_12, %c0_13] : memref<128x128xbf16, #tpu.memory_space<vmem>>, vector<128x128xbf16>
      %14 = arith.extf %13 : vector<128x128xbf16> to vector<128x128xf32>
      %15 = arith.addf %12, %14 : vector<128x128xf32>
      %cst_14 = arith.constant 0.000000e+00 : f32
      %16 = vector.broadcast %cst_14 : f32 to vector<128x128xf32>
      %17 = arith.cmpf ogt, %15, %16 : vector<128x128xf32>
      %cst_15 = arith.constant 0.000000e+00 : f32
      %18 = vector.broadcast %cst_15 : f32 to vector<128x128xf32>
      %19 = arith.minimumf %15, %18 : vector<128x128xf32>
      %20 = math.exp %19 : vector<128x128xf32>
      %cst_16 = arith.constant 1.000000e+00 : f32
      %21 = vector.broadcast %cst_16 : f32 to vector<128x128xf32>
      %22 = arith.subf %20, %21 : vector<128x128xf32>
      %23 = arith.select %17, %15, %22 : vector<128x128xi1>, vector<128x128xf32>
      %24 = arith.truncf %23 : vector<128x128xf32> to vector<128x128xbf16>
      %c0_17 = arith.constant 0 : index
      %c0_18 = arith.constant 0 : index
      %25 = vector.load %arg7[%c0_17, %c0_18] : memref<128x128xbf16, #tpu.memory_space<vmem>>, vector<128x128xbf16>
      tpu.vector_store %arg7[%c0_17, %c0_18], %24 {strides = array<i32>} : memref<128x128xbf16, #tpu.memory_space<vmem>>, vector<128x128xbf16>,
    } else {
    }
    return
  }
  func.func @transform_0(%arg0: i32, %arg1: i32, %arg2: i32) -> (i32, i32) {
    %c0_i32 = arith.constant 0 : i32
    return %arg0, %arg2 : i32, i32
  }
  func.func @transform_1(%arg0: i32, %arg1: i32, %arg2: i32) -> (i32, i32) {
    %c0_i32 = arith.constant 0 : i32
    return %arg2, %arg1 : i32, i32
  }
  func.func @transform_2(%arg0: i32, %arg1: i32, %arg2: i32) -> (i32, i32) {
    %c0_i32 = arith.constant 0 : i32
    %c0_i32_0 = arith.constant 0 : i32
    return %c0_i32, %arg1 : i32, i32
  }
  func.func @transform_3(%arg0: i32, %arg1: i32, %arg2: i32) -> (i32, i32) {
    %c0_i32 = arith.constant 0 : i32
    return %arg0, %arg1 : i32, i32
  }
  func.func @transform_4(%arg0: i32, %arg1: i32, %arg2: i32) -> (i32, i32) {
    %c0_i32 = arith.constant 0 : i32
    return %arg0, %arg1 : i32, i32
  }
}

</mosaic_0001>

<llo_original>
// kernel: forward.7
$region0: #{forward.7}
  #allocation0 [shape = 'u32[]', space=smem, size = 0x4, offset = 0x4, fixed_abs, tag = 'smem constant byte address 0x4 - core index']
  #allocation1 [shape = 'u32[144,128]{1,0:T(1,128)}', space=vmem, size = 0x12000, scoped, tag = 'internal scratch']
  #allocation2 [shape = 'f32[256,128]{1,0:T(8,128)}', space=vmem, size = 0x20000, scoped, tag = 'scratch operand']
  %s0 = inlined_call_operand.vmem [shape: bf16[512,128], index: 0, kind: input, shape index: {}]
  %s1 = inlined_call_operand.vmem [shape: bf16[128,128], index: 1, kind: input, shape index: {}]
  %s2 = inlined_call_operand.vmem [shape: f32[1,128], index: 2, kind: input, shape index: {}]
  %s3 = inlined_call_operand.vmem [shape: bf16[512,128], index: 3, kind: output, shape index: {}]
  %s4 = sld [smem:[#allocation0]]
  $region53: #{forward.7} parent=0
    _
  %s6 = ssub.s32 1, %s4
  %s7 = scalar_select 0, %s6, %s4
  loop: start=0, step=1, limit=4
  $region2: #{forward.7} parent=0 // loop_pre_header
    _
  $region3: #{forward.7} parent=0 // loop_header
    %s9 = sphi 0, %s13
    %p10 = scmp.ge.s32.totalorder %s9, 4
    %s16 = sphi 0, %s35
    %s17 = sphi 0, %s31
    %s18 = sphi 0, %s27
    %s19 = sphi 0, %s16
    %s20 = sphi 0, %s17
    %s21 = sphi 0, %s18
    %s22 = sphi 0, %s19
    %s23 = sphi 0, %s20
    %s24 = sphi 0, %s21
    %s40 = sphi 0, %s42
    %s43 = sphi 0, %s40
    %s44 = sphi 0, %s43
    %s60 = sphi 0, %s44
    %s68 = sphi 0, %s70
    %s71 = sphi 0, %s68
    %s72 = sphi 0, %s71
    %s88 = sphi 0, %s72
    %s94 = sphi 0, %s96
    %s97 = sphi 0, %s94
    %s98 = sphi 0, %s97
    %s114 = sphi 0, %s98
    %s122 = sphi 0, %s124
    %s125 = sphi 0, %s122
    %s126 = sphi 0, %s125
    %s142 = sphi 0, %s126
  $region4: #{forward.7} parent=0 // loop_header_branch
    %12 = sbr.rel (%p10) target = $region8
  $region5: #{forward.7} parent=0 // loop_body
    %s14 = ssub.s32 %s9, 1
    %s15 = ssub.s32 %s9, 2
    %s25 = sadd.s32 1, %s18
    %p26 = scmp.ge.s32.totalorder %s25, 1
    %s27 = scalar_select %p26, 0, %s25
    %s28 = sadd.s32 1, %s17
    %s29 = scalar_select %p26, %s28, %s17
    %p30 = scmp.ge.s32.totalorder %s29, 1
    %s31 = scalar_select %p30, 0, %s29
    %s32 = sadd.s32 1, %s16
    %s33 = scalar_select %p30, %s32, %s16
    %p34 = scmp.ge.s32.totalorder %s33, 2
    %s35 = scalar_select %p34, 0, %s33
    %s36 = ssub.s32 %s16, %s35
    %s37 = ssub.s32 %s18, %s27
    %s38 = sor.u32 %s36, %s37
    %p39 = scmp.eq.s32.totalorder %s38, 0
    %s41 = sadd.s32 %s40, 1
    %s42 = scalar_select %p39, %s40, %s41
    %p45 = pneg %p39
    %p46 = scmp.eq.s32.totalorder %s9, 1
    %p47 = por %p45, %p46
    %p48 = scmp.ne.s32.totalorder %s40, %s43
    %p49 = scmp.eq.s32.totalorder %s9, 0
    %p50 = por %p48, %p49
    %p51 = scmp.ne.s32.totalorder %s40, %s43
    %p52 = scmp.eq.s32.totalorder %s14, 1
    %p53 = por %p51, %p52
    %p54 = scmp.ne.s32.totalorder %s43, %s44
    %p55 = scmp.eq.s32.totalorder %s14, 0
    %p56 = por %p54, %p55
    %p57 = scmp.ne.s32.totalorder %s43, %s44
    %p58 = scmp.eq.s32.totalorder %s15, 1
    %p59 = por %p57, %p58
    %p61 = scmp.ne.s32.totalorder %s44, %s60
    %p62 = scmp.eq.s32.totalorder %s15, 0
    %p63 = por %p61, %p62
    %s64 = ssub.s32 %s18, %s27
    %s65 = ssub.s32 %s17, %s31
    %s66 = sor.u32 %s64, %s65
    %p67 = scmp.eq.s32.totalorder %s66, 0
    %s69 = sadd.s32 %s68, 1
    %s70 = scalar_select %p67, %s68, %s69
    %p73 = pneg %p67
    %p74 = scmp.eq.s32.totalorder %s9, 1
    %p75 = por %p73, %p74
    %p76 = scmp.ne.s32.totalorder %s68, %s71
    %p77 = scmp.eq.s32.totalorder %s9, 0
    %p78 = por %p76, %p77
    %p79 = scmp.ne.s32.totalorder %s68, %s71
    %p80 = scmp.eq.s32.totalorder %s14, 1
    %p81 = por %p79, %p80
    %p82 = scmp.ne.s32.totalorder %s71, %s72
    %p83 = scmp.eq.s32.totalorder %s14, 0
    %p84 = por %p82, %p83
    %p85 = scmp.ne.s32.totalorder %s71, %s72
    %p86 = scmp.eq.s32.totalorder %s15, 1
    %p87 = por %p85, %p86
    %p89 = scmp.ne.s32.totalorder %s72, %s88
    %p90 = scmp.eq.s32.totalorder %s15, 0
    %p91 = por %p89, %p90
    %s92 = ssub.s32 %s17, %s31
    %p93 = scmp.eq.s32.totalorder %s92, 0
    %s95 = sadd.s32 %s94, 1
    %s96 = scalar_select %p93, %s94, %s95
    %p99 = pneg %p93
    %p100 = scmp.eq.s32.totalorder %s9, 1
    %p101 = por %p99, %p100
    %p102 = scmp.ne.s32.totalorder %s94, %s97
    %p103 = scmp.eq.s32.totalorder %s9, 0
    %p104 = por %p102, %p103
    %p105 = scmp.ne.s32.totalorder %s94, %s97
    %p106 = scmp.eq.s32.totalorder %s14, 1
    %p107 = por %p105, %p106
    %p108 = scmp.ne.s32.totalorder %s97, %s98
    %p109 = scmp.eq.s32.totalorder %s14, 0
    %p110 = por %p108, %p109
    %p111 = scmp.ne.s32.totalorder %s97, %s98
    %p112 = scmp.eq.s32.totalorder %s15, 1
    %p113 = por %p111, %p112
    %p115 = scmp.ne.s32.totalorder %s98, %s114
    %p116 = scmp.eq.s32.totalorder %s15, 0
    %p117 = por %p115, %p116
    %s118 = ssub.s32 %s16, %s35
    %s119 = ssub.s32 %s17, %s31
    %s120 = sor.u32 %s118, %s119
    %p121 = scmp.eq.s32.totalorder %s120, 0
    %s123 = sadd.s32 %s122, 1
    %s124 = scalar_select %p121, %s122, %s123
    %p127 = pneg %p121
    %p128 = scmp.eq.s32.totalorder %s9, 1
    %p129 = por %p127, %p128
    %p130 = scmp.ne.s32.totalorder %s122, %s125
    %p131 = scmp.eq.s32.totalorder %s9, 0
    %p132 = por %p130, %p131
    %p133 = scmp.ne.s32.totalorder %s122, %s125
    %p134 = scmp.eq.s32.totalorder %s14, 1
    %p135 = por %p133, %p134
    %p136 = scmp.ne.s32.totalorder %s125, %s126
    %p137 = scmp.eq.s32.totalorder %s14, 0
    %p138 = por %p136, %p137
    %p139 = scmp.ne.s32.totalorder %s125, %s126
    %p140 = scmp.eq.s32.totalorder %s15, 1
    %p141 = por %p139, %p140
    %p143 = scmp.ne.s32.totalorder %s126, %s142
    %p144 = scmp.eq.s32.totalorder %s15, 0
    %p145 = por %p143, %p144
    %p146 = scmp.le.s32.totalorder 1, %s9
    %p147 = scmp.lt.s32.totalorder %s9, 3
    %p148 = pnand %p146, %p147
    %p149 = pneg %p148
    // Predicated region
    $region9: #{forward.7} parent=5 // pred_check
      _
    $region10: #{forward.7} parent=5 // pred_check_branch
      %151 = sbr.rel (%p148) target = $region12
    $region11: #{forward.7} parent=5 // pred_region
      %s152 = ssub.s32 %s9, 1
      // Predicated region
      $region13: #{forward.7} parent=11 // pred_check
        %p153 = pneg %p84
      $region14: #{forward.7} parent=11 // pred_check_branch
        %155 = sbr.rel (%p153) target = $region16
      $region15: #{forward.7} parent=11 // pred_region
        %s156 = smul.u32 16, %s21
        %p157 = scmp.lt.s32.totalorder %s156, 15
        %s158 = scalar_select %p157, %s156, 15
        %p159 = scmp.lt.s32.totalorder %s20, 0
        %s160 = scalar_select %p159, %s20, 0
        %s161 = sadd.s32 %s160, %s158
        %s162 = smul.addr %s161, 4
        %s163 = scalar_lea.vmem %s1, %s162
        %s164 = smul.u32 16, %s21
      $region16: #{forward.7} parent=11 // pred_fallthru
        _
      // Predicated region
      $region17: #{forward.7} parent=11 // pred_check
        %p165 = pneg %p110
      $region18: #{forward.7} parent=11 // pred_check_branch
        %167 = sbr.rel (%p165) target = $region20
      $region19: #{forward.7} parent=11 // pred_region
        %p168 = scmp.lt.s32.totalorder %s20, 0
        %s169 = scalar_select %p168, %s20, 0
        %s170 = scalar_lea.vmem %s2, %s169
      $region20: #{forward.7} parent=11 // pred_fallthru
        _
    $region12: #{forward.7} parent=5 // pred_fallthru
      _
    %p171 = scmp.lt.s32.totalorder %s9, 2
    // Predicated region
    $region21: #{forward.7} parent=5 // pred_check
      %p172 = pneg %p171
    $region22: #{forward.7} parent=5 // pred_check_branch
      %174 = sbr.rel (%p172) target = $region24
    $region23: #{forward.7} parent=5 // pred_region
      // Predicated region
      $region25: #{forward.7} parent=23 // pred_check
        %p175 = pneg %p50
      $region26: #{forward.7} parent=23 // pred_check_branch
        %177 = sbr.rel (%p175) target = $region28
      $region27: #{forward.7} parent=23 // pred_region
        %s178 = smul.u32 32, %s16
        %p179 = scmp.lt.s32.totalorder %s178, 63
        %s180 = scalar_select %p179, %s178, 63
        %p181 = scmp.lt.s32.totalorder %s18, 0
        %s182 = scalar_select %p181, %s18, 0
        %s183 = sadd.s32 %s182, %s180
        %s184 = smul.addr %s183, 4
        %s185 = scalar_lea.vmem %s0, %s184
        %s186 = smul.u32 32, %s16
      $region28: #{forward.7} parent=23 // pred_fallthru
        _
    $region24: #{forward.7} parent=5 // pred_fallthru
      _
    %p187 = scmp.le.s32.totalorder 1, %s9
    %p188 = scmp.lt.s32.totalorder %s9, 3
    %p189 = pnand %p187, %p188
    %p190 = pneg %p189
    // Predicated region
    $region29: #{forward.7} parent=5 // pred_check
      _
    $region30: #{forward.7} parent=5 // pred_check_branch
      %192 = sbr.rel (%p189) target = $region32
    $region31: #{forward.7} parent=5 // pred_region
      %s193 = ssub.s32 %s9, 1
      %s194 = smul.u32 32, %s19
      %p195 = scmp.lt.s32.totalorder %s194, 63
      %s196 = scalar_select %p195, %s194, 63
      %p197 = scmp.lt.s32.totalorder %s21, 0
      %s198 = scalar_select %p197, %s21, 0
      %s199 = sadd.s32 %s198, %s196
      %s200 = smul.addr %s199, 4
      %s201 = scalar_lea.vmem %s0, %s200
      %p202 = pneg %p56
      %p203 = pneg %p53
      %s204 = smul.u32 16, %s21
      %p205 = scmp.lt.s32.totalorder %s204, 15
      %s206 = scalar_select %p205, %s204, 15
      %p207 = scmp.lt.s32.totalorder %s20, 0
      %s208 = scalar_select %p207, %s20, 0
      %s209 = sadd.s32 %s208, %s206
      %s210 = smul.addr %s209, 4
      %s211 = scalar_lea.vmem %s1, %s210
      %p212 = pneg %p84
      %p213 = pneg %p81
      %p214 = scmp.lt.s32.totalorder %s20, 0
      %s215 = scalar_select %p214, %s20, 0
      %s216 = scalar_lea.vmem %s2, %s215
      %p217 = pneg %p110
      %p218 = pneg %p107
      %p219 = pneg %p138
      %p220 = pneg %p135
      %s221 = smul.u32 32, %s19
      %p222 = scmp.lt.s32.totalorder %s221, 63
      %s223 = scalar_select %p222, %s221, 63
      %p224 = scmp.lt.s32.totalorder %s20, 0
      %s225 = scalar_select %p224, %s20, 0
      %s226 = sadd.s32 %s225, %s223
      %s227 = smul.addr %s226, 4
      %s228 = scalar_lea.vmem %s3, %s227
      %s229 = smul.u32 32, %s19
      %p230 = scmp.lt.s32.totalorder %s229, 63
      %s231 = scalar_select %p230, %s229, 63
      %p232 = scmp.lt.s32.totalorder %s21, 0
      %s233 = scalar_select %p232, %s21, 0
      %s234 = sadd.s32 %s233, %s231
      %s235 = smul.addr %s234, 4
      %s236 = scalar_lea.vmem %s0, %s235
      %s237 = smul.u32 32, %s19
      %s238 = smul.u32 16, %s21
      %p239 = scmp.lt.s32.totalorder %s238, 15
      %s240 = scalar_select %p239, %s238, 15
      %p241 = scmp.lt.s32.totalorder %s20, 0
      %s242 = scalar_select %p241, %s20, 0
      %s243 = sadd.s32 %s242, %s240
      %s244 = smul.addr %s243, 4
      %s245 = scalar_lea.vmem %s1, %s244
      %s246 = smul.u32 16, %s21
      %p247 = scmp.lt.s32.totalorder %s20, 0
      %s248 = scalar_select %p247, %s20, 0
      %s249 = scalar_lea.vmem %s2, %s248
      %s250 = smul.u32 32, %s19
      %p251 = scmp.lt.s32.totalorder %s250, 63
      %s252 = scalar_select %p251, %s250, 63
      %p253 = scmp.lt.s32.totalorder %s20, 0
      %s254 = scalar_select %p253, %s20, 0
      %s255 = sadd.s32 %s254, %s252
      %s256 = smul.addr %s255, 4
      %s257 = scalar_lea.vmem %s3, %s256
      %s258 = smul.u32 32, %s19
      %p260 = scmp.eq.s32.totalorder %s21, 0
      // Predicated region
      $region33: #{forward.7} parent=31 // pred_check
        %p261 = pneg %p260
      $region34: #{forward.7} parent=31 // pred_check_branch
        %263 = sbr.rel (%p261) target = $region36
      $region35: #{forward.7} parent=31 // pred_region
        %v264 = vld [vmem:[%s249] sm:$0x1]
        %v266 = vlaneseq
        %v267 = vshrl.u32 %v266, 7
        %v268 = vsub.s32 0, %v267
        %v269 = vrot.slane %v264, %v268
        %271 = vst [vmem:[#allocation2] sm:$0xff] %v269
        %272 = vst [vmem:[#allocation2 + $0x8] sm:$0xff] %v269
        %273 = vst [vmem:[#allocation2 + $0x10] sm:$0xff] %v269
        %274 = vst [vmem:[#allocation2 + $0x18] sm:$0xff] %v269
        %275 = vst [vmem:[#allocation2 + $0x20] sm:$0xff] %v269
        %276 = vst [vmem:[#allocation2 + $0x28] sm:$0xff] %v269
        %277 = vst [vmem:[#allocation2 + $0x30] sm:$0xff] %v269
        %278 = vst [vmem:[#allocation2 + $0x38] sm:$0xff] %v269
        %279 = vst [vmem:[#allocation2 + $0x40] sm:$0xff] %v269
        %280 = vst [vmem:[#allocation2 + $0x48] sm:$0xff] %v269
        %281 = vst [vmem:[#allocation2 + $0x50] sm:$0xff] %v269
        %282 = vst [vmem:[#allocation2 + $0x58] sm:$0xff] %v269
        %283 = vst [vmem:[#allocation2 + $0x60] sm:$0xff] %v269
        %284 = vst [vmem:[#allocation2 + $0x68] sm:$0xff] %v269
        %285 = vst [vmem:[#allocation2 + $0x70] sm:$0xff] %v269
        %286 = vst [vmem:[#allocation2 + $0x78] sm:$0xff] %v269
        %287 = vst [vmem:[#allocation2 + $0x80] sm:$0xff] %v269
        %288 = vst [vmem:[#allocation2 + $0x88] sm:$0xff] %v269
        %289 = vst [vmem:[#allocation2 + $0x90] sm:$0xff] %v269
        %290 = vst [vmem:[#allocation2 + $0x98] sm:$0xff] %v269
        %291 = vst [vmem:[#allocation2 + $0xa0] sm:$0xff] %v269
        %292 = vst [vmem:[#allocation2 + $0xa8] sm:$0xff] %v269
        %293 = vst [vmem:[#allocation2 + $0xb0] sm:$0xff] %v269
        %294 = vst [vmem:[#allocation2 + $0xb8] sm:$0xff] %v269
        %295 = vst [vmem:[#allocation2 + $0xc0] sm:$0xff] %v269
        %296 = vst [vmem:[#allocation2 + $0xc8] sm:$0xff] %v269
        %297 = vst [vmem:[#allocation2 + $0xd0] sm:$0xff] %v269
        %298 = vst [vmem:[#allocation2 + $0xd8] sm:$0xff] %v269
        %299 = vst [vmem:[#allocation2 + $0xe0] sm:$0xff] %v269
        %300 = vst [vmem:[#allocation2 + $0xe8] sm:$0xff] %v269
        %301 = vst [vmem:[#allocation2 + $0xf0] sm:$0xff] %v269
        %302 = vst [vmem:[#allocation2 + $0xf8] sm:$0xff] %v269
      $region36: #{forward.7} parent=31 // pred_fallthru
        _
      %v303 = vld [vmem:[#allocation2] sm:$0xff]
      %v304 = vld [vmem:[#allocation2 + $0x8] sm:$0xff]
      %v305 = vld [vmem:[#allocation2 + $0x10] sm:$0xff]
      %v306 = vld [vmem:[#allocation2 + $0x18] sm:$0xff]
      %v307 = vld [vmem:[#allocation2 + $0x20] sm:$0xff]
      %v308 = vld [vmem:[#allocation2 + $0x28] sm:$0xff]
      %v309 = vld [vmem:[#allocation2 + $0x30] sm:$0xff]
      %v310 = vld [vmem:[#allocation2 + $0x38] sm:$0xff]
      %v311 = vld [vmem:[#allocation2 + $0x40] sm:$0xff]
      %v312 = vld [vmem:[#allocation2 + $0x48] sm:$0xff]
      %v313 = vld [vmem:[#allocation2 + $0x50] sm:$0xff]
      %v314 = vld [vmem:[#allocation2 + $0x58] sm:$0xff]
      %v315 = vld [vmem:[#allocation2 + $0x60] sm:$0xff]
      %v316 = vld [vmem:[#allocation2 + $0x68] sm:$0xff]
      %v317 = vld [vmem:[#allocation2 + $0x70] sm:$0xff]
      %v318 = vld [vmem:[#allocation2 + $0x78] sm:$0xff]
      %v319 = vld [vmem:[#allocation2 + $0x80] sm:$0xff]
      %v320 = vld [vmem:[#allocation2 + $0x88] sm:$0xff]
      %v321 = vld [vmem:[#allocation2 + $0x90] sm:$0xff]
      %v322 = vld [vmem:[#allocation2 + $0x98] sm:$0xff]
      %v323 = vld [vmem:[#allocation2 + $0xa0] sm:$0xff]
      %v324 = vld [vmem:[#allocation2 + $0xa8] sm:$0xff]
      %v325 = vld [vmem:[#allocation2 + $0xb0] sm:$0xff]
      %v326 = vld [vmem:[#allocation2 + $0xb8] sm:$0xff]
      %v327 = vld [vmem:[#allocation2 + $0xc0] sm:$0xff]
      %v328 = vld [vmem:[#allocation2 + $0xc8] sm:$0xff]
      %v329 = vld [vmem:[#allocation2 + $0xd0] sm:$0xff]
      %v330 = vld [vmem:[#allocation2 + $0xd8] sm:$0xff]
      %v331 = vld [vmem:[#allocation2 + $0xe0] sm:$0xff]
      %v332 = vld [vmem:[#allocation2 + $0xe8] sm:$0xff]
      %v333 = vld [vmem:[#allocation2 + $0xf0] sm:$0xff]
      %v334 = vld [vmem:[#allocation2 + $0xf8] sm:$0xff]
      %v335 = vld [vmem:[%s236] sm:$0xf]
      %v336 = vld [vmem:[%s236 + $0x4] sm:$0xf]
      %v337 = vld [vmem:[%s236 + $0x8] sm:$0xf]
      %v338 = vld [vmem:[%s236 + $0xc] sm:$0xf]
      %v339 = vld [vmem:[%s236 + $0x10] sm:$0xf]
      %v340 = vld [vmem:[%s236 + $0x14] sm:$0xf]
      %v341 = vld [vmem:[%s236 + $0x18] sm:$0xf]
      %v342 = vld [vmem:[%s236 + $0x1c] sm:$0xf]
      %v343 = vld [vmem:[%s236 + $0x20] sm:$0xf]
      %v344 = vld [vmem:[%s236 + $0x24] sm:$0xf]
      %v345 = vld [vmem:[%s236 + $0x28] sm:$0xf]
      %v346 = vld [vmem:[%s236 + $0x2c] sm:$0xf]
      %v347 = vld [vmem:[%s236 + $0x30] sm:$0xf]
      %v348 = vld [vmem:[%s236 + $0x34] sm:$0xf]
      %v349 = vld [vmem:[%s236 + $0x38] sm:$0xf]
      %v350 = vld [vmem:[%s236 + $0x3c] sm:$0xf]
      %v351 = vld [vmem:[%s236 + $0x40] sm:$0xf]
      %v352 = vld [vmem:[%s236 + $0x44] sm:$0xf]
      %v353 = vld [vmem:[%s236 + $0x48] sm:$0xf]
      %v354 = vld [vmem:[%s236 + $0x4c] sm:$0xf]
      %v355 = vld [vmem:[%s236 + $0x50] sm:$0xf]
      %v356 = vld [vmem:[%s236 + $0x54] sm:$0xf]
      %v357 = vld [vmem:[%s236 + $0x58] sm:$0xf]
      %v358 = vld [vmem:[%s236 + $0x5c] sm:$0xf]
      %v359 = vld [vmem:[%s236 + $0x60] sm:$0xf]
      %v360 = vld [vmem:[%s236 + $0x64] sm:$0xf]
      %v361 = vld [vmem:[%s236 + $0x68] sm:$0xf]
      %v362 = vld [vmem:[%s236 + $0x6c] sm:$0xf]
      %v363 = vld [vmem:[%s236 + $0x70] sm:$0xf]
      %v364 = vld [vmem:[%s236 + $0x74] sm:$0xf]
      %v365 = vld [vmem:[%s236 + $0x78] sm:$0xf]
      %v366 = vld [vmem:[%s236 + $0x7c] sm:$0xf]
      %v367 = vld [vmem:[%s245] sm:$0xf]
      %v368 = vld [vmem:[%s245 + $0x4] sm:$0xf]
      %v369 = vld [vmem:[%s245 + $0x8] sm:$0xf]
      %v370 = vld [vmem:[%s245 + $0xc] sm:$0xf]
      %v371 = vld [vmem:[%s245 + $0x10] sm:$0xf]
      %v372 = vld [vmem:[%s245 + $0x14] sm:$0xf]
      %v373 = vld [vmem:[%s245 + $0x18] sm:$0xf]
      %v374 = vld [vmem:[%s245 + $0x1c] sm:$0xf]
      %v375 = vld [vmem:[%s245 + $0x20] sm:$0xf]
      %v376 = vld [vmem:[%s245 + $0x24] sm:$0xf]
      %v377 = vld [vmem:[%s245 + $0x28] sm:$0xf]
      %v378 = vld [vmem:[%s245 + $0x2c] sm:$0xf]
      %v379 = vld [vmem:[%s245 + $0x30] sm:$0xf]
      %v380 = vld [vmem:[%s245 + $0x34] sm:$0xf]
      %v381 = vld [vmem:[%s245 + $0x38] sm:$0xf]
      %v382 = vld [vmem:[%s245 + $0x3c] sm:$0xf]
      %v415 = vunpack.c.l.b16 %v335
      %v416 = vunpack.c.l.b16 %v336
      %v417 = vunpack.c.l.b16 %v337
      %v418 = vunpack.c.l.b16 %v338
      %v419 = vunpack.c.l.b16 %v339
      %v420 = vunpack.c.l.b16 %v340
      %v421 = vunpack.c.l.b16 %v341
      %v422 = vunpack.c.l.b16 %v342
      %v423 = vunpack.c.l.b16 %v343
      %v424 = vunpack.c.l.b16 %v344
      %v425 = vunpack.c.l.b16 %v345
      %v426 = vunpack.c.l.b16 %v346
      %v427 = vunpack.c.l.b16 %v347
      %v428 = vunpack.c.l.b16 %v348
      %v429 = vunpack.c.l.b16 %v349
      %v430 = vunpack.c.l.b16 %v350
      %v431 = vunpack.c.l.b16 %v351
      %v432 = vunpack.c.l.b16 %v352
      %v433 = vunpack.c.l.b16 %v353
      %v434 = vunpack.c.l.b16 %v354
      %v435 = vunpack.c.l.b16 %v355
      %v436 = vunpack.c.l.b16 %v356
      %v437 = vunpack.c.l.b16 %v357
      %v438 = vunpack.c.l.b16 %v358
      %v439 = vunpack.c.l.b16 %v359
      %v440 = vunpack.c.l.b16 %v360
      %v441 = vunpack.c.l.b16 %v361
      %v442 = vunpack.c.l.b16 %v362
      %v443 = vunpack.c.l.b16 %v363
      %v444 = vunpack.c.l.b16 %v364
      %v445 = vunpack.c.l.b16 %v365
      %v446 = vunpack.c.l.b16 %v366
      %v447 = vpack.c.b16 %v416, %v415
      %v448 = vpack.c.b16 %v418, %v417
      %v449 = vpack.c.b16 %v420, %v419
      %v450 = vpack.c.b16 %v422, %v421
      %v451 = vpack.c.b16 %v424, %v423
      %v452 = vpack.c.b16 %v426, %v425
      %v453 = vpack.c.b16 %v428, %v427
      %v454 = vpack.c.b16 %v430, %v429
      %v455 = vpack.c.b16 %v432, %v431
      %v456 = vpack.c.b16 %v434, %v433
      %v457 = vpack.c.b16 %v436, %v435
      %v458 = vpack.c.b16 %v438, %v437
      %v459 = vpack.c.b16 %v440, %v439
      %v460 = vpack.c.b16 %v442, %v441
      %v461 = vpack.c.b16 %v444, %v443
      %v462 = vpack.c.b16 %v446, %v445
      %v495 = vunpack.c.l.b16 %v367
      %v496 = vunpack.c.l.b16 %v368
      %v497 = vunpack.c.l.b16 %v369
      %v498 = vunpack.c.l.b16 %v370
      %v499 = vunpack.c.l.b16 %v371
      %v500 = vunpack.c.l.b16 %v372
      %v501 = vunpack.c.l.b16 %v373
      %v502 = vunpack.c.l.b16 %v374
      %v503 = vunpack.c.l.b16 %v375
      %v504 = vunpack.c.l.b16 %v376
      %v505 = vunpack.c.l.b16 %v377
      %v506 = vunpack.c.l.b16 %v378
      %v507 = vunpack.c.l.b16 %v379
      %v508 = vunpack.c.l.b16 %v380
      %v509 = vunpack.c.l.b16 %v381
      %v510 = vunpack.c.l.b16 %v382
      %v511 = vpack.c.b16 %v496, %v495
      %v512 = vpack.c.b16 %v498, %v497
      %v513 = vpack.c.b16 %v500, %v499
      %v514 = vpack.c.b16 %v502, %v501
      %v515 = vpack.c.b16 %v504, %v503
      %v516 = vpack.c.b16 %v506, %v505
      %v517 = vpack.c.b16 %v508, %v507
      %v518 = vpack.c.b16 %v510, %v509
      %527 = vmatprep.subr.bf16.mxu0 0
      %528 = vmatpush1.bf16.msra.mxu0 %v518
      %529 = vmatprep.subr.bf16.mxu0 0
      %530 = vmatpush1.bf16.msra.mxu0 %v517
      %531 = vmatprep.subr.bf16.mxu0 0
      %532 = vmatpush1.bf16.msra.mxu0 %v516
      %533 = vmatprep.subr.bf16.mxu0 0
      %534 = vmatpush1.bf16.msra.mxu0 %v515
      %535 = vmatprep.subr.bf16.mxu0 0
      %536 = vmatpush1.bf16.msra.mxu0 %v514
      %537 = vmatprep.subr.bf16.mxu0 0
      %538 = vmatpush1.bf16.msra.mxu0 %v513
      %539 = vmatprep.subr.bf16.mxu0 0
      %540 = vmatpush1.bf16.msra.mxu0 %v512
      %541 = vmatprep.subr.bf16.mxu0 0
      %542 = vmatpush1.bf16.msra.mxu0 %v511
      %543 = vmatprep.subr.bf16.mxu0 0
      %544 = vmatpush2.bf16.msra.mxu0 0
      %545 = vmatprep.subr.bf16.mxu0 0
      %546 = vmatpush2.bf16.msra.mxu0 0
      %547 = vmatprep.subr.bf16.mxu0 0
      %548 = vmatpush2.bf16.msra.mxu0 0
      %549 = vmatprep.subr.bf16.mxu0 0
      %550 = vmatpush2.bf16.msra.mxu0 0
      %551 = vmatprep.subr.bf16.mxu0 0
      %552 = vmatpush2.bf16.msra.mxu0 0
      %553 = vmatprep.subr.bf16.mxu0 0
      %554 = vmatpush2.bf16.msra.mxu0 0
      %555 = vmatprep.subr.bf16.mxu0 0
      %556 = vmatpush2.bf16.msra.mxu0 0
      %557 = vmatprep.subr.bf16.mxu0 0
      %558 = vmatpush2.bf16.msra.mxu0 0
      %559 = vmatprep.mubr.bf16.mxu0 0
      %560 = vmatmul.mubr.bf16.gmra.mxu0 %v447
      %v561 = vpop.f32.mrf.mxu0
      %v562 = vadd.f32 0.0, %v561
      %v563 = vpop.f32.mrf.mxu0
      %v564 = vpop.f32.mrf.mxu0
      %v565 = vadd.f32 0.0, %v564
      %v566 = vpop.f32.mrf.mxu0
      %567 = vmatprep.mubr.bf16.mxu0 0
      %568 = vmatmul.mubr.bf16.gmra.mxu0 %v448
      %v569 = vpop.f32.mrf.mxu0
      %v570 = vadd.f32 0.0, %v569
      %v571 = vpop.f32.mrf.mxu0
      %v572 = vpop.f32.mrf.mxu0
      %v573 = vadd.f32 0.0, %v572
      %v574 = vpop.f32.mrf.mxu0
      %575 = vmatprep.mubr.bf16.mxu0 0
      %576 = vmatmul.mubr.bf16.gmra.mxu0 %v449
      %v577 = vpop.f32.mrf.mxu0
      %v578 = vadd.f32 0.0, %v577
      %v579 = vpop.f32.mrf.mxu0
      %v580 = vpop.f32.mrf.mxu0
      %v581 = vadd.f32 0.0, %v580
      %v582 = vpop.f32.mrf.mxu0
      %583 = vmatprep.mubr.bf16.mxu0 0
      %584 = vmatmul.mubr.bf16.gmra.mxu0 %v450
      %v585 = vpop.f32.mrf.mxu0
      %v586 = vadd.f32 0.0, %v585
      %v587 = vpop.f32.mrf.mxu0
      %v588 = vpop.f32.mrf.mxu0
      %v589 = vadd.f32 0.0, %v588
      %v590 = vpop.f32.mrf.mxu0
      %591 = vmatprep.mubr.bf16.mxu0 0
      %592 = vmatmul.mubr.bf16.gmra.mxu0 %v451
      %v593 = vpop.f32.mrf.mxu0
      %v594 = vadd.f32 0.0, %v593
      %v595 = vpop.f32.mrf.mxu0
      %v596 = vpop.f32.mrf.mxu0
      %v597 = vadd.f32 0.0, %v596
      %v598 = vpop.f32.mrf.mxu0
      %599 = vmatprep.mubr.bf16.mxu0 0
      %600 = vmatmul.mubr.bf16.gmra.mxu0 %v452
      %v601 = vpop.f32.mrf.mxu0
      %v602 = vadd.f32 0.0, %v601
      %v603 = vpop.f32.mrf.mxu0
      %v604 = vpop.f32.mrf.mxu0
      %v605 = vadd.f32 0.0, %v604
      %v606 = vpop.f32.mrf.mxu0
      %607 = vmatprep.mubr.bf16.mxu0 0
      %608 = vmatmul.mubr.bf16.gmra.mxu0 %v453
      %v609 = vpop.f32.mrf.mxu0
      %v610 = vadd.f32 0.0, %v609
      %v611 = vpop.f32.mrf.mxu0
      %v612 = vpop.f32.mrf.mxu0
      %v613 = vadd.f32 0.0, %v612
      %v614 = vpop.f32.mrf.mxu0
      %615 = vmatprep.mubr.bf16.mxu0 0
      %616 = vmatmul.mubr.bf16.gmra.mxu0 %v454
      %v617 = vpop.f32.mrf.mxu0
      %v618 = vadd.f32 0.0, %v617
      %v619 = vpop.f32.mrf.mxu0
      %v620 = vpop.f32.mrf.mxu0
      %v621 = vadd.f32 0.0, %v620
      %v622 = vpop.f32.mrf.mxu0
      %623 = vmatprep.mubr.bf16.mxu0 0
      %624 = vmatmul.mubr.bf16.gmra.mxu0 %v455
      %v625 = vpop.f32.mrf.mxu0
      %v626 = vadd.f32 0.0, %v625
      %v627 = vpop.f32.mrf.mxu0
      %v628 = vpop.f32.mrf.mxu0
      %v629 = vadd.f32 0.0, %v628
      %v630 = vpop.f32.mrf.mxu0
      %631 = vmatprep.mubr.bf16.mxu0 0
      %632 = vmatmul.mubr.bf16.gmra.mxu0 %v456
      %v633 = vpop.f32.mrf.mxu0
      %v634 = vadd.f32 0.0, %v633
      %v635 = vpop.f32.mrf.mxu0
      %v636 = vpop.f32.mrf.mxu0
      %v637 = vadd.f32 0.0, %v636
      %v638 = vpop.f32.mrf.mxu0
      %639 = vmatprep.mubr.bf16.mxu0 0
      %640 = vmatmul.mubr.bf16.gmra.mxu0 %v457
      %v641 = vpop.f32.mrf.mxu0
      %v642 = vadd.f32 0.0, %v641
      %v643 = vpop.f32.mrf.mxu0
      %v644 = vpop.f32.mrf.mxu0
      %v645 = vadd.f32 0.0, %v644
      %v646 = vpop.f32.mrf.mxu0
      %647 = vmatprep.mubr.bf16.mxu0 0
      %648 = vmatmul.mubr.bf16.gmra.mxu0 %v458
      %v649 = vpop.f32.mrf.mxu0
      %v650 = vadd.f32 0.0, %v649
      %v651 = vpop.f32.mrf.mxu0
      %v652 = vpop.f32.mrf.mxu0
      %v653 = vadd.f32 0.0, %v652
      %v654 = vpop.f32.mrf.mxu0
      %655 = vmatprep.mubr.bf16.mxu0 0
      %656 = vmatmul.mubr.bf16.gmra.mxu0 %v459
      %v657 = vpop.f32.mrf.mxu0
      %v658 = vadd.f32 0.0, %v657
      %v659 = vpop.f32.mrf.mxu0
      %v660 = vpop.f32.mrf.mxu0
      %v661 = vadd.f32 0.0, %v660
      %v662 = vpop.f32.mrf.mxu0
      %663 = vmatprep.mubr.bf16.mxu0 0
      %664 = vmatmul.mubr.bf16.gmra.mxu0 %v460
      %v665 = vpop.f32.mrf.mxu0
      %v666 = vadd.f32 0.0, %v665
      %v667 = vpop.f32.mrf.mxu0
      %v668 = vpop.f32.mrf.mxu0
      %v669 = vadd.f32 0.0, %v668
      %v670 = vpop.f32.mrf.mxu0
      %671 = vmatprep.mubr.bf16.mxu0 0
      %672 = vmatmul.mubr.bf16.gmra.mxu0 %v461
      %v673 = vpop.f32.mrf.mxu0
      %v674 = vadd.f32 0.0, %v673
      %v675 = vpop.f32.mrf.mxu0
      %v676 = vpop.f32.mrf.mxu0
      %v677 = vadd.f32 0.0, %v676
      %v678 = vpop.f32.mrf.mxu0
      %679 = vmatprep.mubr.bf16.mxu0 0
      %680 = vmatmul.mubr.bf16.gmra.mxu0 %v462
      %v681 = vpop.f32.mrf.mxu0
      %v682 = vadd.f32 0.0, %v681
      %v683 = vpop.f32.mrf.mxu0
      %v684 = vpop.f32.mrf.mxu0
      %v685 = vadd.f32 0.0, %v684
      %v686 = vpop.f32.mrf.mxu0
      %687 = vdwg.mxu0
      %v688 = vadd.f32 %v303, %v562
      %v689 = vadd.f32 %v304, %v565
      %v690 = vadd.f32 %v305, %v570
      %v691 = vadd.f32 %v306, %v573
      %v692 = vadd.f32 %v307, %v578
      %v693 = vadd.f32 %v308, %v581
      %v694 = vadd.f32 %v309, %v586
      %v695 = vadd.f32 %v310, %v589
      %v696 = vadd.f32 %v311, %v594
      %v697 = vadd.f32 %v312, %v597
      %v698 = vadd.f32 %v313, %v602
      %v699 = vadd.f32 %v314, %v605
      %v700 = vadd.f32 %v315, %v610
      %v701 = vadd.f32 %v316, %v613
      %v702 = vadd.f32 %v317, %v618
      %v703 = vadd.f32 %v318, %v621
      %v704 = vadd.f32 %v319, %v626
      %v705 = vadd.f32 %v320, %v629
      %v706 = vadd.f32 %v321, %v634
      %v707 = vadd.f32 %v322, %v637
      %v708 = vadd.f32 %v323, %v642
      %v709 = vadd.f32 %v324, %v645
      %v710 = vadd.f32 %v325, %v650
      %v711 = vadd.f32 %v326, %v653
      %v712 = vadd.f32 %v327, %v658
      %v713 = vadd.f32 %v328, %v661
      %v714 = vadd.f32 %v329, %v666
      %v715 = vadd.f32 %v330, %v669
      %v716 = vadd.f32 %v331, %v674
      %v717 = vadd.f32 %v332, %v677
      %v718 = vadd.f32 %v333, %v682
      %v719 = vadd.f32 %v334, %v685
      %720 = vst [vmem:[#allocation2] sm:$0xff] %v688
      %721 = vst [vmem:[#allocation2 + $0x8] sm:$0xff] %v689
      %722 = vst [vmem:[#allocation2 + $0x10] sm:$0xff] %v690
      %723 = vst [vmem:[#allocation2 + $0x18] sm:$0xff] %v691
      %724 = vst [vmem:[#allocation2 + $0x20] sm:$0xff] %v692
      %725 = vst [vmem:[#allocation2 + $0x28] sm:$0xff] %v693
      %726 = vst [vmem:[#allocation2 + $0x30] sm:$0xff] %v694
      %727 = vst [vmem:[#allocation2 + $0x38] sm:$0xff] %v695
      %728 = vst [vmem:[#allocation2 + $0x40] sm:$0xff] %v696
      %729 = vst [vmem:[#allocation2 + $0x48] sm:$0xff] %v697
      %730 = vst [vmem:[#allocation2 + $0x50] sm:$0xff] %v698
      %731 = vst [vmem:[#allocation2 + $0x58] sm:$0xff] %v699
      %732 = vst [vmem:[#allocation2 + $0x60] sm:$0xff] %v700
      %733 = vst [vmem:[#allocation2 + $0x68] sm:$0xff] %v701
      %734 = vst [vmem:[#allocation2 + $0x70] sm:$0xff] %v702
      %735 = vst [vmem:[#allocation2 + $0x78] sm:$0xff] %v703
      %736 = vst [vmem:[#allocation2 + $0x80] sm:$0xff] %v704
      %737 = vst [vmem:[#allocation2 + $0x88] sm:$0xff] %v705
      %738 = vst [vmem:[#allocation2 + $0x90] sm:$0xff] %v706
      %739 = vst [vmem:[#allocation2 + $0x98] sm:$0xff] %v707
      %740 = vst [vmem:[#allocation2 + $0xa0] sm:$0xff] %v708
      %741 = vst [vmem:[#allocation2 + $0xa8] sm:$0xff] %v709
      %742 = vst [vmem:[#allocation2 + $0xb0] sm:$0xff] %v710
      %743 = vst [vmem:[#allocation2 + $0xb8] sm:$0xff] %v711
      %744 = vst [vmem:[#allocation2 + $0xc0] sm:$0xff] %v712
      %745 = vst [vmem:[#allocation2 + $0xc8] sm:$0xff] %v713
      %746 = vst [vmem:[#allocation2 + $0xd0] sm:$0xff] %v714
      %747 = vst [vmem:[#allocation2 + $0xd8] sm:$0xff] %v715
      %748 = vst [vmem:[#allocation2 + $0xe0] sm:$0xff] %v716
      %749 = vst [vmem:[#allocation2 + $0xe8] sm:$0xff] %v717
      %750 = vst [vmem:[#allocation2 + $0xf0] sm:$0xff] %v718
      %751 = vst [vmem:[#allocation2 + $0xf8] sm:$0xff] %v719
      // Predicated region
      $region37: #{forward.7} parent=31 // pred_check
        %p752 = pneg %p260
      $region38: #{forward.7} parent=31 // pred_check_branch
        %754 = sbr.rel (%p752) target = $region40
      $region39: #{forward.7} parent=31 // pred_region
        %v755 = vld [vmem:[#allocation2] sm:$0xff]
        %v756 = vld [vmem:[#allocation2 + $0x8] sm:$0xff]
        %v757 = vld [vmem:[#allocation2 + $0x10] sm:$0xff]
        %v758 = vld [vmem:[#allocation2 + $0x18] sm:$0xff]
        %v759 = vld [vmem:[#allocation2 + $0x20] sm:$0xff]
        %v760 = vld [vmem:[#allocation2 + $0x28] sm:$0xff]
        %v761 = vld [vmem:[#allocation2 + $0x30] sm:$0xff]
        %v762 = vld [vmem:[#allocation2 + $0x38] sm:$0xff]
        %v763 = vld [vmem:[#allocation2 + $0x40] sm:$0xff]
        %v764 = vld [vmem:[#allocation2 + $0x48] sm:$0xff]
        %v765 = vld [vmem:[#allocation2 + $0x50] sm:$0xff]
        %v766 = vld [vmem:[#allocation2 + $0x58] sm:$0xff]
        %v767 = vld [vmem:[#allocation2 + $0x60] sm:$0xff]
        %v768 = vld [vmem:[#allocation2 + $0x68] sm:$0xff]
        %v769 = vld [vmem:[#allocation2 + $0x70] sm:$0xff]
        %v770 = vld [vmem:[#allocation2 + $0x78] sm:$0xff]
        %v771 = vld [vmem:[#allocation2 + $0x80] sm:$0xff]
        %v772 = vld [vmem:[#allocation2 + $0x88] sm:$0xff]
        %v773 = vld [vmem:[#allocation2 + $0x90] sm:$0xff]
        %v774 = vld [vmem:[#allocation2 + $0x98] sm:$0xff]
        %v775 = vld [vmem:[#allocation2 + $0xa0] sm:$0xff]
        %v776 = vld [vmem:[#allocation2 + $0xa8] sm:$0xff]
        %v777 = vld [vmem:[#allocation2 + $0xb0] sm:$0xff]
        %v778 = vld [vmem:[#allocation2 + $0xb8] sm:$0xff]
        %v779 = vld [vmem:[#allocation2 + $0xc0] sm:$0xff]
        %v780 = vld [vmem:[#allocation2 + $0xc8] sm:$0xff]
        %v781 = vld [vmem:[#allocation2 + $0xd0] sm:$0xff]
        %v782 = vld [vmem:[#allocation2 + $0xd8] sm:$0xff]
        %v783 = vld [vmem:[#allocation2 + $0xe0] sm:$0xff]
        %v784 = vld [vmem:[#allocation2 + $0xe8] sm:$0xff]
        %v785 = vld [vmem:[#allocation2 + $0xf0] sm:$0xff]
        %v786 = vld [vmem:[#allocation2 + $0xf8] sm:$0xff]
        %vm787 = vcmp.gt.f32.partialorder %v755, 0.0
        %vm788 = vcmp.gt.f32.partialorder %v756, 0.0
        %vm789 = vcmp.gt.f32.partialorder %v757, 0.0
        %vm790 = vcmp.gt.f32.partialorder %v758, 0.0
        %vm791 = vcmp.gt.f32.partialorder %v759, 0.0
        %vm792 = vcmp.gt.f32.partialorder %v760, 0.0
        %vm793 = vcmp.gt.f32.partialorder %v761, 0.0
        %vm794 = vcmp.gt.f32.partialorder %v762, 0.0
        %vm795 = vcmp.gt.f32.partialorder %v763, 0.0
        %vm796 = vcmp.gt.f32.partialorder %v764, 0.0
        %vm797 = vcmp.gt.f32.partialorder %v765, 0.0
        %vm798 = vcmp.gt.f32.partialorder %v766, 0.0
        %vm799 = vcmp.gt.f32.partialorder %v767, 0.0
        %vm800 = vcmp.gt.f32.partialorder %v768, 0.0
        %vm801 = vcmp.gt.f32.partialorder %v769, 0.0
        %vm802 = vcmp.gt.f32.partialorder %v770, 0.0
        %vm803 = vcmp.gt.f32.partialorder %v771, 0.0
        %vm804 = vcmp.gt.f32.partialorder %v772, 0.0
        %vm805 = vcmp.gt.f32.partialorder %v773, 0.0
        %vm806 = vcmp.gt.f32.partialorder %v774, 0.0
        %vm807 = vcmp.gt.f32.partialorder %v775, 0.0
        %vm808 = vcmp.gt.f32.partialorder %v776, 0.0
        %vm809 = vcmp.gt.f32.partialorder %v777, 0.0
        %vm810 = vcmp.gt.f32.partialorder %v778, 0.0
        %vm811 = vcmp.gt.f32.partialorder %v779, 0.0
        %vm812 = vcmp.gt.f32.partialorder %v780, 0.0
        %vm813 = vcmp.gt.f32.partialorder %v781, 0.0
        %vm814 = vcmp.gt.f32.partialorder %v782, 0.0
        %vm815 = vcmp.gt.f32.partialorder %v783, 0.0
        %vm816 = vcmp.gt.f32.partialorder %v784, 0.0
        %vm817 = vcmp.gt.f32.partialorder %v785, 0.0
        %vm818 = vcmp.gt.f32.partialorder %v786, 0.0
        %v819 = vmin.f32 %v755, 0.0
        %v820 = vmin.f32 %v756, 0.0
        %v821 = vmin.f32 %v757, 0.0
        %v822 = vmin.f32 %v758, 0.0
        %v823 = vmin.f32 %v759, 0.0
        %v824 = vmin.f32 %v760, 0.0
        %v825 = vmin.f32 %v761, 0.0
        %v826 = vmin.f32 %v762, 0.0
        %v827 = vmin.f32 %v763, 0.0
        %v828 = vmin.f32 %v764, 0.0
        %v829 = vmin.f32 %v765, 0.0
        %v830 = vmin.f32 %v766, 0.0
        %v831 = vmin.f32 %v767, 0.0
        %v832 = vmin.f32 %v768, 0.0
        %v833 = vmin.f32 %v769, 0.0
        %v834 = vmin.f32 %v770, 0.0
        %v835 = vmin.f32 %v771, 0.0
        %v836 = vmin.f32 %v772, 0.0
        %v837 = vmin.f32 %v773, 0.0
        %v838 = vmin.f32 %v774, 0.0
        %v839 = vmin.f32 %v775, 0.0
        %v840 = vmin.f32 %v776, 0.0
        %v841 = vmin.f32 %v777, 0.0
        %v842 = vmin.f32 %v778, 0.0
        %v843 = vmin.f32 %v779, 0.0
        %v844 = vmin.f32 %v780, 0.0
        %v845 = vmin.f32 %v781, 0.0
        %v846 = vmin.f32 %v782, 0.0
        %v847 = vmin.f32 %v783, 0.0
        %v848 = vmin.f32 %v784, 0.0
        %v849 = vmin.f32 %v785, 0.0
        %v850 = vmin.f32 %v786, 0.0
        %v851 = vmul.f32 %v819, 1.442695
        %v852 = vpow.pop %v851
        %v853 = vmul.f32 %v820, 1.442695
        %v854 = vpow.pop %v853
        %v855 = vmul.f32 %v821, 1.442695
        %v856 = vpow.pop %v855
        %v857 = vmul.f32 %v822, 1.442695
        %v858 = vpow.pop %v857
        %v859 = vmul.f32 %v823, 1.442695
        %v860 = vpow.pop %v859
        %v861 = vmul.f32 %v824, 1.442695
        %v862 = vpow.pop %v861
        %v863 = vmul.f32 %v825, 1.442695
        %v864 = vpow.pop %v863
        %v865 = vmul.f32 %v826, 1.442695
        %v866 = vpow.pop %v865
        %v867 = vmul.f32 %v827, 1.442695
        %v868 = vpow.pop %v867
        %v869 = vmul.f32 %v828, 1.442695
        %v870 = vpow.pop %v869
        %v871 = vmul.f32 %v829, 1.442695
        %v872 = vpow.pop %v871
        %v873 = vmul.f32 %v830, 1.442695
        %v874 = vpow.pop %v873
        %v875 = vmul.f32 %v831, 1.442695
        %v876 = vpow.pop %v875
        %v877 = vmul.f32 %v832, 1.442695
        %v878 = vpow.pop %v877
        %v879 = vmul.f32 %v833, 1.442695
        %v880 = vpow.pop %v879
        %v881 = vmul.f32 %v834, 1.442695
        %v882 = vpow.pop %v881
        %v883 = vmul.f32 %v835, 1.442695
        %v884 = vpow.pop %v883
        %v885 = vmul.f32 %v836, 1.442695
        %v886 = vpow.pop %v885
        %v887 = vmul.f32 %v837, 1.442695
        %v888 = vpow.pop %v887
        %v889 = vmul.f32 %v838, 1.442695
        %v890 = vpow.pop %v889
        %v891 = vmul.f32 %v839, 1.442695
        %v892 = vpow.pop %v891
        %v893 = vmul.f32 %v840, 1.442695
        %v894 = vpow.pop %v893
        %v895 = vmul.f32 %v841, 1.442695
        %v896 = vpow.pop %v895
        %v897 = vmul.f32 %v842, 1.442695
        %v898 = vpow.pop %v897
        %v899 = vmul.f32 %v843, 1.442695
        %v900 = vpow.pop %v899
        %v901 = vmul.f32 %v844, 1.442695
        %v902 = vpow.pop %v901
        %v903 = vmul.f32 %v845, 1.442695
        %v904 = vpow.pop %v903
        %v905 = vmul.f32 %v846, 1.442695
        %v906 = vpow.pop %v905
        %v907 = vmul.f32 %v847, 1.442695
        %v908 = vpow.pop %v907
        %v909 = vmul.f32 %v848, 1.442695
        %v910 = vpow.pop %v909
        %v911 = vmul.f32 %v849, 1.442695
        %v912 = vpow.pop %v911
        %v913 = vmul.f32 %v850, 1.442695
        %v914 = vpow.pop %v913
        %v915 = vsub.f32 %v852, 1.0
        %v916 = vsub.f32 %v854, 1.0
        %v917 = vsub.f32 %v856, 1.0
        %v918 = vsub.f32 %v858, 1.0
        %v919 = vsub.f32 %v860, 1.0
        %v920 = vsub.f32 %v862, 1.0
        %v921 = vsub.f32 %v864, 1.0
        %v922 = vsub.f32 %v866, 1.0
        %v923 = vsub.f32 %v868, 1.0
        %v924 = vsub.f32 %v870, 1.0
        %v925 = vsub.f32 %v872, 1.0
        %v926 = vsub.f32 %v874, 1.0
        %v927 = vsub.f32 %v876, 1.0
        %v928 = vsub.f32 %v878, 1.0
        %v929 = vsub.f32 %v880, 1.0
        %v930 = vsub.f32 %v882, 1.0
        %v931 = vsub.f32 %v884, 1.0
        %v932 = vsub.f32 %v886, 1.0
        %v933 = vsub.f32 %v888, 1.0
        %v934 = vsub.f32 %v890, 1.0
        %v935 = vsub.f32 %v892, 1.0
        %v936 = vsub.f32 %v894, 1.0
        %v937 = vsub.f32 %v896, 1.0
        %v938 = vsub.f32 %v898, 1.0
        %v939 = vsub.f32 %v900, 1.0
        %v940 = vsub.f32 %v902, 1.0
        %v941 = vsub.f32 %v904, 1.0
        %v942 = vsub.f32 %v906, 1.0
        %v943 = vsub.f32 %v908, 1.0
        %v944 = vsub.f32 %v910, 1.0
        %v945 = vsub.f32 %v912, 1.0
        %v946 = vsub.f32 %v914, 1.0
        %v947 = vsel %vm787, %v755, %v915
        %v948 = vsel %vm788, %v756, %v916
        %v949 = vsel %vm789, %v757, %v917
        %v950 = vsel %vm790, %v758, %v918
        %v951 = vsel %vm791, %v759, %v919
        %v952 = vsel %vm792, %v760, %v920
        %v953 = vsel %vm793, %v761, %v921
        %v954 = vsel %vm794, %v762, %v922
        %v955 = vsel %vm795, %v763, %v923
        %v956 = vsel %vm796, %v764, %v924
        %v957 = vsel %vm797, %v765, %v925
        %v958 = vsel %vm798, %v766, %v926
        %v959 = vsel %vm799, %v767, %v927
        %v960 = vsel %vm800, %v768, %v928
        %v961 = vsel %vm801, %v769, %v929
        %v962 = vsel %vm802, %v770, %v930
        %v963 = vsel %vm803, %v771, %v931
        %v964 = vsel %vm804, %v772, %v932
        %v965 = vsel %vm805, %v773, %v933
        %v966 = vsel %vm806, %v774, %v934
        %v967 = vsel %vm807, %v775, %v935
        %v968 = vsel %vm808, %v776, %v936
        %v969 = vsel %vm809, %v777, %v937
        %v970 = vsel %vm810, %v778, %v938
        %v971 = vsel %vm811, %v779, %v939
        %v972 = vsel %vm812, %v780, %v940
        %v973 = vsel %vm813, %v781, %v941
        %v974 = vsel %vm814, %v782, %v942
        %v975 = vsel %vm815, %v783, %v943
        %v976 = vsel %vm816, %v784, %v944
        %v977 = vsel %vm817, %v785, %v945
        %v978 = vsel %vm818, %v786, %v946
        %v979 = vpack.c.bf16 %v948, %v947
        %v980 = vpack.c.bf16 %v950, %v949
        %v981 = vpack.c.bf16 %v952, %v951
        %v982 = vpack.c.bf16 %v954, %v953
        %v983 = vpack.c.bf16 %v956, %v955
        %v984 = vpack.c.bf16 %v958, %v957
        %v985 = vpack.c.bf16 %v960, %v959
        %v986 = vpack.c.bf16 %v962, %v961
        %v987 = vpack.c.bf16 %v964, %v963
        %v988 = vpack.c.bf16 %v966, %v965
        %v989 = vpack.c.bf16 %v968, %v967
        %v990 = vpack.c.bf16 %v970, %v969
        %v991 = vpack.c.bf16 %v972, %v971
        %v992 = vpack.c.bf16 %v974, %v973
        %v993 = vpack.c.bf16 %v976, %v975
        %v994 = vpack.c.bf16 %v978, %v977
        %v1011 = vunpack.c.l.b16 %v979
        %v1012 = vunpack.c.h.b16 %v979
        %v1013 = vunpack.c.l.b16 %v980
        %v1014 = vunpack.c.h.b16 %v980
        %v1015 = vunpack.c.l.b16 %v981
        %v1016 = vunpack.c.h.b16 %v981
        %v1017 = vunpack.c.l.b16 %v982
        %v1018 = vunpack.c.h.b16 %v982
        %v1019 = vunpack.c.l.b16 %v983
        %v1020 = vunpack.c.h.b16 %v983
        %v1021 = vunpack.c.l.b16 %v984
        %v1022 = vunpack.c.h.b16 %v984
        %v1023 = vunpack.c.l.b16 %v985
        %v1024 = vunpack.c.h.b16 %v985
        %v1025 = vunpack.c.l.b16 %v986
        %v1026 = vunpack.c.h.b16 %v986
        %v1027 = vunpack.c.l.b16 %v987
        %v1028 = vunpack.c.h.b16 %v987
        %v1029 = vunpack.c.l.b16 %v988
        %v1030 = vunpack.c.h.b16 %v988
        %v1031 = vunpack.c.l.b16 %v989
        %v1032 = vunpack.c.h.b16 %v989
        %v1033 = vunpack.c.l.b16 %v990
        %v1034 = vunpack.c.h.b16 %v990
        %v1035 = vunpack.c.l.b16 %v991
        %v1036 = vunpack.c.h.b16 %v991
        %v1037 = vunpack.c.l.b16 %v992
        %v1038 = vunpack.c.h.b16 %v992
        %v1039 = vunpack.c.l.b16 %v993
        %v1040 = vunpack.c.h.b16 %v993
        %v1041 = vunpack.c.l.b16 %v994
        %v1042 = vunpack.c.h.b16 %v994
        %v1043 = vpack.c.b16 %v1011, %v1011
        %v1044 = vpack.c.b16 %v1012, %v1012
        %v1045 = vpack.c.b16 %v1013, %v1013
        %v1046 = vpack.c.b16 %v1014, %v1014
        %v1047 = vpack.c.b16 %v1015, %v1015
        %v1048 = vpack.c.b16 %v1016, %v1016
        %v1049 = vpack.c.b16 %v1017, %v1017
        %v1050 = vpack.c.b16 %v1018, %v1018
        %v1051 = vpack.c.b16 %v1019, %v1019
        %v1052 = vpack.c.b16 %v1020, %v1020
        %v1053 = vpack.c.b16 %v1021, %v1021
        %v1054 = vpack.c.b16 %v1022, %v1022
        %v1055 = vpack.c.b16 %v1023, %v1023
        %v1056 = vpack.c.b16 %v1024, %v1024
        %v1057 = vpack.c.b16 %v1025, %v1025
        %v1058 = vpack.c.b16 %v1026, %v1026
        %v1059 = vpack.c.b16 %v1027, %v1027
        %v1060 = vpack.c.b16 %v1028, %v1028
        %v1061 = vpack.c.b16 %v1029, %v1029
        %v1062 = vpack.c.b16 %v1030, %v1030
        %v1063 = vpack.c.b16 %v1031, %v1031
        %v1064 = vpack.c.b16 %v1032, %v1032
        %v1065 = vpack.c.b16 %v1033, %v1033
        %v1066 = vpack.c.b16 %v1034, %v1034
        %v1067 = vpack.c.b16 %v1035, %v1035
        %v1068 = vpack.c.b16 %v1036, %v1036
        %v1069 = vpack.c.b16 %v1037, %v1037
        %v1070 = vpack.c.b16 %v1038, %v1038
        %v1071 = vpack.c.b16 %v1039, %v1039
        %v1072 = vpack.c.b16 %v1040, %v1040
        %v1073 = vpack.c.b16 %v1041, %v1041
        %v1074 = vpack.c.b16 %v1042, %v1042
        %1107 = vst [vmem:[%s257] sm:$0xf] %v1043
        %1108 = vst [vmem:[%s257 + $0x4] sm:$0xf] %v1044
        %1109 = vst [vmem:[%s257 + $0x8] sm:$0xf] %v1045
        %1110 = vst [vmem:[%s257 + $0xc] sm:$0xf] %v1046
        %1111 = vst [vmem:[%s257 + $0x10] sm:$0xf] %v1047
        %1112 = vst [vmem:[%s257 + $0x14] sm:$0xf] %v1048
        %1113 = vst [vmem:[%s257 + $0x18] sm:$0xf] %v1049
        %1114 = vst [vmem:[%s257 + $0x1c] sm:$0xf] %v1050
        %1115 = vst [vmem:[%s257 + $0x20] sm:$0xf] %v1051
        %1116 = vst [vmem:[%s257 + $0x24] sm:$0xf] %v1052
        %1117 = vst [vmem:[%s257 + $0x28] sm:$0xf] %v1053
        %1118 = vst [vmem:[%s257 + $0x2c] sm:$0xf] %v1054
        %1119 = vst [vmem:[%s257 + $0x30] sm:$0xf] %v1055
        %1120 = vst [vmem:[%s257 + $0x34] sm:$0xf] %v1056
        %1121 = vst [vmem:[%s257 + $0x38] sm:$0xf] %v1057
        %1122 = vst [vmem:[%s257 + $0x3c] sm:$0xf] %v1058
        %1123 = vst [vmem:[%s257 + $0x40] sm:$0xf] %v1059
        %1124 = vst [vmem:[%s257 + $0x44] sm:$0xf] %v1060
        %1125 = vst [vmem:[%s257 + $0x48] sm:$0xf] %v1061
        %1126 = vst [vmem:[%s257 + $0x4c] sm:$0xf] %v1062
        %1127 = vst [vmem:[%s257 + $0x50] sm:$0xf] %v1063
        %1128 = vst [vmem:[%s257 + $0x54] sm:$0xf] %v1064
        %1129 = vst [vmem:[%s257 + $0x58] sm:$0xf] %v1065
        %1130 = vst [vmem:[%s257 + $0x5c] sm:$0xf] %v1066
        %1131 = vst [vmem:[%s257 + $0x60] sm:$0xf] %v1067
        %1132 = vst [vmem:[%s257 + $0x64] sm:$0xf] %v1068
        %1133 = vst [vmem:[%s257 + $0x68] sm:$0xf] %v1069
        %1134 = vst [vmem:[%s257 + $0x6c] sm:$0xf] %v1070
        %1135 = vst [vmem:[%s257 + $0x70] sm:$0xf] %v1071
        %1136 = vst [vmem:[%s257 + $0x74] sm:$0xf] %v1072
        %1137 = vst [vmem:[%s257 + $0x78] sm:$0xf] %v1073
        %1138 = vst [vmem:[%s257 + $0x7c] sm:$0xf] %v1074
      $region40: #{forward.7} parent=31 // pred_fallthru
        _
      %s1139 = smul.u32 32, %s19
      %p1140 = scmp.lt.s32.totalorder %s1139, 63
      %s1141 = scalar_select %p1140, %s1139, 63
      %p1142 = scmp.lt.s32.totalorder %s20, 0
      %s1143 = scalar_select %p1142, %s20, 0
      %s1144 = sadd.s32 %s1143, %s1141
      %s1145 = smul.addr %s1144, 4
      %s1146 = scalar_lea.vmem %s3, %s1145
      // Predicated region
      $region41: #{forward.7} parent=31 // pred_check
        %p1147 = pneg %p135
      $region42: #{forward.7} parent=31 // pred_check_branch
        %1149 = sbr.rel (%p1147) target = $region44
      $region43: #{forward.7} parent=31 // pred_region
        %s1150 = smul.u32 32, %s19
      $region44: #{forward.7} parent=31 // pred_fallthru
        _
    $region32: #{forward.7} parent=5 // pred_fallthru
      _
    %p1151 = scmp.le.s32.totalorder 2, %s9
    // Predicated region
    $region45: #{forward.7} parent=5 // pred_check
      %p1152 = pneg %p1151
    $region46: #{forward.7} parent=5 // pred_check_branch
      %1154 = sbr.rel (%p1152) target = $region48
    $region47: #{forward.7} parent=5 // pred_region
      %s1155 = ssub.s32 %s9, 2
      // Predicated region
      $region49: #{forward.7} parent=47 // pred_check
        %p1156 = pneg %p141
      $region50: #{forward.7} parent=47 // pred_check_branch
        %1158 = sbr.rel (%p1156) target = $region52
      $region51: #{forward.7} parent=47 // pred_region
        %s1159 = smul.u32 32, %s22
        %p1160 = scmp.lt.s32.totalorder %s1159, 63
        %s1161 = scalar_select %p1160, %s1159, 63
        %p1162 = scmp.lt.s32.totalorder %s23, 0
        %s1163 = scalar_select %p1162, %s23, 0
        %s1164 = sadd.s32 %s1163, %s1161
        %s1165 = smul.addr %s1164, 4
        %s1166 = scalar_lea.vmem %s3, %s1165
      $region52: #{forward.7} parent=47 // pred_fallthru
        _
    $region48: #{forward.7} parent=5 // pred_fallthru
      _
  $region6: #{forward.7} parent=0 // loop_footer
    %s13 = sadd.s32 1, %s9
  $region7: #{forward.7} parent=0 // loop_footer_branch
    %8 = sbr.rel target = $region3
  $region8: #{forward.7} parent=0 // loop_exit
    _

// kernel: forward.8
$region0: #{forward.8}
  #allocation0 [shape = 'u32[]', space=smem, size = 0x4, offset = 0x4, fixed_abs, tag = 'smem constant byte address 0x4 - core index']
  #allocation1 [shape = 'u32[144,128]{1,0:T(1,128)}', space=vmem, size = 0x12000, scoped, tag = 'internal scratch']
  #allocation2 [shape = 'f32[256,128]{1,0:T(8,128)}', space=vmem, size = 0x20000, scoped, tag = 'scratch operand']
  %s0 = inlined_call_operand.vmem [shape: bf16[512,256], index: 0, kind: input, shape index: {}]
  %s1 = inlined_call_operand.vmem [shape: bf16[256,128], index: 1, kind: input, shape index: {}]
  %s2 = inlined_call_operand.vmem [shape: f32[1,128], index: 2, kind: input, shape index: {}]
  %s3 = inlined_call_operand.vmem [shape: bf16[512,128], index: 3, kind: output, shape index: {}]
  %s4 = sld [smem:[#allocation0]]
  $region53: #{forward.8} parent=0
    _
  %s6 = ssub.s32 1, %s4
  %s7 = scalar_select 0, %s6, %s4
  loop: start=0, step=1, limit=4
  $region2: #{forward.8} parent=0 // loop_pre_header
    _
  $region3: #{forward.8} parent=0 // loop_header
    %s9 = sphi 0, %s13
    %p10 = scmp.ge.s32.totalorder %s9, 4
    %s16 = sphi 0, %s35
    %s17 = sphi 0, %s31
    %s18 = sphi 0, %s27
    %s19 = sphi 0, %s16
    %s20 = sphi 0, %s17
    %s21 = sphi 0, %s18
    %s22 = sphi 0, %s19
    %s23 = sphi 0, %s20
    %s24 = sphi 0, %s21
    %s40 = sphi 0, %s42
    %s43 = sphi 0, %s40
    %s44 = sphi 0, %s43
    %s60 = sphi 0, %s44
    %s68 = sphi 0, %s70
    %s71 = sphi 0, %s68
    %s72 = sphi 0, %s71
    %s88 = sphi 0, %s72
    %s94 = sphi 0, %s96
    %s97 = sphi 0, %s94
    %s98 = sphi 0, %s97
    %s114 = sphi 0, %s98
    %s122 = sphi 0, %s124
    %s125 = sphi 0, %s122
    %s126 = sphi 0, %s125
    %s142 = sphi 0, %s126
  $region4: #{forward.8} parent=0 // loop_header_branch
    %12 = sbr.rel (%p10) target = $region8
  $region5: #{forward.8} parent=0 // loop_body
    %s14 = ssub.s32 %s9, 1
    %s15 = ssub.s32 %s9, 2
    %s25 = sadd.s32 1, %s18
    %p26 = scmp.ge.s32.totalorder %s25, 1
    %s27 = scalar_select %p26, 0, %s25
    %s28 = sadd.s32 1, %s17
    %s29 = scalar_select %p26, %s28, %s17
    %p30 = scmp.ge.s32.totalorder %s29, 1
    %s31 = scalar_select %p30, 0, %s29
    %s32 = sadd.s32 1, %s16
    %s33 = scalar_select %p30, %s32, %s16
    %p34 = scmp.ge.s32.totalorder %s33, 2
    %s35 = scalar_select %p34, 0, %s33
    %s36 = ssub.s32 %s16, %s35
    %s37 = ssub.s32 %s18, %s27
    %s38 = sor.u32 %s36, %s37
    %p39 = scmp.eq.s32.totalorder %s38, 0
    %s41 = sadd.s32 %s40, 1
    %s42 = scalar_select %p39, %s40, %s41
    %p45 = pneg %p39
    %p46 = scmp.eq.s32.totalorder %s9, 1
    %p47 = por %p45, %p46
    %p48 = scmp.ne.s32.totalorder %s40, %s43
    %p49 = scmp.eq.s32.totalorder %s9, 0
    %p50 = por %p48, %p49
    %p51 = scmp.ne.s32.totalorder %s40, %s43
    %p52 = scmp.eq.s32.totalorder %s14, 1
    %p53 = por %p51, %p52
    %p54 = scmp.ne.s32.totalorder %s43, %s44
    %p55 = scmp.eq.s32.totalorder %s14, 0
    %p56 = por %p54, %p55
    %p57 = scmp.ne.s32.totalorder %s43, %s44
    %p58 = scmp.eq.s32.totalorder %s15, 1
    %p59 = por %p57, %p58
    %p61 = scmp.ne.s32.totalorder %s44, %s60
    %p62 = scmp.eq.s32.totalorder %s15, 0
    %p63 = por %p61, %p62
    %s64 = ssub.s32 %s18, %s27
    %s65 = ssub.s32 %s17, %s31
    %s66 = sor.u32 %s64, %s65
    %p67 = scmp.eq.s32.totalorder %s66, 0
    %s69 = sadd.s32 %s68, 1
    %s70 = scalar_select %p67, %s68, %s69
    %p73 = pneg %p67
    %p74 = scmp.eq.s32.totalorder %s9, 1
    %p75 = por %p73, %p74
    %p76 = scmp.ne.s32.totalorder %s68, %s71
    %p77 = scmp.eq.s32.totalorder %s9, 0
    %p78 = por %p76, %p77
    %p79 = scmp.ne.s32.totalorder %s68, %s71
    %p80 = scmp.eq.s32.totalorder %s14, 1
    %p81 = por %p79, %p80
    %p82 = scmp.ne.s32.totalorder %s71, %s72
    %p83 = scmp.eq.s32.totalorder %s14, 0
    %p84 = por %p82, %p83
    %p85 = scmp.ne.s32.totalorder %s71, %s72
    %p86 = scmp.eq.s32.totalorder %s15, 1
    %p87 = por %p85, %p86
    %p89 = scmp.ne.s32.totalorder %s72, %s88
    %p90 = scmp.eq.s32.totalorder %s15, 0
    %p91 = por %p89, %p90
    %s92 = ssub.s32 %s17, %s31
    %p93 = scmp.eq.s32.totalorder %s92, 0
    %s95 = sadd.s32 %s94, 1
    %s96 = scalar_select %p93, %s94, %s95
    %p99 = pneg %p93
    %p100 = scmp.eq.s32.totalorder %s9, 1
    %p101 = por %p99, %p100
    %p102 = scmp.ne.s32.totalorder %s94, %s97
    %p103 = scmp.eq.s32.totalorder %s9, 0
    %p104 = por %p102, %p103
    %p105 = scmp.ne.s32.totalorder %s94, %s97
    %p106 = scmp.eq.s32.totalorder %s14, 1
    %p107 = por %p105, %p106
    %p108 = scmp.ne.s32.totalorder %s97, %s98
    %p109 = scmp.eq.s32.totalorder %s14, 0
    %p110 = por %p108, %p109
    %p111 = scmp.ne.s32.totalorder %s97, %s98
    %p112 = scmp.eq.s32.totalorder %s15, 1
    %p113 = por %p111, %p112
    %p115 = scmp.ne.s32.totalorder %s98, %s114
    %p116 = scmp.eq.s32.totalorder %s15, 0
    %p117 = por %p115, %p116
    %s118 = ssub.s32 %s16, %s35
    %s119 = ssub.s32 %s17, %s31
    %s120 = sor.u32 %s118, %s119
    %p121 = scmp.eq.s32.totalorder %s120, 0
    %s123 = sadd.s32 %s122, 1
    %s124 = scalar_select %p121, %s122, %s123
    %p127 = pneg %p121
    %p128 = scmp.eq.s32.totalorder %s9, 1
    %p129 = por %p127, %p128
    %p130 = scmp.ne.s32.totalorder %s122, %s125
    %p131 = scmp.eq.s32.totalorder %s9, 0
    %p132 = por %p130, %p131
    %p133 = scmp.ne.s32.totalorder %s122, %s125
    %p134 = scmp.eq.s32.totalorder %s14, 1
    %p135 = por %p133, %p134
    %p136 = scmp.ne.s32.totalorder %s125, %s126
    %p137 = scmp.eq.s32.totalorder %s14, 0
    %p138 = por %p136, %p137
    %p139 = scmp.ne.s32.totalorder %s125, %s126
    %p140 = scmp.eq.s32.totalorder %s15, 1
    %p141 = por %p139, %p140
    %p143 = scmp.ne.s32.totalorder %s126, %s142
    %p144 = scmp.eq.s32.totalorder %s15, 0
    %p145 = por %p143, %p144
    %p146 = scmp.le.s32.totalorder 1, %s9
    %p147 = scmp.lt.s32.totalorder %s9, 3
    %p148 = pnand %p146, %p147
    %p149 = pneg %p148
    // Predicated region
    $region9: #{forward.8} parent=5 // pred_check
      _
    $region10: #{forward.8} parent=5 // pred_check_branch
      %151 = sbr.rel (%p148) target = $region12
    $region11: #{forward.8} parent=5 // pred_region
      %s152 = ssub.s32 %s9, 1
      // Predicated region
      $region13: #{forward.8} parent=11 // pred_check
        %p153 = pneg %p84
      $region14: #{forward.8} parent=11 // pred_check_branch
        %155 = sbr.rel (%p153) target = $region16
      $region15: #{forward.8} parent=11 // pred_region
        %s156 = smul.u32 32, %s21
        %p157 = scmp.lt.s32.totalorder %s156, 31
        %s158 = scalar_select %p157, %s156, 31
        %p159 = scmp.lt.s32.totalorder %s20, 0
        %s160 = scalar_select %p159, %s20, 0
        %s161 = sadd.s32 %s160, %s158
        %s162 = smul.addr %s161, 4
        %s163 = scalar_lea.vmem %s1, %s162
        %s164 = smul.u32 32, %s21
      $region16: #{forward.8} parent=11 // pred_fallthru
        _
      // Predicated region
      $region17: #{forward.8} parent=11 // pred_check
        %p165 = pneg %p110
      $region18: #{forward.8} parent=11 // pred_check_branch
        %167 = sbr.rel (%p165) target = $region20
      $region19: #{forward.8} parent=11 // pred_region
        %p168 = scmp.lt.s32.totalorder %s20, 0
        %s169 = scalar_select %p168, %s20, 0
        %s170 = scalar_lea.vmem %s2, %s169
      $region20: #{forward.8} parent=11 // pred_fallthru
        _
    $region12: #{forward.8} parent=5 // pred_fallthru
      _
    %p171 = scmp.lt.s32.totalorder %s9, 2
    // Predicated region
    $region21: #{forward.8} parent=5 // pred_check
      %p172 = pneg %p171
    $region22: #{forward.8} parent=5 // pred_check_branch
      %174 = sbr.rel (%p172) target = $region24
    $region23: #{forward.8} parent=5 // pred_region
      // Predicated region
      $region25: #{forward.8} parent=23 // pred_check
        %p175 = pneg %p50
      $region26: #{forward.8} parent=23 // pred_check_branch
        %177 = sbr.rel (%p175) target = $region28
      $region27: #{forward.8} parent=23 // pred_region
        %s178 = smul.u32 32, %s16
        %s179 = smul.u32 2, %s18
        %p180 = scmp.lt.s32.totalorder %s178, 63
        %s181 = scalar_select %p180, %s178, 63
        %p182 = scmp.lt.s32.totalorder %s179, 1
        %s183 = scalar_select %p182, %s179, 1
        %s184 = smul.addr %s181, 2
        %s185 = sadd.s32 %s183, %s184
        %s186 = smul.addr %s185, 4
        %s187 = scalar_lea.vmem %s0, %s186
        %s188 = smul.u32 32, %s16
        %s189 = smul.u32 2, %s18
      $region28: #{forward.8} parent=23 // pred_fallthru
        _
    $region24: #{forward.8} parent=5 // pred_fallthru
      _
    %p190 = scmp.le.s32.totalorder 1, %s9
    %p191 = scmp.lt.s32.totalorder %s9, 3
    %p192 = pnand %p190, %p191
    %p193 = pneg %p192
    // Predicated region
    $region29: #{forward.8} parent=5 // pred_check
      _
    $region30: #{forward.8} parent=5 // pred_check_branch
      %195 = sbr.rel (%p192) target = $region32
    $region31: #{forward.8} parent=5 // pred_region
      %s196 = ssub.s32 %s9, 1
      %s197 = smul.u32 32, %s19
      %s198 = smul.u32 2, %s21
      %p199 = scmp.lt.s32.totalorder %s197, 63
      %s200 = scalar_select %p199, %s197, 63
      %p201 = scmp.lt.s32.totalorder %s198, 1
      %s202 = scalar_select %p201, %s198, 1
      %s203 = smul.addr %s200, 2
      %s204 = sadd.s32 %s202, %s203
      %s205 = smul.addr %s204, 4
      %s206 = scalar_lea.vmem %s0, %s205
      %p207 = pneg %p56
      %p208 = pneg %p53
      %s209 = smul.u32 32, %s21
      %p210 = scmp.lt.s32.totalorder %s209, 31
      %s211 = scalar_select %p210, %s209, 31
      %p212 = scmp.lt.s32.totalorder %s20, 0
      %s213 = scalar_select %p212, %s20, 0
      %s214 = sadd.s32 %s213, %s211
      %s215 = smul.addr %s214, 4
      %s216 = scalar_lea.vmem %s1, %s215
      %p217 = pneg %p84
      %p218 = pneg %p81
      %p219 = scmp.lt.s32.totalorder %s20, 0
      %s220 = scalar_select %p219, %s20, 0
      %s221 = scalar_lea.vmem %s2, %s220
      %p222 = pneg %p110
      %p223 = pneg %p107
      %p224 = pneg %p138
      %p225 = pneg %p135
      %s226 = smul.u32 32, %s19
      %p227 = scmp.lt.s32.totalorder %s226, 63
      %s228 = scalar_select %p227, %s226, 63
      %p229 = scmp.lt.s32.totalorder %s20, 0
      %s230 = scalar_select %p229, %s20, 0
      %s231 = sadd.s32 %s230, %s228
      %s232 = smul.addr %s231, 4
      %s233 = scalar_lea.vmem %s3, %s232
      %s234 = smul.u32 32, %s19
      %s235 = smul.u32 2, %s21
      %p236 = scmp.lt.s32.totalorder %s234, 63
      %s237 = scalar_select %p236, %s234, 63
      %p238 = scmp.lt.s32.totalorder %s235, 1
      %s239 = scalar_select %p238, %s235, 1
      %s240 = smul.addr %s237, 2
      %s241 = sadd.s32 %s239, %s240
      %s242 = smul.addr %s241, 4
      %s243 = scalar_lea.vmem %s0, %s242
      %s244 = smul.u32 32, %s19
      %s245 = smul.u32 2, %s21
      %s246 = smul.u32 32, %s21
      %p247 = scmp.lt.s32.totalorder %s246, 31
      %s248 = scalar_select %p247, %s246, 31
      %p249 = scmp.lt.s32.totalorder %s20, 0
      %s250 = scalar_select %p249, %s20, 0
      %s251 = sadd.s32 %s250, %s248
      %s252 = smul.addr %s251, 4
      %s253 = scalar_lea.vmem %s1, %s252
      %s254 = smul.u32 32, %s21
      %p255 = scmp.lt.s32.totalorder %s20, 0
      %s256 = scalar_select %p255, %s20, 0
      %s257 = scalar_lea.vmem %s2, %s256
      %s258 = smul.u32 32, %s19
      %p259 = scmp.lt.s32.totalorder %s258, 63
      %s260 = scalar_select %p259, %s258, 63
      %p261 = scmp.lt.s32.totalorder %s20, 0
      %s262 = scalar_select %p261, %s20, 0
      %s263 = sadd.s32 %s262, %s260
      %s264 = smul.addr %s263, 4
      %s265 = scalar_lea.vmem %s3, %s264
      %s266 = smul.u32 32, %s19
      %p268 = scmp.eq.s32.totalorder %s21, 0
      // Predicated region
      $region33: #{forward.8} parent=31 // pred_check
        %p269 = pneg %p268
      $region34: #{forward.8} parent=31 // pred_check_branch
        %271 = sbr.rel (%p269) target = $region36
      $region35: #{forward.8} parent=31 // pred_region
        %v272 = vld [vmem:[%s257] sm:$0x1]
        %v274 = vlaneseq
        %v275 = vshrl.u32 %v274, 7
        %v276 = vsub.s32 0, %v275
        %v277 = vrot.slane %v272, %v276
        %279 = vst [vmem:[#allocation2] sm:$0xff] %v277
        %280 = vst [vmem:[#allocation2 + $0x8] sm:$0xff] %v277
        %281 = vst [vmem:[#allocation2 + $0x10] sm:$0xff] %v277
        %282 = vst [vmem:[#allocation2 + $0x18] sm:$0xff] %v277
        %283 = vst [vmem:[#allocation2 + $0x20] sm:$0xff] %v277
        %284 = vst [vmem:[#allocation2 + $0x28] sm:$0xff] %v277
        %285 = vst [vmem:[#allocation2 + $0x30] sm:$0xff] %v277
        %286 = vst [vmem:[#allocation2 + $0x38] sm:$0xff] %v277
        %287 = vst [vmem:[#allocation2 + $0x40] sm:$0xff] %v277
        %288 = vst [vmem:[#allocation2 + $0x48] sm:$0xff] %v277
        %289 = vst [vmem:[#allocation2 + $0x50] sm:$0xff] %v277
        %290 = vst [vmem:[#allocation2 + $0x58] sm:$0xff] %v277
        %291 = vst [vmem:[#allocation2 + $0x60] sm:$0xff] %v277
        %292 = vst [vmem:[#allocation2 + $0x68] sm:$0xff] %v277
        %293 = vst [vmem:[#allocation2 + $0x70] sm:$0xff] %v277
        %294 = vst [vmem:[#allocation2 + $0x78] sm:$0xff] %v277
        %295 = vst [vmem:[#allocation2 + $0x80] sm:$0xff] %v277
        %296 = vst [vmem:[#allocation2 + $0x88] sm:$0xff] %v277
        %297 = vst [vmem:[#allocation2 + $0x90] sm:$0xff] %v277
        %298 = vst [vmem:[#allocation2 + $0x98] sm:$0xff] %v277
        %299 = vst [vmem:[#allocation2 + $0xa0] sm:$0xff] %v277
        %300 = vst [vmem:[#allocation2 + $0xa8] sm:$0xff] %v277
        %301 = vst [vmem:[#allocation2 + $0xb0] sm:$0xff] %v277
        %302 = vst [vmem:[#allocation2 + $0xb8] sm:$0xff] %v277
        %303 = vst [vmem:[#allocation2 + $0xc0] sm:$0xff] %v277
        %304 = vst [vmem:[#allocation2 + $0xc8] sm:$0xff] %v277
        %305 = vst [vmem:[#allocation2 + $0xd0] sm:$0xff] %v277
        %306 = vst [vmem:[#allocation2 + $0xd8] sm:$0xff] %v277
        %307 = vst [vmem:[#allocation2 + $0xe0] sm:$0xff] %v277
        %308 = vst [vmem:[#allocation2 + $0xe8] sm:$0xff] %v277
        %309 = vst [vmem:[#allocation2 + $0xf0] sm:$0xff] %v277
        %310 = vst [vmem:[#allocation2 + $0xf8] sm:$0xff] %v277
      $region36: #{forward.8} parent=31 // pred_fallthru
        _
      %v311 = vld [vmem:[#allocation2] sm:$0xff]
      %v312 = vld [vmem:[#allocation2 + $0x8] sm:$0xff]
      %v313 = vld [vmem:[#allocation2 + $0x10] sm:$0xff]
      %v314 = vld [vmem:[#allocation2 + $0x18] sm:$0xff]
      %v315 = vld [vmem:[#allocation2 + $0x20] sm:$0xff]
      %v316 = vld [vmem:[#allocation2 + $0x28] sm:$0xff]
      %v317 = vld [vmem:[#allocation2 + $0x30] sm:$0xff]
      %v318 = vld [vmem:[#allocation2 + $0x38] sm:$0xff]
      %v319 = vld [vmem:[#allocation2 + $0x40] sm:$0xff]
      %v320 = vld [vmem:[#allocation2 + $0x48] sm:$0xff]
      %v321 = vld [vmem:[#allocation2 + $0x50] sm:$0xff]
      %v322 = vld [vmem:[#allocation2 + $0x58] sm:$0xff]
      %v323 = vld [vmem:[#allocation2 + $0x60] sm:$0xff]
      %v324 = vld [vmem:[#allocation2 + $0x68] sm:$0xff]
      %v325 = vld [vmem:[#allocation2 + $0x70] sm:$0xff]
      %v326 = vld [vmem:[#allocation2 + $0x78] sm:$0xff]
      %v327 = vld [vmem:[#allocation2 + $0x80] sm:$0xff]
      %v328 = vld [vmem:[#allocation2 + $0x88] sm:$0xff]
      %v329 = vld [vmem:[#allocation2 + $0x90] sm:$0xff]
      %v330 = vld [vmem:[#allocation2 + $0x98] sm:$0xff]
      %v331 = vld [vmem:[#allocation2 + $0xa0] sm:$0xff]
      %v332 = vld [vmem:[#allocation2 + $0xa8] sm:$0xff]
      %v333 = vld [vmem:[#allocation2 + $0xb0] sm:$0xff]
      %v334 = vld [vmem:[#allocation2 + $0xb8] sm:$0xff]
      %v335 = vld [vmem:[#allocation2 + $0xc0] sm:$0xff]
      %v336 = vld [vmem:[#allocation2 + $0xc8] sm:$0xff]
      %v337 = vld [vmem:[#allocation2 + $0xd0] sm:$0xff]
      %v338 = vld [vmem:[#allocation2 + $0xd8] sm:$0xff]
      %v339 = vld [vmem:[#allocation2 + $0xe0] sm:$0xff]
      %v340 = vld [vmem:[#allocation2 + $0xe8] sm:$0xff]
      %v341 = vld [vmem:[#allocation2 + $0xf0] sm:$0xff]
      %v342 = vld [vmem:[#allocation2 + $0xf8] sm:$0xff]
      %v343 = vld [vmem:[%s243] sm:$0xff]
      %v344 = vld [vmem:[%s243 + $0x8] sm:$0xff]
      %v345 = vld [vmem:[%s243 + $0x10] sm:$0xff]
      %v346 = vld [vmem:[%s243 + $0x18] sm:$0xff]
      %v347 = vld [vmem:[%s243 + $0x20] sm:$0xff]
      %v348 = vld [vmem:[%s243 + $0x28] sm:$0xff]
      %v349 = vld [vmem:[%s243 + $0x30] sm:$0xff]
      %v350 = vld [vmem:[%s243 + $0x38] sm:$0xff]
      %v351 = vld [vmem:[%s243 + $0x40] sm:$0xff]
      %v352 = vld [vmem:[%s243 + $0x48] sm:$0xff]
      %v353 = vld [vmem:[%s243 + $0x50] sm:$0xff]
      %v354 = vld [vmem:[%s243 + $0x58] sm:$0xff]
      %v355 = vld [vmem:[%s243 + $0x60] sm:$0xff]
      %v356 = vld [vmem:[%s243 + $0x68] sm:$0xff]
      %v357 = vld [vmem:[%s243 + $0x70] sm:$0xff]
      %v358 = vld [vmem:[%s243 + $0x78] sm:$0xff]
      %v359 = vld [vmem:[%s243 + $0x80] sm:$0xff]
      %v360 = vld [vmem:[%s243 + $0x88] sm:$0xff]
      %v361 = vld [vmem:[%s243 + $0x90] sm:$0xff]
      %v362 = vld [vmem:[%s243 + $0x98] sm:$0xff]
      %v363 = vld [vmem:[%s243 + $0xa0] sm:$0xff]
      %v364 = vld [vmem:[%s243 + $0xa8] sm:$0xff]
      %v365 = vld [vmem:[%s243 + $0xb0] sm:$0xff]
      %v366 = vld [vmem:[%s243 + $0xb8] sm:$0xff]
      %v367 = vld [vmem:[%s243 + $0xc0] sm:$0xff]
      %v368 = vld [vmem:[%s243 + $0xc8] sm:$0xff]
      %v369 = vld [vmem:[%s243 + $0xd0] sm:$0xff]
      %v370 = vld [vmem:[%s243 + $0xd8] sm:$0xff]
      %v371 = vld [vmem:[%s243 + $0xe0] sm:$0xff]
      %v372 = vld [vmem:[%s243 + $0xe8] sm:$0xff]
      %v373 = vld [vmem:[%s243 + $0xf0] sm:$0xff]
      %v374 = vld [vmem:[%s243 + $0xf8] sm:$0xff]
      %v375 = vld [vmem:[%s253] sm:$0xf]
      %v376 = vld [vmem:[%s253 + $0x4] sm:$0xf]
      %v377 = vld [vmem:[%s253 + $0x8] sm:$0xf]
      %v378 = vld [vmem:[%s253 + $0xc] sm:$0xf]
      %v379 = vld [vmem:[%s253 + $0x10] sm:$0xf]
      %v380 = vld [vmem:[%s253 + $0x14] sm:$0xf]
      %v381 = vld [vmem:[%s253 + $0x18] sm:$0xf]
      %v382 = vld [vmem:[%s253 + $0x1c] sm:$0xf]
      %v383 = vld [vmem:[%s253 + $0x20] sm:$0xf]
      %v384 = vld [vmem:[%s253 + $0x24] sm:$0xf]
      %v385 = vld [vmem:[%s253 + $0x28] sm:$0xf]
      %v386 = vld [vmem:[%s253 + $0x2c] sm:$0xf]
      %v387 = vld [vmem:[%s253 + $0x30] sm:$0xf]
      %v388 = vld [vmem:[%s253 + $0x34] sm:$0xf]
      %v389 = vld [vmem:[%s253 + $0x38] sm:$0xf]
      %v390 = vld [vmem:[%s253 + $0x3c] sm:$0xf]
      %v391 = vld [vmem:[%s253 + $0x40] sm:$0xf]
      %v392 = vld [vmem:[%s253 + $0x44] sm:$0xf]
      %v393 = vld [vmem:[%s253 + $0x48] sm:$0xf]
      %v394 = vld [vmem:[%s253 + $0x4c] sm:$0xf]
      %v395 = vld [vmem:[%s253 + $0x50] sm:$0xf]
      %v396 = vld [vmem:[%s253 + $0x54] sm:$0xf]
      %v397 = vld [vmem:[%s253 + $0x58] sm:$0xf]
      %v398 = vld [vmem:[%s253 + $0x5c] sm:$0xf]
      %v399 = vld [vmem:[%s253 + $0x60] sm:$0xf]
      %v400 = vld [vmem:[%s253 + $0x64] sm:$0xf]
      %v401 = vld [vmem:[%s253 + $0x68] sm:$0xf]
      %v402 = vld [vmem:[%s253 + $0x6c] sm:$0xf]
      %v403 = vld [vmem:[%s253 + $0x70] sm:$0xf]
      %v404 = vld [vmem:[%s253 + $0x74] sm:$0xf]
      %v405 = vld [vmem:[%s253 + $0x78] sm:$0xf]
      %v406 = vld [vmem:[%s253 + $0x7c] sm:$0xf]
      %v439 = vunpack.c.l.b16 %v343
      %v440 = vunpack.c.h.b16 %v343
      %v441 = vunpack.c.l.b16 %v344
      %v442 = vunpack.c.h.b16 %v344
      %v443 = vunpack.c.l.b16 %v345
      %v444 = vunpack.c.h.b16 %v345
      %v445 = vunpack.c.l.b16 %v346
      %v446 = vunpack.c.h.b16 %v346
      %v447 = vunpack.c.l.b16 %v347
      %v448 = vunpack.c.h.b16 %v347
      %v449 = vunpack.c.l.b16 %v348
      %v450 = vunpack.c.h.b16 %v348
      %v451 = vunpack.c.l.b16 %v349
      %v452 = vunpack.c.h.b16 %v349
      %v453 = vunpack.c.l.b16 %v350
      %v454 = vunpack.c.h.b16 %v350
      %v455 = vunpack.c.l.b16 %v351
      %v456 = vunpack.c.h.b16 %v351
      %v457 = vunpack.c.l.b16 %v352
      %v458 = vunpack.c.h.b16 %v352
      %v459 = vunpack.c.l.b16 %v353
      %v460 = vunpack.c.h.b16 %v353
      %v461 = vunpack.c.l.b16 %v354
      %v462 = vunpack.c.h.b16 %v354
      %v463 = vunpack.c.l.b16 %v355
      %v464 = vunpack.c.h.b16 %v355
      %v465 = vunpack.c.l.b16 %v356
      %v466 = vunpack.c.h.b16 %v356
      %v467 = vunpack.c.l.b16 %v357
      %v468 = vunpack.c.h.b16 %v357
      %v469 = vunpack.c.l.b16 %v358
      %v470 = vunpack.c.h.b16 %v358
      %v471 = vunpack.c.l.b16 %v359
      %v472 = vunpack.c.h.b16 %v359
      %v473 = vunpack.c.l.b16 %v360
      %v474 = vunpack.c.h.b16 %v360
      %v475 = vunpack.c.l.b16 %v361
      %v476 = vunpack.c.h.b16 %v361
      %v477 = vunpack.c.l.b16 %v362
      %v478 = vunpack.c.h.b16 %v362
      %v479 = vunpack.c.l.b16 %v363
      %v480 = vunpack.c.h.b16 %v363
      %v481 = vunpack.c.l.b16 %v364
      %v482 = vunpack.c.h.b16 %v364
      %v483 = vunpack.c.l.b16 %v365
      %v484 = vunpack.c.h.b16 %v365
      %v485 = vunpack.c.l.b16 %v366
      %v486 = vunpack.c.h.b16 %v366
      %v487 = vunpack.c.l.b16 %v367
      %v488 = vunpack.c.h.b16 %v367
      %v489 = vunpack.c.l.b16 %v368
      %v490 = vunpack.c.h.b16 %v368
      %v491 = vunpack.c.l.b16 %v369
      %v492 = vunpack.c.h.b16 %v369
      %v493 = vunpack.c.l.b16 %v370
      %v494 = vunpack.c.h.b16 %v370
      %v495 = vunpack.c.l.b16 %v371
      %v496 = vunpack.c.h.b16 %v371
      %v497 = vunpack.c.l.b16 %v372
      %v498 = vunpack.c.h.b16 %v372
      %v499 = vunpack.c.l.b16 %v373
      %v500 = vunpack.c.h.b16 %v373
      %v501 = vunpack.c.l.b16 %v374
      %v502 = vunpack.c.h.b16 %v374
      %v503 = vpack.c.b16 %v441, %v439
      %v504 = vpack.c.b16 %v442, %v440
      %v505 = vpack.c.b16 %v445, %v443
      %v506 = vpack.c.b16 %v446, %v444
      %v507 = vpack.c.b16 %v449, %v447
      %v508 = vpack.c.b16 %v450, %v448
      %v509 = vpack.c.b16 %v453, %v451
      %v510 = vpack.c.b16 %v454, %v452
      %v511 = vpack.c.b16 %v457, %v455
      %v512 = vpack.c.b16 %v458, %v456
      %v513 = vpack.c.b16 %v461, %v459
      %v514 = vpack.c.b16 %v462, %v460
      %v515 = vpack.c.b16 %v465, %v463
      %v516 = vpack.c.b16 %v466, %v464
      %v517 = vpack.c.b16 %v469, %v467
      %v518 = vpack.c.b16 %v470, %v468
      %v519 = vpack.c.b16 %v473, %v471
      %v520 = vpack.c.b16 %v474, %v472
      %v521 = vpack.c.b16 %v477, %v475
      %v522 = vpack.c.b16 %v478, %v476
      %v523 = vpack.c.b16 %v481, %v479
      %v524 = vpack.c.b16 %v482, %v480
      %v525 = vpack.c.b16 %v485, %v483
      %v526 = vpack.c.b16 %v486, %v484
      %v527 = vpack.c.b16 %v489, %v487
      %v528 = vpack.c.b16 %v490, %v488
      %v529 = vpack.c.b16 %v493, %v491
      %v530 = vpack.c.b16 %v494, %v492
      %v531 = vpack.c.b16 %v497, %v495
      %v532 = vpack.c.b16 %v498, %v496
      %v533 = vpack.c.b16 %v501, %v499
      %v534 = vpack.c.b16 %v502, %v500
      %v599 = vunpack.c.l.b16 %v375
      %v600 = vunpack.c.l.b16 %v376
      %v601 = vunpack.c.l.b16 %v377
      %v602 = vunpack.c.l.b16 %v378
      %v603 = vunpack.c.l.b16 %v379
      %v604 = vunpack.c.l.b16 %v380
      %v605 = vunpack.c.l.b16 %v381
      %v606 = vunpack.c.l.b16 %v382
      %v607 = vunpack.c.l.b16 %v383
      %v608 = vunpack.c.l.b16 %v384
      %v609 = vunpack.c.l.b16 %v385
      %v610 = vunpack.c.l.b16 %v386
      %v611 = vunpack.c.l.b16 %v387
      %v612 = vunpack.c.l.b16 %v388
      %v613 = vunpack.c.l.b16 %v389
      %v614 = vunpack.c.l.b16 %v390
      %v615 = vunpack.c.l.b16 %v391
      %v616 = vunpack.c.l.b16 %v392
      %v617 = vunpack.c.l.b16 %v393
      %v618 = vunpack.c.l.b16 %v394
      %v619 = vunpack.c.l.b16 %v395
      %v620 = vunpack.c.l.b16 %v396
      %v621 = vunpack.c.l.b16 %v397
      %v622 = vunpack.c.l.b16 %v398
      %v623 = vunpack.c.l.b16 %v399
      %v624 = vunpack.c.l.b16 %v400
      %v625 = vunpack.c.l.b16 %v401
      %v626 = vunpack.c.l.b16 %v402
      %v627 = vunpack.c.l.b16 %v403
      %v628 = vunpack.c.l.b16 %v404
      %v629 = vunpack.c.l.b16 %v405
      %v630 = vunpack.c.l.b16 %v406
      %v631 = vpack.c.b16 %v600, %v599
      %v632 = vpack.c.b16 %v602, %v601
      %v633 = vpack.c.b16 %v604, %v603
      %v634 = vpack.c.b16 %v606, %v605
      %v635 = vpack.c.b16 %v608, %v607
      %v636 = vpack.c.b16 %v610, %v609
      %v637 = vpack.c.b16 %v612, %v611
      %v638 = vpack.c.b16 %v614, %v613
      %v639 = vpack.c.b16 %v616, %v615
      %v640 = vpack.c.b16 %v618, %v617
      %v641 = vpack.c.b16 %v620, %v619
      %v642 = vpack.c.b16 %v622, %v621
      %v643 = vpack.c.b16 %v624, %v623
      %v644 = vpack.c.b16 %v626, %v625
      %v645 = vpack.c.b16 %v628, %v627
      %v646 = vpack.c.b16 %v630, %v629
      %663 = vmatprep.subr.bf16.mxu0 0
      %664 = vmatpush1.bf16.msra.mxu0 %v638
      %665 = vmatprep.subr.bf16.mxu0 0
      %666 = vmatpush1.bf16.msra.mxu0 %v637
      %667 = vmatprep.subr.bf16.mxu0 0
      %668 = vmatpush1.bf16.msra.mxu0 %v636
      %669 = vmatprep.subr.bf16.mxu0 0
      %670 = vmatpush1.bf16.msra.mxu0 %v635
      %671 = vmatprep.subr.bf16.mxu0 0
      %672 = vmatpush1.bf16.msra.mxu0 %v634
      %673 = vmatprep.subr.bf16.mxu0 0
      %674 = vmatpush1.bf16.msra.mxu0 %v633
      %675 = vmatprep.subr.bf16.mxu0 0
      %676 = vmatpush1.bf16.msra.mxu0 %v632
      %677 = vmatprep.subr.bf16.mxu0 0
      %678 = vmatpush1.bf16.msra.mxu0 %v631
      %679 = vmatprep.subr.bf16.mxu0 0
      %680 = vmatpush2.bf16.msra.mxu0 %v646
      %681 = vmatprep.subr.bf16.mxu0 0
      %682 = vmatpush2.bf16.msra.mxu0 %v645
      %683 = vmatprep.subr.bf16.mxu0 0
      %684 = vmatpush2.bf16.msra.mxu0 %v644
      %685 = vmatprep.subr.bf16.mxu0 0
      %686 = vmatpush2.bf16.msra.mxu0 %v643
      %687 = vmatprep.subr.bf16.mxu0 0
      %688 = vmatpush2.bf16.msra.mxu0 %v642
      %689 = vmatprep.subr.bf16.mxu0 0
      %690 = vmatpush2.bf16.msra.mxu0 %v641
      %691 = vmatprep.subr.bf16.mxu0 0
      %692 = vmatpush2.bf16.msra.mxu0 %v640
      %693 = vmatprep.subr.bf16.mxu0 0
      %694 = vmatpush2.bf16.msra.mxu0 %v639
      %695 = vmatprep.mubr.bf16.mxu0 %v504
      %696 = vmatmul.mubr.bf16.gmra.mxu0 %v503
      %v697 = vpop.f32.mrf.mxu0
      %v698 = vadd.f32 0.0, %v697
      %v699 = vpop.f32.mrf.mxu0
      %v700 = vpop.f32.mrf.mxu0
      %v701 = vadd.f32 0.0, %v700
      %v702 = vpop.f32.mrf.mxu0
      %703 = vmatprep.mubr.bf16.mxu0 %v506
      %704 = vmatmul.mubr.bf16.gmra.mxu0 %v505
      %v705 = vpop.f32.mrf.mxu0
      %v706 = vadd.f32 0.0, %v705
      %v707 = vpop.f32.mrf.mxu0
      %v708 = vpop.f32.mrf.mxu0
      %v709 = vadd.f32 0.0, %v708
      %v710 = vpop.f32.mrf.mxu0
      %711 = vmatprep.mubr.bf16.mxu0 %v508
      %712 = vmatmul.mubr.bf16.gmra.mxu0 %v507
      %v713 = vpop.f32.mrf.mxu0
      %v714 = vadd.f32 0.0, %v713
      %v715 = vpop.f32.mrf.mxu0
      %v716 = vpop.f32.mrf.mxu0
      %v717 = vadd.f32 0.0, %v716
      %v718 = vpop.f32.mrf.mxu0
      %719 = vmatprep.mubr.bf16.mxu0 %v510
      %720 = vmatmul.mubr.bf16.gmra.mxu0 %v509
      %v721 = vpop.f32.mrf.mxu0
      %v722 = vadd.f32 0.0, %v721
      %v723 = vpop.f32.mrf.mxu0
      %v724 = vpop.f32.mrf.mxu0
      %v725 = vadd.f32 0.0, %v724
      %v726 = vpop.f32.mrf.mxu0
      %727 = vmatprep.mubr.bf16.mxu0 %v512
      %728 = vmatmul.mubr.bf16.gmra.mxu0 %v511
      %v729 = vpop.f32.mrf.mxu0
      %v730 = vadd.f32 0.0, %v729
      %v731 = vpop.f32.mrf.mxu0
      %v732 = vpop.f32.mrf.mxu0
      %v733 = vadd.f32 0.0, %v732
      %v734 = vpop.f32.mrf.mxu0
      %735 = vmatprep.mubr.bf16.mxu0 %v514
      %736 = vmatmul.mubr.bf16.gmra.mxu0 %v513
      %v737 = vpop.f32.mrf.mxu0
      %v738 = vadd.f32 0.0, %v737
      %v739 = vpop.f32.mrf.mxu0
      %v740 = vpop.f32.mrf.mxu0
      %v741 = vadd.f32 0.0, %v740
      %v742 = vpop.f32.mrf.mxu0
      %743 = vmatprep.mubr.bf16.mxu0 %v516
      %744 = vmatmul.mubr.bf16.gmra.mxu0 %v515
      %v745 = vpop.f32.mrf.mxu0
      %v746 = vadd.f32 0.0, %v745
      %v747 = vpop.f32.mrf.mxu0
      %v748 = vpop.f32.mrf.mxu0
      %v749 = vadd.f32 0.0, %v748
      %v750 = vpop.f32.mrf.mxu0
      %751 = vmatprep.mubr.bf16.mxu0 %v518
      %752 = vmatmul.mubr.bf16.gmra.mxu0 %v517
      %v753 = vpop.f32.mrf.mxu0
      %v754 = vadd.f32 0.0, %v753
      %v755 = vpop.f32.mrf.mxu0
      %v756 = vpop.f32.mrf.mxu0
      %v757 = vadd.f32 0.0, %v756
      %v758 = vpop.f32.mrf.mxu0
      %759 = vmatprep.mubr.bf16.mxu0 %v520
      %760 = vmatmul.mubr.bf16.gmra.mxu0 %v519
      %v761 = vpop.f32.mrf.mxu0
      %v762 = vadd.f32 0.0, %v761
      %v763 = vpop.f32.mrf.mxu0
      %v764 = vpop.f32.mrf.mxu0
      %v765 = vadd.f32 0.0, %v764
      %v766 = vpop.f32.mrf.mxu0
      %767 = vmatprep.mubr.bf16.mxu0 %v522
      %768 = vmatmul.mubr.bf16.gmra.mxu0 %v521
      %v769 = vpop.f32.mrf.mxu0
      %v770 = vadd.f32 0.0, %v769
      %v771 = vpop.f32.mrf.mxu0
      %v772 = vpop.f32.mrf.mxu0
      %v773 = vadd.f32 0.0, %v772
      %v774 = vpop.f32.mrf.mxu0
      %775 = vmatprep.mubr.bf16.mxu0 %v524
      %776 = vmatmul.mubr.bf16.gmra.mxu0 %v523
      %v777 = vpop.f32.mrf.mxu0
      %v778 = vadd.f32 0.0, %v777
      %v779 = vpop.f32.mrf.mxu0
      %v780 = vpop.f32.mrf.mxu0
      %v781 = vadd.f32 0.0, %v780
      %v782 = vpop.f32.mrf.mxu0
      %783 = vmatprep.mubr.bf16.mxu0 %v526
      %784 = vmatmul.mubr.bf16.gmra.mxu0 %v525
      %v785 = vpop.f32.mrf.mxu0
      %v786 = vadd.f32 0.0, %v785
      %v787 = vpop.f32.mrf.mxu0
      %v788 = vpop.f32.mrf.mxu0
      %v789 = vadd.f32 0.0, %v788
      %v790 = vpop.f32.mrf.mxu0
      %791 = vmatprep.mubr.bf16.mxu0 %v528
      %792 = vmatmul.mubr.bf16.gmra.mxu0 %v527
      %v793 = vpop.f32.mrf.mxu0
      %v794 = vadd.f32 0.0, %v793
      %v795 = vpop.f32.mrf.mxu0
      %v796 = vpop.f32.mrf.mxu0
      %v797 = vadd.f32 0.0, %v796
      %v798 = vpop.f32.mrf.mxu0
      %799 = vmatprep.mubr.bf16.mxu0 %v530
      %800 = vmatmul.mubr.bf16.gmra.mxu0 %v529
      %v801 = vpop.f32.mrf.mxu0
      %v802 = vadd.f32 0.0, %v801
      %v803 = vpop.f32.mrf.mxu0
      %v804 = vpop.f32.mrf.mxu0
      %v805 = vadd.f32 0.0, %v804
      %v806 = vpop.f32.mrf.mxu0
      %807 = vmatprep.mubr.bf16.mxu0 %v532
      %808 = vmatmul.mubr.bf16.gmra.mxu0 %v531
      %v809 = vpop.f32.mrf.mxu0
      %v810 = vadd.f32 0.0, %v809
      %v811 = vpop.f32.mrf.mxu0
      %v812 = vpop.f32.mrf.mxu0
      %v813 = vadd.f32 0.0, %v812
      %v814 = vpop.f32.mrf.mxu0
      %815 = vmatprep.mubr.bf16.mxu0 %v534
      %816 = vmatmul.mubr.bf16.gmra.mxu0 %v533
      %v817 = vpop.f32.mrf.mxu0
      %v818 = vadd.f32 0.0, %v817
      %v819 = vpop.f32.mrf.mxu0
      %v820 = vpop.f32.mrf.mxu0
      %v821 = vadd.f32 0.0, %v820
      %v822 = vpop.f32.mrf.mxu0
      %823 = vdwg.mxu0
      %v824 = vadd.f32 %v311, %v698
      %v825 = vadd.f32 %v312, %v701
      %v826 = vadd.f32 %v313, %v706
      %v827 = vadd.f32 %v314, %v709
      %v828 = vadd.f32 %v315, %v714
      %v829 = vadd.f32 %v316, %v717
      %v830 = vadd.f32 %v317, %v722
      %v831 = vadd.f32 %v318, %v725
      %v832 = vadd.f32 %v319, %v730
      %v833 = vadd.f32 %v320, %v733
      %v834 = vadd.f32 %v321, %v738
      %v835 = vadd.f32 %v322, %v741
      %v836 = vadd.f32 %v323, %v746
      %v837 = vadd.f32 %v324, %v749
      %v838 = vadd.f32 %v325, %v754
      %v839 = vadd.f32 %v326, %v757
      %v840 = vadd.f32 %v327, %v762
      %v841 = vadd.f32 %v328, %v765
      %v842 = vadd.f32 %v329, %v770
      %v843 = vadd.f32 %v330, %v773
      %v844 = vadd.f32 %v331, %v778
      %v845 = vadd.f32 %v332, %v781
      %v846 = vadd.f32 %v333, %v786
      %v847 = vadd.f32 %v334, %v789
      %v848 = vadd.f32 %v335, %v794
      %v849 = vadd.f32 %v336, %v797
      %v850 = vadd.f32 %v337, %v802
      %v851 = vadd.f32 %v338, %v805
      %v852 = vadd.f32 %v339, %v810
      %v853 = vadd.f32 %v340, %v813
      %v854 = vadd.f32 %v341, %v818
      %v855 = vadd.f32 %v342, %v821
      %856 = vst [vmem:[#allocation2] sm:$0xff] %v824
      %857 = vst [vmem:[#allocation2 + $0x8] sm:$0xff] %v825
      %858 = vst [vmem:[#allocation2 + $0x10] sm:$0xff] %v826
      %859 = vst [vmem:[#allocation2 + $0x18] sm:$0xff] %v827
      %860 = vst [vmem:[#allocation2 + $0x20] sm:$0xff] %v828
      %861 = vst [vmem:[#allocation2 + $0x28] sm:$0xff] %v829
      %862 = vst [vmem:[#allocation2 + $0x30] sm:$0xff] %v830
      %863 = vst [vmem:[#allocation2 + $0x38] sm:$0xff] %v831
      %864 = vst [vmem:[#allocation2 + $0x40] sm:$0xff] %v832
      %865 = vst [vmem:[#allocation2 + $0x48] sm:$0xff] %v833
      %866 = vst [vmem:[#allocation2 + $0x50] sm:$0xff] %v834
      %867 = vst [vmem:[#allocation2 + $0x58] sm:$0xff] %v835
      %868 = vst [vmem:[#allocation2 + $0x60] sm:$0xff] %v836
      %869 = vst [vmem:[#allocation2 + $0x68] sm:$0xff] %v837
      %870 = vst [vmem:[#allocation2 + $0x70] sm:$0xff] %v838
      %871 = vst [vmem:[#allocation2 + $0x78] sm:$0xff] %v839
      %872 = vst [vmem:[#allocation2 + $0x80] sm:$0xff] %v840
      %873 = vst [vmem:[#allocation2 + $0x88] sm:$0xff] %v841
      %874 = vst [vmem:[#allocation2 + $0x90] sm:$0xff] %v842
      %875 = vst [vmem:[#allocation2 + $0x98] sm:$0xff] %v843
      %876 = vst [vmem:[#allocation2 + $0xa0] sm:$0xff] %v844
      %877 = vst [vmem:[#allocation2 + $0xa8] sm:$0xff] %v845
      %878 = vst [vmem:[#allocation2 + $0xb0] sm:$0xff] %v846
      %879 = vst [vmem:[#allocation2 + $0xb8] sm:$0xff] %v847
      %880 = vst [vmem:[#allocation2 + $0xc0] sm:$0xff] %v848
      %881 = vst [vmem:[#allocation2 + $0xc8] sm:$0xff] %v849
      %882 = vst [vmem:[#allocation2 + $0xd0] sm:$0xff] %v850
      %883 = vst [vmem:[#allocation2 + $0xd8] sm:$0xff] %v851
      %884 = vst [vmem:[#allocation2 + $0xe0] sm:$0xff] %v852
      %885 = vst [vmem:[#allocation2 + $0xe8] sm:$0xff] %v853
      %886 = vst [vmem:[#allocation2 + $0xf0] sm:$0xff] %v854
      %887 = vst [vmem:[#allocation2 + $0xf8] sm:$0xff] %v855
      // Predicated region
      $region37: #{forward.8} parent=31 // pred_check
        %p888 = pneg %p268
      $region38: #{forward.8} parent=31 // pred_check_branch
        %890 = sbr.rel (%p888) target = $region40
      $region39: #{forward.8} parent=31 // pred_region
        %v891 = vld [vmem:[#allocation2] sm:$0xff]
        %v892 = vld [vmem:[#allocation2 + $0x8] sm:$0xff]
        %v893 = vld [vmem:[#allocation2 + $0x10] sm:$0xff]
        %v894 = vld [vmem:[#allocation2 + $0x18] sm:$0xff]
        %v895 = vld [vmem:[#allocation2 + $0x20] sm:$0xff]
        %v896 = vld [vmem:[#allocation2 + $0x28] sm:$0xff]
        %v897 = vld [vmem:[#allocation2 + $0x30] sm:$0xff]
        %v898 = vld [vmem:[#allocation2 + $0x38] sm:$0xff]
        %v899 = vld [vmem:[#allocation2 + $0x40] sm:$0xff]
        %v900 = vld [vmem:[#allocation2 + $0x48] sm:$0xff]
        %v901 = vld [vmem:[#allocation2 + $0x50] sm:$0xff]
        %v902 = vld [vmem:[#allocation2 + $0x58] sm:$0xff]
        %v903 = vld [vmem:[#allocation2 + $0x60] sm:$0xff]
        %v904 = vld [vmem:[#allocation2 + $0x68] sm:$0xff]
        %v905 = vld [vmem:[#allocation2 + $0x70] sm:$0xff]
        %v906 = vld [vmem:[#allocation2 + $0x78] sm:$0xff]
        %v907 = vld [vmem:[#allocation2 + $0x80] sm:$0xff]
        %v908 = vld [vmem:[#allocation2 + $0x88] sm:$0xff]
        %v909 = vld [vmem:[#allocation2 + $0x90] sm:$0xff]
        %v910 = vld [vmem:[#allocation2 + $0x98] sm:$0xff]
        %v911 = vld [vmem:[#allocation2 + $0xa0] sm:$0xff]
        %v912 = vld [vmem:[#allocation2 + $0xa8] sm:$0xff]
        %v913 = vld [vmem:[#allocation2 + $0xb0] sm:$0xff]
        %v914 = vld [vmem:[#allocation2 + $0xb8] sm:$0xff]
        %v915 = vld [vmem:[#allocation2 + $0xc0] sm:$0xff]
        %v916 = vld [vmem:[#allocation2 + $0xc8] sm:$0xff]
        %v917 = vld [vmem:[#allocation2 + $0xd0] sm:$0xff]
        %v918 = vld [vmem:[#allocation2 + $0xd8] sm:$0xff]
        %v919 = vld [vmem:[#allocation2 + $0xe0] sm:$0xff]
        %v920 = vld [vmem:[#allocation2 + $0xe8] sm:$0xff]
        %v921 = vld [vmem:[#allocation2 + $0xf0] sm:$0xff]
        %v922 = vld [vmem:[#allocation2 + $0xf8] sm:$0xff]
        %vm923 = vcmp.gt.f32.partialorder %v891, 0.0
        %vm924 = vcmp.gt.f32.partialorder %v892, 0.0
        %vm925 = vcmp.gt.f32.partialorder %v893, 0.0
        %vm926 = vcmp.gt.f32.partialorder %v894, 0.0
        %vm927 = vcmp.gt.f32.partialorder %v895, 0.0
        %vm928 = vcmp.gt.f32.partialorder %v896, 0.0
        %vm929 = vcmp.gt.f32.partialorder %v897, 0.0
        %vm930 = vcmp.gt.f32.partialorder %v898, 0.0
        %vm931 = vcmp.gt.f32.partialorder %v899, 0.0
        %vm932 = vcmp.gt.f32.partialorder %v900, 0.0
        %vm933 = vcmp.gt.f32.partialorder %v901, 0.0
        %vm934 = vcmp.gt.f32.partialorder %v902, 0.0
        %vm935 = vcmp.gt.f32.partialorder %v903, 0.0
        %vm936 = vcmp.gt.f32.partialorder %v904, 0.0
        %vm937 = vcmp.gt.f32.partialorder %v905, 0.0
        %vm938 = vcmp.gt.f32.partialorder %v906, 0.0
        %vm939 = vcmp.gt.f32.partialorder %v907, 0.0
        %vm940 = vcmp.gt.f32.partialorder %v908, 0.0
        %vm941 = vcmp.gt.f32.partialorder %v909, 0.0
        %vm942 = vcmp.gt.f32.partialorder %v910, 0.0
        %vm943 = vcmp.gt.f32.partialorder %v911, 0.0
        %vm944 = vcmp.gt.f32.partialorder %v912, 0.0
        %vm945 = vcmp.gt.f32.partialorder %v913, 0.0
        %vm946 = vcmp.gt.f32.partialorder %v914, 0.0
        %vm947 = vcmp.gt.f32.partialorder %v915, 0.0
        %vm948 = vcmp.gt.f32.partialorder %v916, 0.0
        %vm949 = vcmp.gt.f32.partialorder %v917, 0.0
        %vm950 = vcmp.gt.f32.partialorder %v918, 0.0
        %vm951 = vcmp.gt.f32.partialorder %v919, 0.0
        %vm952 = vcmp.gt.f32.partialorder %v920, 0.0
        %vm953 = vcmp.gt.f32.partialorder %v921, 0.0
        %vm954 = vcmp.gt.f32.partialorder %v922, 0.0
        %v955 = vmin.f32 %v891, 0.0
        %v956 = vmin.f32 %v892, 0.0
        %v957 = vmin.f32 %v893, 0.0
        %v958 = vmin.f32 %v894, 0.0
        %v959 = vmin.f32 %v895, 0.0
        %v960 = vmin.f32 %v896, 0.0
        %v961 = vmin.f32 %v897, 0.0
        %v962 = vmin.f32 %v898, 0.0
        %v963 = vmin.f32 %v899, 0.0
        %v964 = vmin.f32 %v900, 0.0
        %v965 = vmin.f32 %v901, 0.0
        %v966 = vmin.f32 %v902, 0.0
        %v967 = vmin.f32 %v903, 0.0
        %v968 = vmin.f32 %v904, 0.0
        %v969 = vmin.f32 %v905, 0.0
        %v970 = vmin.f32 %v906, 0.0
        %v971 = vmin.f32 %v907, 0.0
        %v972 = vmin.f32 %v908, 0.0
        %v973 = vmin.f32 %v909, 0.0
        %v974 = vmin.f32 %v910, 0.0
        %v975 = vmin.f32 %v911, 0.0
        %v976 = vmin.f32 %v912, 0.0
        %v977 = vmin.f32 %v913, 0.0
        %v978 = vmin.f32 %v914, 0.0
        %v979 = vmin.f32 %v915, 0.0
        %v980 = vmin.f32 %v916, 0.0
        %v981 = vmin.f32 %v917, 0.0
        %v982 = vmin.f32 %v918, 0.0
        %v983 = vmin.f32 %v919, 0.0
        %v984 = vmin.f32 %v920, 0.0
        %v985 = vmin.f32 %v921, 0.0
        %v986 = vmin.f32 %v922, 0.0
        %v987 = vmul.f32 %v955, 1.442695
        %v988 = vpow.pop %v987
        %v989 = vmul.f32 %v956, 1.442695
        %v990 = vpow.pop %v989
        %v991 = vmul.f32 %v957, 1.442695
        %v992 = vpow.pop %v991
        %v993 = vmul.f32 %v958, 1.442695
        %v994 = vpow.pop %v993
        %v995 = vmul.f32 %v959, 1.442695
        %v996 = vpow.pop %v995
        %v997 = vmul.f32 %v960, 1.442695
        %v998 = vpow.pop %v997
        %v999 = vmul.f32 %v961, 1.442695
        %v1000 = vpow.pop %v999
        %v1001 = vmul.f32 %v962, 1.442695
        %v1002 = vpow.pop %v1001
        %v1003 = vmul.f32 %v963, 1.442695
        %v1004 = vpow.pop %v1003
        %v1005 = vmul.f32 %v964, 1.442695
        %v1006 = vpow.pop %v1005
        %v1007 = vmul.f32 %v965, 1.442695
        %v1008 = vpow.pop %v1007
        %v1009 = vmul.f32 %v966, 1.442695
        %v1010 = vpow.pop %v1009
        %v1011 = vmul.f32 %v967, 1.442695
        %v1012 = vpow.pop %v1011
        %v1013 = vmul.f32 %v968, 1.442695
        %v1014 = vpow.pop %v1013
        %v1015 = vmul.f32 %v969, 1.442695
        %v1016 = vpow.pop %v1015
        %v1017 = vmul.f32 %v970, 1.442695
        %v1018 = vpow.pop %v1017
        %v1019 = vmul.f32 %v971, 1.442695
        %v1020 = vpow.pop %v1019
        %v1021 = vmul.f32 %v972, 1.442695
        %v1022 = vpow.pop %v1021
        %v1023 = vmul.f32 %v973, 1.442695
        %v1024 = vpow.pop %v1023
        %v1025 = vmul.f32 %v974, 1.442695
        %v1026 = vpow.pop %v1025
        %v1027 = vmul.f32 %v975, 1.442695
        %v1028 = vpow.pop %v1027
        %v1029 = vmul.f32 %v976, 1.442695
        %v1030 = vpow.pop %v1029
        %v1031 = vmul.f32 %v977, 1.442695
        %v1032 = vpow.pop %v1031
        %v1033 = vmul.f32 %v978, 1.442695
        %v1034 = vpow.pop %v1033
        %v1035 = vmul.f32 %v979, 1.442695
        %v1036 = vpow.pop %v1035
        %v1037 = vmul.f32 %v980, 1.442695
        %v1038 = vpow.pop %v1037
        %v1039 = vmul.f32 %v981, 1.442695
        %v1040 = vpow.pop %v1039
        %v1041 = vmul.f32 %v982, 1.442695
        %v1042 = vpow.pop %v1041
        %v1043 = vmul.f32 %v983, 1.442695
        %v1044 = vpow.pop %v1043
        %v1045 = vmul.f32 %v984, 1.442695
        %v1046 = vpow.pop %v1045
        %v1047 = vmul.f32 %v985, 1.442695
        %v1048 = vpow.pop %v1047
        %v1049 = vmul.f32 %v986, 1.442695
        %v1050 = vpow.pop %v1049
        %v1051 = vsub.f32 %v988, 1.0
        %v1052 = vsub.f32 %v990, 1.0
        %v1053 = vsub.f32 %v992, 1.0
        %v1054 = vsub.f32 %v994, 1.0
        %v1055 = vsub.f32 %v996, 1.0
        %v1056 = vsub.f32 %v998, 1.0
        %v1057 = vsub.f32 %v1000, 1.0
        %v1058 = vsub.f32 %v1002, 1.0
        %v1059 = vsub.f32 %v1004, 1.0
        %v1060 = vsub.f32 %v1006, 1.0
        %v1061 = vsub.f32 %v1008, 1.0
        %v1062 = vsub.f32 %v1010, 1.0
        %v1063 = vsub.f32 %v1012, 1.0
        %v1064 = vsub.f32 %v1014, 1.0
        %v1065 = vsub.f32 %v1016, 1.0
        %v1066 = vsub.f32 %v1018, 1.0
        %v1067 = vsub.f32 %v1020, 1.0
        %v1068 = vsub.f32 %v1022, 1.0
        %v1069 = vsub.f32 %v1024, 1.0
        %v1070 = vsub.f32 %v1026, 1.0
        %v1071 = vsub.f32 %v1028, 1.0
        %v1072 = vsub.f32 %v1030, 1.0
        %v1073 = vsub.f32 %v1032, 1.0
        %v1074 = vsub.f32 %v1034, 1.0
        %v1075 = vsub.f32 %v1036, 1.0
        %v1076 = vsub.f32 %v1038, 1.0
        %v1077 = vsub.f32 %v1040, 1.0
        %v1078 = vsub.f32 %v1042, 1.0
        %v1079 = vsub.f32 %v1044, 1.0
        %v1080 = vsub.f32 %v1046, 1.0
        %v1081 = vsub.f32 %v1048, 1.0
        %v1082 = vsub.f32 %v1050, 1.0
        %v1083 = vsel %vm923, %v891, %v1051
        %v1084 = vsel %vm924, %v892, %v1052
        %v1085 = vsel %vm925, %v893, %v1053
        %v1086 = vsel %vm926, %v894, %v1054
        %v1087 = vsel %vm927, %v895, %v1055
        %v1088 = vsel %vm928, %v896, %v1056
        %v1089 = vsel %vm929, %v897, %v1057
        %v1090 = vsel %vm930, %v898, %v1058
        %v1091 = vsel %vm931, %v899, %v1059
        %v1092 = vsel %vm932, %v900, %v1060
        %v1093 = vsel %vm933, %v901, %v1061
        %v1094 = vsel %vm934, %v902, %v1062
        %v1095 = vsel %vm935, %v903, %v1063
        %v1096 = vsel %vm936, %v904, %v1064
        %v1097 = vsel %vm937, %v905, %v1065
        %v1098 = vsel %vm938, %v906, %v1066
        %v1099 = vsel %vm939, %v907, %v1067
        %v1100 = vsel %vm940, %v908, %v1068
        %v1101 = vsel %vm941, %v909, %v1069
        %v1102 = vsel %vm942, %v910, %v1070
        %v1103 = vsel %vm943, %v911, %v1071
        %v1104 = vsel %vm944, %v912, %v1072
        %v1105 = vsel %vm945, %v913, %v1073
        %v1106 = vsel %vm946, %v914, %v1074
        %v1107 = vsel %vm947, %v915, %v1075
        %v1108 = vsel %vm948, %v916, %v1076
        %v1109 = vsel %vm949, %v917, %v1077
        %v1110 = vsel %vm950, %v918, %v1078
        %v1111 = vsel %vm951, %v919, %v1079
        %v1112 = vsel %vm952, %v920, %v1080
        %v1113 = vsel %vm953, %v921, %v1081
        %v1114 = vsel %vm954, %v922, %v1082
        %v1115 = vpack.c.bf16 %v1084, %v1083
        %v1116 = vpack.c.bf16 %v1086, %v1085
        %v1117 = vpack.c.bf16 %v1088, %v1087
        %v1118 = vpack.c.bf16 %v1090, %v1089
        %v1119 = vpack.c.bf16 %v1092, %v1091
        %v1120 = vpack.c.bf16 %v1094, %v1093
        %v1121 = vpack.c.bf16 %v1096, %v1095
        %v1122 = vpack.c.bf16 %v1098, %v1097
        %v1123 = vpack.c.bf16 %v1100, %v1099
        %v1124 = vpack.c.bf16 %v1102, %v1101
        %v1125 = vpack.c.bf16 %v1104, %v1103
        %v1126 = vpack.c.bf16 %v1106, %v1105
        %v1127 = vpack.c.bf16 %v1108, %v1107
        %v1128 = vpack.c.bf16 %v1110, %v1109
        %v1129 = vpack.c.bf16 %v1112, %v1111
        %v1130 = vpack.c.bf16 %v1114, %v1113
        %v1147 = vunpack.c.l.b16 %v1115
        %v1148 = vunpack.c.h.b16 %v1115
        %v1149 = vunpack.c.l.b16 %v1116
        %v1150 = vunpack.c.h.b16 %v1116
        %v1151 = vunpack.c.l.b16 %v1117
        %v1152 = vunpack.c.h.b16 %v1117
        %v1153 = vunpack.c.l.b16 %v1118
        %v1154 = vunpack.c.h.b16 %v1118
        %v1155 = vunpack.c.l.b16 %v1119
        %v1156 = vunpack.c.h.b16 %v1119
        %v1157 = vunpack.c.l.b16 %v1120
        %v1158 = vunpack.c.h.b16 %v1120
        %v1159 = vunpack.c.l.b16 %v1121
        %v1160 = vunpack.c.h.b16 %v1121
        %v1161 = vunpack.c.l.b16 %v1122
        %v1162 = vunpack.c.h.b16 %v1122
        %v1163 = vunpack.c.l.b16 %v1123
        %v1164 = vunpack.c.h.b16 %v1123
        %v1165 = vunpack.c.l.b16 %v1124
        %v1166 = vunpack.c.h.b16 %v1124
        %v1167 = vunpack.c.l.b16 %v1125
        %v1168 = vunpack.c.h.b16 %v1125
        %v1169 = vunpack.c.l.b16 %v1126
        %v1170 = vunpack.c.h.b16 %v1126
        %v1171 = vunpack.c.l.b16 %v1127
        %v1172 = vunpack.c.h.b16 %v1127
        %v1173 = vunpack.c.l.b16 %v1128
        %v1174 = vunpack.c.h.b16 %v1128
        %v1175 = vunpack.c.l.b16 %v1129
        %v1176 = vunpack.c.h.b16 %v1129
        %v1177 = vunpack.c.l.b16 %v1130
        %v1178 = vunpack.c.h.b16 %v1130
        %v1179 = vpack.c.b16 %v1147, %v1147
        %v1180 = vpack.c.b16 %v1148, %v1148
        %v1181 = vpack.c.b16 %v1149, %v1149
        %v1182 = vpack.c.b16 %v1150, %v1150
        %v1183 = vpack.c.b16 %v1151, %v1151
        %v1184 = vpack.c.b16 %v1152, %v1152
        %v1185 = vpack.c.b16 %v1153, %v1153
        %v1186 = vpack.c.b16 %v1154, %v1154
        %v1187 = vpack.c.b16 %v1155, %v1155
        %v1188 = vpack.c.b16 %v1156, %v1156
        %v1189 = vpack.c.b16 %v1157, %v1157
        %v1190 = vpack.c.b16 %v1158, %v1158
        %v1191 = vpack.c.b16 %v1159, %v1159
        %v1192 = vpack.c.b16 %v1160, %v1160
        %v1193 = vpack.c.b16 %v1161, %v1161
        %v1194 = vpack.c.b16 %v1162, %v1162
        %v1195 = vpack.c.b16 %v1163, %v1163
        %v1196 = vpack.c.b16 %v1164, %v1164
        %v1197 = vpack.c.b16 %v1165, %v1165
        %v1198 = vpack.c.b16 %v1166, %v1166
        %v1199 = vpack.c.b16 %v1167, %v1167
        %v1200 = vpack.c.b16 %v1168, %v1168
        %v1201 = vpack.c.b16 %v1169, %v1169
        %v1202 = vpack.c.b16 %v1170, %v1170
        %v1203 = vpack.c.b16 %v1171, %v1171
        %v1204 = vpack.c.b16 %v1172, %v1172
        %v1205 = vpack.c.b16 %v1173, %v1173
        %v1206 = vpack.c.b16 %v1174, %v1174
        %v1207 = vpack.c.b16 %v1175, %v1175
        %v1208 = vpack.c.b16 %v1176, %v1176
        %v1209 = vpack.c.b16 %v1177, %v1177
        %v1210 = vpack.c.b16 %v1178, %v1178
        %1243 = vst [vmem:[%s265] sm:$0xf] %v1179
        %1244 = vst [vmem:[%s265 + $0x4] sm:$0xf] %v1180
        %1245 = vst [vmem:[%s265 + $0x8] sm:$0xf] %v1181
        %1246 = vst [vmem:[%s265 + $0xc] sm:$0xf] %v1182
        %1247 = vst [vmem:[%s265 + $0x10] sm:$0xf] %v1183
        %1248 = vst [vmem:[%s265 + $0x14] sm:$0xf] %v1184
        %1249 = vst [vmem:[%s265 + $0x18] sm:$0xf] %v1185
        %1250 = vst [vmem:[%s265 + $0x1c] sm:$0xf] %v1186
        %1251 = vst [vmem:[%s265 + $0x20] sm:$0xf] %v1187
        %1252 = vst [vmem:[%s265 + $0x24] sm:$0xf] %v1188
        %1253 = vst [vmem:[%s265 + $0x28] sm:$0xf] %v1189
        %1254 = vst [vmem:[%s265 + $0x2c] sm:$0xf] %v1190
        %1255 = vst [vmem:[%s265 + $0x30] sm:$0xf] %v1191
        %1256 = vst [vmem:[%s265 + $0x34] sm:$0xf] %v1192
        %1257 = vst [vmem:[%s265 + $0x38] sm:$0xf] %v1193
        %1258 = vst [vmem:[%s265 + $0x3c] sm:$0xf] %v1194
        %1259 = vst [vmem:[%s265 + $0x40] sm:$0xf] %v1195
        %1260 = vst [vmem:[%s265 + $0x44] sm:$0xf] %v1196
        %1261 = vst [vmem:[%s265 + $0x48] sm:$0xf] %v1197
        %1262 = vst [vmem:[%s265 + $0x4c] sm:$0xf] %v1198
        %1263 = vst [vmem:[%s265 + $0x50] sm:$0xf] %v1199
        %1264 = vst [vmem:[%s265 + $0x54] sm:$0xf] %v1200
        %1265 = vst [vmem:[%s265 + $0x58] sm:$0xf] %v1201
        %1266 = vst [vmem:[%s265 + $0x5c] sm:$0xf] %v1202
        %1267 = vst [vmem:[%s265 + $0x60] sm:$0xf] %v1203
        %1268 = vst [vmem:[%s265 + $0x64] sm:$0xf] %v1204
        %1269 = vst [vmem:[%s265 + $0x68] sm:$0xf] %v1205
        %1270 = vst [vmem:[%s265 + $0x6c] sm:$0xf] %v1206
        %1271 = vst [vmem:[%s265 + $0x70] sm:$0xf] %v1207
        %1272 = vst [vmem:[%s265 + $0x74] sm:$0xf] %v1208
        %1273 = vst [vmem:[%s265 + $0x78] sm:$0xf] %v1209
        %1274 = vst [vmem:[%s265 + $0x7c] sm:$0xf] %v1210
      $region40: #{forward.8} parent=31 // pred_fallthru
        _
      %s1275 = smul.u32 32, %s19
      %p1276 = scmp.lt.s32.totalorder %s1275, 63
      %s1277 = scalar_select %p1276, %s1275, 63
      %p1278 = scmp.lt.s32.totalorder %s20, 0
      %s1279 = scalar_select %p1278, %s20, 0
      %s1280 = sadd.s32 %s1279, %s1277
      %s1281 = smul.addr %s1280, 4
      %s1282 = scalar_lea.vmem %s3, %s1281
      // Predicated region
      $region41: #{forward.8} parent=31 // pred_check
        %p1283 = pneg %p135
      $region42: #{forward.8} parent=31 // pred_check_branch
        %1285 = sbr.rel (%p1283) target = $region44
      $region43: #{forward.8} parent=31 // pred_region
        %s1286 = smul.u32 32, %s19
      $region44: #{forward.8} parent=31 // pred_fallthru
        _
    $region32: #{forward.8} parent=5 // pred_fallthru
      _
    %p1287 = scmp.le.s32.totalorder 2, %s9
    // Predicated region
    $region45: #{forward.8} parent=5 // pred_check
      %p1288 = pneg %p1287
    $region46: #{forward.8} parent=5 // pred_check_branch
      %1290 = sbr.rel (%p1288) target = $region48
    $region47: #{forward.8} parent=5 // pred_region
      %s1291 = ssub.s32 %s9, 2
      // Predicated region
      $region49: #{forward.8} parent=47 // pred_check
        %p1292 = pneg %p141
      $region50: #{forward.8} parent=47 // pred_check_branch
        %1294 = sbr.rel (%p1292) target = $region52
      $region51: #{forward.8} parent=47 // pred_region
        %s1295 = smul.u32 32, %s22
        %p1296 = scmp.lt.s32.totalorder %s1295, 63
        %s1297 = scalar_select %p1296, %s1295, 63
        %p1298 = scmp.lt.s32.totalorder %s23, 0
        %s1299 = scalar_select %p1298, %s23, 0
        %s1300 = sadd.s32 %s1299, %s1297
        %s1301 = smul.addr %s1300, 4
        %s1302 = scalar_lea.vmem %s3, %s1301
      $region52: #{forward.8} parent=47 // pred_fallthru
        _
    $region48: #{forward.8} parent=5 // pred_fallthru
      _
  $region6: #{forward.8} parent=0 // loop_footer
    %s13 = sadd.s32 1, %s9
  $region7: #{forward.8} parent=0 // loop_footer_branch
    %8 = sbr.rel target = $region3
  $region8: #{forward.8} parent=0 // loop_exit
    _

// kernel: forward.9
$region0: #{forward.9}
  #allocation0 [shape = 'u32[]', space=smem, size = 0x4, offset = 0x4, fixed_abs, tag = 'smem constant byte address 0x4 - core index']
  #allocation1 [shape = 'u32[144,128]{1,0:T(1,128)}', space=vmem, size = 0x12000, scoped, tag = 'internal scratch']
  #allocation2 [shape = 'f32[256,128]{1,0:T(8,128)}', space=vmem, size = 0x20000, scoped, tag = 'scratch operand']
  %s0 = inlined_call_operand.vmem [shape: bf16[512,128], index: 0, kind: input, shape index: {}]
  %s1 = inlined_call_operand.vmem [shape: bf16[128,128], index: 1, kind: input, shape index: {}]
  %s2 = inlined_call_operand.vmem [shape: f32[1,128], index: 2, kind: input, shape index: {}]
  %s3 = inlined_call_operand.vmem [shape: bf16[512,128], index: 3, kind: input, shape index: {}]
  %s4 = inlined_call_operand.vmem [shape: bf16[512,128], index: 4, kind: output, shape index: {}]
  %s5 = sld [smem:[#allocation0]]
  $region57: #{forward.9} parent=0
    _
  %s7 = ssub.s32 1, %s5
  %s8 = scalar_select 0, %s7, %s5
  loop: start=0, step=1, limit=4
  $region2: #{forward.9} parent=0 // loop_pre_header
    _
  $region3: #{forward.9} parent=0 // loop_header
    %s10 = sphi 0, %s14
    %p11 = scmp.ge.s32.totalorder %s10, 4
    %s17 = sphi 0, %s36
    %s18 = sphi 0, %s32
    %s19 = sphi 0, %s28
    %s20 = sphi 0, %s17
    %s21 = sphi 0, %s18
    %s22 = sphi 0, %s19
    %s23 = sphi 0, %s20
    %s24 = sphi 0, %s21
    %s25 = sphi 0, %s22
    %s41 = sphi 0, %s43
    %s44 = sphi 0, %s41
    %s45 = sphi 0, %s44
    %s61 = sphi 0, %s45
    %s69 = sphi 0, %s71
    %s72 = sphi 0, %s69
    %s73 = sphi 0, %s72
    %s89 = sphi 0, %s73
    %s95 = sphi 0, %s97
    %s98 = sphi 0, %s95
    %s99 = sphi 0, %s98
    %s115 = sphi 0, %s99
    %s123 = sphi 0, %s125
    %s126 = sphi 0, %s123
    %s127 = sphi 0, %s126
    %s143 = sphi 0, %s127
    %s151 = sphi 0, %s153
    %s154 = sphi 0, %s151
    %s155 = sphi 0, %s154
    %s171 = sphi 0, %s155
  $region4: #{forward.9} parent=0 // loop_header_branch
    %13 = sbr.rel (%p11) target = $region8
  $region5: #{forward.9} parent=0 // loop_body
    %s15 = ssub.s32 %s10, 1
    %s16 = ssub.s32 %s10, 2
    %s26 = sadd.s32 1, %s19
    %p27 = scmp.ge.s32.totalorder %s26, 1
    %s28 = scalar_select %p27, 0, %s26
    %s29 = sadd.s32 1, %s18
    %s30 = scalar_select %p27, %s29, %s18
    %p31 = scmp.ge.s32.totalorder %s30, 1
    %s32 = scalar_select %p31, 0, %s30
    %s33 = sadd.s32 1, %s17
    %s34 = scalar_select %p31, %s33, %s17
    %p35 = scmp.ge.s32.totalorder %s34, 2
    %s36 = scalar_select %p35, 0, %s34
    %s37 = ssub.s32 %s17, %s36
    %s38 = ssub.s32 %s19, %s28
    %s39 = sor.u32 %s37, %s38
    %p40 = scmp.eq.s32.totalorder %s39, 0
    %s42 = sadd.s32 %s41, 1
    %s43 = scalar_select %p40, %s41, %s42
    %p46 = pneg %p40
    %p47 = scmp.eq.s32.totalorder %s10, 1
    %p48 = por %p46, %p47
    %p49 = scmp.ne.s32.totalorder %s41, %s44
    %p50 = scmp.eq.s32.totalorder %s10, 0
    %p51 = por %p49, %p50
    %p52 = scmp.ne.s32.totalorder %s41, %s44
    %p53 = scmp.eq.s32.totalorder %s15, 1
    %p54 = por %p52, %p53
    %p55 = scmp.ne.s32.totalorder %s44, %s45
    %p56 = scmp.eq.s32.totalorder %s15, 0
    %p57 = por %p55, %p56
    %p58 = scmp.ne.s32.totalorder %s44, %s45
    %p59 = scmp.eq.s32.totalorder %s16, 1
    %p60 = por %p58, %p59
    %p62 = scmp.ne.s32.totalorder %s45, %s61
    %p63 = scmp.eq.s32.totalorder %s16, 0
    %p64 = por %p62, %p63
    %s65 = ssub.s32 %s19, %s28
    %s66 = ssub.s32 %s18, %s32
    %s67 = sor.u32 %s65, %s66
    %p68 = scmp.eq.s32.totalorder %s67, 0
    %s70 = sadd.s32 %s69, 1
    %s71 = scalar_select %p68, %s69, %s70
    %p74 = pneg %p68
    %p75 = scmp.eq.s32.totalorder %s10, 1
    %p76 = por %p74, %p75
    %p77 = scmp.ne.s32.totalorder %s69, %s72
    %p78 = scmp.eq.s32.totalorder %s10, 0
    %p79 = por %p77, %p78
    %p80 = scmp.ne.s32.totalorder %s69, %s72
    %p81 = scmp.eq.s32.totalorder %s15, 1
    %p82 = por %p80, %p81
    %p83 = scmp.ne.s32.totalorder %s72, %s73
    %p84 = scmp.eq.s32.totalorder %s15, 0
    %p85 = por %p83, %p84
    %p86 = scmp.ne.s32.totalorder %s72, %s73
    %p87 = scmp.eq.s32.totalorder %s16, 1
    %p88 = por %p86, %p87
    %p90 = scmp.ne.s32.totalorder %s73, %s89
    %p91 = scmp.eq.s32.totalorder %s16, 0
    %p92 = por %p90, %p91
    %s93 = ssub.s32 %s18, %s32
    %p94 = scmp.eq.s32.totalorder %s93, 0
    %s96 = sadd.s32 %s95, 1
    %s97 = scalar_select %p94, %s95, %s96
    %p100 = pneg %p94
    %p101 = scmp.eq.s32.totalorder %s10, 1
    %p102 = por %p100, %p101
    %p103 = scmp.ne.s32.totalorder %s95, %s98
    %p104 = scmp.eq.s32.totalorder %s10, 0
    %p105 = por %p103, %p104
    %p106 = scmp.ne.s32.totalorder %s95, %s98
    %p107 = scmp.eq.s32.totalorder %s15, 1
    %p108 = por %p106, %p107
    %p109 = scmp.ne.s32.totalorder %s98, %s99
    %p110 = scmp.eq.s32.totalorder %s15, 0
    %p111 = por %p109, %p110
    %p112 = scmp.ne.s32.totalorder %s98, %s99
    %p113 = scmp.eq.s32.totalorder %s16, 1
    %p114 = por %p112, %p113
    %p116 = scmp.ne.s32.totalorder %s99, %s115
    %p117 = scmp.eq.s32.totalorder %s16, 0
    %p118 = por %p116, %p117
    %s119 = ssub.s32 %s17, %s36
    %s120 = ssub.s32 %s18, %s32
    %s121 = sor.u32 %s119, %s120
    %p122 = scmp.eq.s32.totalorder %s121, 0
    %s124 = sadd.s32 %s123, 1
    %s125 = scalar_select %p122, %s123, %s124
    %p128 = pneg %p122
    %p129 = scmp.eq.s32.totalorder %s10, 1
    %p130 = por %p128, %p129
    %p131 = scmp.ne.s32.totalorder %s123, %s126
    %p132 = scmp.eq.s32.totalorder %s10, 0
    %p133 = por %p131, %p132
    %p134 = scmp.ne.s32.totalorder %s123, %s126
    %p135 = scmp.eq.s32.totalorder %s15, 1
    %p136 = por %p134, %p135
    %p137 = scmp.ne.s32.totalorder %s126, %s127
    %p138 = scmp.eq.s32.totalorder %s15, 0
    %p139 = por %p137, %p138
    %p140 = scmp.ne.s32.totalorder %s126, %s127
    %p141 = scmp.eq.s32.totalorder %s16, 1
    %p142 = por %p140, %p141
    %p144 = scmp.ne.s32.totalorder %s127, %s143
    %p145 = scmp.eq.s32.totalorder %s16, 0
    %p146 = por %p144, %p145
    %s147 = ssub.s32 %s17, %s36
    %s148 = ssub.s32 %s18, %s32
    %s149 = sor.u32 %s147, %s148
    %p150 = scmp.eq.s32.totalorder %s149, 0
    %s152 = sadd.s32 %s151, 1
    %s153 = scalar_select %p150, %s151, %s152
    %p156 = pneg %p150
    %p157 = scmp.eq.s32.totalorder %s10, 1
    %p158 = por %p156, %p157
    %p159 = scmp.ne.s32.totalorder %s151, %s154
    %p160 = scmp.eq.s32.totalorder %s10, 0
    %p161 = por %p159, %p160
    %p162 = scmp.ne.s32.totalorder %s151, %s154
    %p163 = scmp.eq.s32.totalorder %s15, 1
    %p164 = por %p162, %p163
    %p165 = scmp.ne.s32.totalorder %s154, %s155
    %p166 = scmp.eq.s32.totalorder %s15, 0
    %p167 = por %p165, %p166
    %p168 = scmp.ne.s32.totalorder %s154, %s155
    %p169 = scmp.eq.s32.totalorder %s16, 1
    %p170 = por %p168, %p169
    %p172 = scmp.ne.s32.totalorder %s155, %s171
    %p173 = scmp.eq.s32.totalorder %s16, 0
    %p174 = por %p172, %p173
    %p175 = scmp.le.s32.totalorder 1, %s10
    %p176 = scmp.lt.s32.totalorder %s10, 3
    %p177 = pnand %p175, %p176
    %p178 = pneg %p177
    // Predicated region
    $region9: #{forward.9} parent=5 // pred_check
      _
    $region10: #{forward.9} parent=5 // pred_check_branch
      %180 = sbr.rel (%p177) target = $region12
    $region11: #{forward.9} parent=5 // pred_region
      %s181 = ssub.s32 %s10, 1
      // Predicated region
      $region13: #{forward.9} parent=11 // pred_check
        %p182 = pneg %p85
      $region14: #{forward.9} parent=11 // pred_check_branch
        %184 = sbr.rel (%p182) target = $region16
      $region15: #{forward.9} parent=11 // pred_region
        %s185 = smul.u32 16, %s22
        %p186 = scmp.lt.s32.totalorder %s185, 15
        %s187 = scalar_select %p186, %s185, 15
        %p188 = scmp.lt.s32.totalorder %s21, 0
        %s189 = scalar_select %p188, %s21, 0
        %s190 = sadd.s32 %s189, %s187
        %s191 = smul.addr %s190, 4
        %s192 = scalar_lea.vmem %s1, %s191
        %s193 = smul.u32 16, %s22
      $region16: #{forward.9} parent=11 // pred_fallthru
        _
      // Predicated region
      $region17: #{forward.9} parent=11 // pred_check
        %p194 = pneg %p111
      $region18: #{forward.9} parent=11 // pred_check_branch
        %196 = sbr.rel (%p194) target = $region20
      $region19: #{forward.9} parent=11 // pred_region
        %p197 = scmp.lt.s32.totalorder %s21, 0
        %s198 = scalar_select %p197, %s21, 0
        %s199 = scalar_lea.vmem %s2, %s198
      $region20: #{forward.9} parent=11 // pred_fallthru
        _
    $region12: #{forward.9} parent=5 // pred_fallthru
      _
    %p200 = scmp.lt.s32.totalorder %s10, 2
    // Predicated region
    $region21: #{forward.9} parent=5 // pred_check
      %p201 = pneg %p200
    $region22: #{forward.9} parent=5 // pred_check_branch
      %203 = sbr.rel (%p201) target = $region24
    $region23: #{forward.9} parent=5 // pred_region
      // Predicated region
      $region25: #{forward.9} parent=23 // pred_check
        %p204 = pneg %p51
      $region26: #{forward.9} parent=23 // pred_check_branch
        %206 = sbr.rel (%p204) target = $region28
      $region27: #{forward.9} parent=23 // pred_region
        %s207 = smul.u32 32, %s17
        %p208 = scmp.lt.s32.totalorder %s207, 63
        %s209 = scalar_select %p208, %s207, 63
        %p210 = scmp.lt.s32.totalorder %s19, 0
        %s211 = scalar_select %p210, %s19, 0
        %s212 = sadd.s32 %s211, %s209
        %s213 = smul.addr %s212, 4
        %s214 = scalar_lea.vmem %s0, %s213
        %s215 = smul.u32 32, %s17
      $region28: #{forward.9} parent=23 // pred_fallthru
        _
      // Predicated region
      $region29: #{forward.9} parent=23 // pred_check
        %p216 = pneg %p133
      $region30: #{forward.9} parent=23 // pred_check_branch
        %218 = sbr.rel (%p216) target = $region32
      $region31: #{forward.9} parent=23 // pred_region
        %s219 = smul.u32 32, %s17
        %p220 = scmp.lt.s32.totalorder %s219, 63
        %s221 = scalar_select %p220, %s219, 63
        %p222 = scmp.lt.s32.totalorder %s18, 0
        %s223 = scalar_select %p222, %s18, 0
        %s224 = sadd.s32 %s223, %s221
        %s225 = smul.addr %s224, 4
        %s226 = scalar_lea.vmem %s3, %s225
        %s227 = smul.u32 32, %s17
      $region32: #{forward.9} parent=23 // pred_fallthru
        _
    $region24: #{forward.9} parent=5 // pred_fallthru
      _
    %p228 = scmp.le.s32.totalorder 1, %s10
    %p229 = scmp.lt.s32.totalorder %s10, 3
    %p230 = pnand %p228, %p229
    %p231 = pneg %p230
    // Predicated region
    $region33: #{forward.9} parent=5 // pred_check
      _
    $region34: #{forward.9} parent=5 // pred_check_branch
      %233 = sbr.rel (%p230) target = $region36
    $region35: #{forward.9} parent=5 // pred_region
      %s234 = ssub.s32 %s10, 1
      %s235 = smul.u32 32, %s20
      %p236 = scmp.lt.s32.totalorder %s235, 63
      %s237 = scalar_select %p236, %s235, 63
      %p238 = scmp.lt.s32.totalorder %s22, 0
      %s239 = scalar_select %p238, %s22, 0
      %s240 = sadd.s32 %s239, %s237
      %s241 = smul.addr %s240, 4
      %s242 = scalar_lea.vmem %s0, %s241
      %p243 = pneg %p57
      %p244 = pneg %p54
      %s245 = smul.u32 16, %s22
      %p246 = scmp.lt.s32.totalorder %s245, 15
      %s247 = scalar_select %p246, %s245, 15
      %p248 = scmp.lt.s32.totalorder %s21, 0
      %s249 = scalar_select %p248, %s21, 0
      %s250 = sadd.s32 %s249, %s247
      %s251 = smul.addr %s250, 4
      %s252 = scalar_lea.vmem %s1, %s251
      %p253 = pneg %p85
      %p254 = pneg %p82
      %p255 = scmp.lt.s32.totalorder %s21, 0
      %s256 = scalar_select %p255, %s21, 0
      %s257 = scalar_lea.vmem %s2, %s256
      %p258 = pneg %p111
      %p259 = pneg %p108
      %s260 = smul.u32 32, %s20
      %p261 = scmp.lt.s32.totalorder %s260, 63
      %s262 = scalar_select %p261, %s260, 63
      %p263 = scmp.lt.s32.totalorder %s21, 0
      %s264 = scalar_select %p263, %s21, 0
      %s265 = sadd.s32 %s264, %s262
      %s266 = smul.addr %s265, 4
      %s267 = scalar_lea.vmem %s3, %s266
      %p268 = pneg %p139
      %p269 = pneg %p136
      %p270 = pneg %p167
      %p271 = pneg %p164
      %s272 = smul.u32 32, %s20
      %p273 = scmp.lt.s32.totalorder %s272, 63
      %s274 = scalar_select %p273, %s272, 63
      %p275 = scmp.lt.s32.totalorder %s21, 0
      %s276 = scalar_select %p275, %s21, 0
      %s277 = sadd.s32 %s276, %s274
      %s278 = smul.addr %s277, 4
      %s279 = scalar_lea.vmem %s4, %s278
      %s280 = smul.u32 32, %s20
      %p281 = scmp.lt.s32.totalorder %s280, 63
      %s282 = scalar_select %p281, %s280, 63
      %p283 = scmp.lt.s32.totalorder %s22, 0
      %s284 = scalar_select %p283, %s22, 0
      %s285 = sadd.s32 %s284, %s282
      %s286 = smul.addr %s285, 4
      %s287 = scalar_lea.vmem %s0, %s286
      %s288 = smul.u32 32, %s20
      %s289 = smul.u32 16, %s22
      %p290 = scmp.lt.s32.totalorder %s289, 15
      %s291 = scalar_select %p290, %s289, 15
      %p292 = scmp.lt.s32.totalorder %s21, 0
      %s293 = scalar_select %p292, %s21, 0
      %s294 = sadd.s32 %s293, %s291
      %s295 = smul.addr %s294, 4
      %s296 = scalar_lea.vmem %s1, %s295
      %s297 = smul.u32 16, %s22
      %p298 = scmp.lt.s32.totalorder %s21, 0
      %s299 = scalar_select %p298, %s21, 0
      %s300 = scalar_lea.vmem %s2, %s299
      %s301 = smul.u32 32, %s20
      %p302 = scmp.lt.s32.totalorder %s301, 63
      %s303 = scalar_select %p302, %s301, 63
      %p304 = scmp.lt.s32.totalorder %s21, 0
      %s305 = scalar_select %p304, %s21, 0
      %s306 = sadd.s32 %s305, %s303
      %s307 = smul.addr %s306, 4
      %s308 = scalar_lea.vmem %s3, %s307
      %s309 = smul.u32 32, %s20
      %s310 = smul.u32 32, %s20
      %p311 = scmp.lt.s32.totalorder %s310, 63
      %s312 = scalar_select %p311, %s310, 63
      %p313 = scmp.lt.s32.totalorder %s21, 0
      %s314 = scalar_select %p313, %s21, 0
      %s315 = sadd.s32 %s314, %s312
      %s316 = smul.addr %s315, 4
      %s317 = scalar_lea.vmem %s4, %s316
      %s318 = smul.u32 32, %s20
      %p320 = scmp.eq.s32.totalorder %s22, 0
      // Predicated region
      $region37: #{forward.9} parent=35 // pred_check
        %p321 = pneg %p320
      $region38: #{forward.9} parent=35 // pred_check_branch
        %323 = sbr.rel (%p321) target = $region40
      $region39: #{forward.9} parent=35 // pred_region
        %v324 = vld [vmem:[%s300] sm:$0x1]
        %v326 = vlaneseq
        %v327 = vshrl.u32 %v326, 7
        %v328 = vsub.s32 0, %v327
        %v329 = vrot.slane %v324, %v328
        %331 = vst [vmem:[#allocation2] sm:$0xff] %v329
        %332 = vst [vmem:[#allocation2 + $0x8] sm:$0xff] %v329
        %333 = vst [vmem:[#allocation2 + $0x10] sm:$0xff] %v329
        %334 = vst [vmem:[#allocation2 + $0x18] sm:$0xff] %v329
        %335 = vst [vmem:[#allocation2 + $0x20] sm:$0xff] %v329
        %336 = vst [vmem:[#allocation2 + $0x28] sm:$0xff] %v329
        %337 = vst [vmem:[#allocation2 + $0x30] sm:$0xff] %v329
        %338 = vst [vmem:[#allocation2 + $0x38] sm:$0xff] %v329
        %339 = vst [vmem:[#allocation2 + $0x40] sm:$0xff] %v329
        %340 = vst [vmem:[#allocation2 + $0x48] sm:$0xff] %v329
        %341 = vst [vmem:[#allocation2 + $0x50] sm:$0xff] %v329
        %342 = vst [vmem:[#allocation2 + $0x58] sm:$0xff] %v329
        %343 = vst [vmem:[#allocation2 + $0x60] sm:$0xff] %v329
        %344 = vst [vmem:[#allocation2 + $0x68] sm:$0xff] %v329
        %345 = vst [vmem:[#allocation2 + $0x70] sm:$0xff] %v329
        %346 = vst [vmem:[#allocation2 + $0x78] sm:$0xff] %v329
        %347 = vst [vmem:[#allocation2 + $0x80] sm:$0xff] %v329
        %348 = vst [vmem:[#allocation2 + $0x88] sm:$0xff] %v329
        %349 = vst [vmem:[#allocation2 + $0x90] sm:$0xff] %v329
        %350 = vst [vmem:[#allocation2 + $0x98] sm:$0xff] %v329
        %351 = vst [vmem:[#allocation2 + $0xa0] sm:$0xff] %v329
        %352 = vst [vmem:[#allocation2 + $0xa8] sm:$0xff] %v329
        %353 = vst [vmem:[#allocation2 + $0xb0] sm:$0xff] %v329
        %354 = vst [vmem:[#allocation2 + $0xb8] sm:$0xff] %v329
        %355 = vst [vmem:[#allocation2 + $0xc0] sm:$0xff] %v329
        %356 = vst [vmem:[#allocation2 + $0xc8] sm:$0xff] %v329
        %357 = vst [vmem:[#allocation2 + $0xd0] sm:$0xff] %v329
        %358 = vst [vmem:[#allocation2 + $0xd8] sm:$0xff] %v329
        %359 = vst [vmem:[#allocation2 + $0xe0] sm:$0xff] %v329
        %360 = vst [vmem:[#allocation2 + $0xe8] sm:$0xff] %v329
        %361 = vst [vmem:[#allocation2 + $0xf0] sm:$0xff] %v329
        %362 = vst [vmem:[#allocation2 + $0xf8] sm:$0xff] %v329
      $region40: #{forward.9} parent=35 // pred_fallthru
        _
      %v363 = vld [vmem:[#allocation2] sm:$0xff]
      %v364 = vld [vmem:[#allocation2 + $0x8] sm:$0xff]
      %v365 = vld [vmem:[#allocation2 + $0x10] sm:$0xff]
      %v366 = vld [vmem:[#allocation2 + $0x18] sm:$0xff]
      %v367 = vld [vmem:[#allocation2 + $0x20] sm:$0xff]
      %v368 = vld [vmem:[#allocation2 + $0x28] sm:$0xff]
      %v369 = vld [vmem:[#allocation2 + $0x30] sm:$0xff]
      %v370 = vld [vmem:[#allocation2 + $0x38] sm:$0xff]
      %v371 = vld [vmem:[#allocation2 + $0x40] sm:$0xff]
      %v372 = vld [vmem:[#allocation2 + $0x48] sm:$0xff]
      %v373 = vld [vmem:[#allocation2 + $0x50] sm:$0xff]
      %v374 = vld [vmem:[#allocation2 + $0x58] sm:$0xff]
      %v375 = vld [vmem:[#allocation2 + $0x60] sm:$0xff]
      %v376 = vld [vmem:[#allocation2 + $0x68] sm:$0xff]
      %v377 = vld [vmem:[#allocation2 + $0x70] sm:$0xff]
      %v378 = vld [vmem:[#allocation2 + $0x78] sm:$0xff]
      %v379 = vld [vmem:[#allocation2 + $0x80] sm:$0xff]
      %v380 = vld [vmem:[#allocation2 + $0x88] sm:$0xff]
      %v381 = vld [vmem:[#allocation2 + $0x90] sm:$0xff]
      %v382 = vld [vmem:[#allocation2 + $0x98] sm:$0xff]
      %v383 = vld [vmem:[#allocation2 + $0xa0] sm:$0xff]
      %v384 = vld [vmem:[#allocation2 + $0xa8] sm:$0xff]
      %v385 = vld [vmem:[#allocation2 + $0xb0] sm:$0xff]
      %v386 = vld [vmem:[#allocation2 + $0xb8] sm:$0xff]
      %v387 = vld [vmem:[#allocation2 + $0xc0] sm:$0xff]
      %v388 = vld [vmem:[#allocation2 + $0xc8] sm:$0xff]
      %v389 = vld [vmem:[#allocation2 + $0xd0] sm:$0xff]
      %v390 = vld [vmem:[#allocation2 + $0xd8] sm:$0xff]
      %v391 = vld [vmem:[#allocation2 + $0xe0] sm:$0xff]
      %v392 = vld [vmem:[#allocation2 + $0xe8] sm:$0xff]
      %v393 = vld [vmem:[#allocation2 + $0xf0] sm:$0xff]
      %v394 = vld [vmem:[#allocation2 + $0xf8] sm:$0xff]
      %v395 = vld [vmem:[%s287] sm:$0xf]
      %v396 = vld [vmem:[%s287 + $0x4] sm:$0xf]
      %v397 = vld [vmem:[%s287 + $0x8] sm:$0xf]
      %v398 = vld [vmem:[%s287 + $0xc] sm:$0xf]
      %v399 = vld [vmem:[%s287 + $0x10] sm:$0xf]
      %v400 = vld [vmem:[%s287 + $0x14] sm:$0xf]
      %v401 = vld [vmem:[%s287 + $0x18] sm:$0xf]
      %v402 = vld [vmem:[%s287 + $0x1c] sm:$0xf]
      %v403 = vld [vmem:[%s287 + $0x20] sm:$0xf]
      %v404 = vld [vmem:[%s287 + $0x24] sm:$0xf]
      %v405 = vld [vmem:[%s287 + $0x28] sm:$0xf]
      %v406 = vld [vmem:[%s287 + $0x2c] sm:$0xf]
      %v407 = vld [vmem:[%s287 + $0x30] sm:$0xf]
      %v408 = vld [vmem:[%s287 + $0x34] sm:$0xf]
      %v409 = vld [vmem:[%s287 + $0x38] sm:$0xf]
      %v410 = vld [vmem:[%s287 + $0x3c] sm:$0xf]
      %v411 = vld [vmem:[%s287 + $0x40] sm:$0xf]
      %v412 = vld [vmem:[%s287 + $0x44] sm:$0xf]
      %v413 = vld [vmem:[%s287 + $0x48] sm:$0xf]
      %v414 = vld [vmem:[%s287 + $0x4c] sm:$0xf]
      %v415 = vld [vmem:[%s287 + $0x50] sm:$0xf]
      %v416 = vld [vmem:[%s287 + $0x54] sm:$0xf]
      %v417 = vld [vmem:[%s287 + $0x58] sm:$0xf]
      %v418 = vld [vmem:[%s287 + $0x5c] sm:$0xf]
      %v419 = vld [vmem:[%s287 + $0x60] sm:$0xf]
      %v420 = vld [vmem:[%s287 + $0x64] sm:$0xf]
      %v421 = vld [vmem:[%s287 + $0x68] sm:$0xf]
      %v422 = vld [vmem:[%s287 + $0x6c] sm:$0xf]
      %v423 = vld [vmem:[%s287 + $0x70] sm:$0xf]
      %v424 = vld [vmem:[%s287 + $0x74] sm:$0xf]
      %v425 = vld [vmem:[%s287 + $0x78] sm:$0xf]
      %v426 = vld [vmem:[%s287 + $0x7c] sm:$0xf]
      %v427 = vld [vmem:[%s296] sm:$0xf]
      %v428 = vld [vmem:[%s296 + $0x4] sm:$0xf]
      %v429 = vld [vmem:[%s296 + $0x8] sm:$0xf]
      %v430 = vld [vmem:[%s296 + $0xc] sm:$0xf]
      %v431 = vld [vmem:[%s296 + $0x10] sm:$0xf]
      %v432 = vld [vmem:[%s296 + $0x14] sm:$0xf]
      %v433 = vld [vmem:[%s296 + $0x18] sm:$0xf]
      %v434 = vld [vmem:[%s296 + $0x1c] sm:$0xf]
      %v435 = vld [vmem:[%s296 + $0x20] sm:$0xf]
      %v436 = vld [vmem:[%s296 + $0x24] sm:$0xf]
      %v437 = vld [vmem:[%s296 + $0x28] sm:$0xf]
      %v438 = vld [vmem:[%s296 + $0x2c] sm:$0xf]
      %v439 = vld [vmem:[%s296 + $0x30] sm:$0xf]
      %v440 = vld [vmem:[%s296 + $0x34] sm:$0xf]
      %v441 = vld [vmem:[%s296 + $0x38] sm:$0xf]
      %v442 = vld [vmem:[%s296 + $0x3c] sm:$0xf]
      %v475 = vunpack.c.l.b16 %v395
      %v476 = vunpack.c.l.b16 %v396
      %v477 = vunpack.c.l.b16 %v397
      %v478 = vunpack.c.l.b16 %v398
      %v479 = vunpack.c.l.b16 %v399
      %v480 = vunpack.c.l.b16 %v400
      %v481 = vunpack.c.l.b16 %v401
      %v482 = vunpack.c.l.b16 %v402
      %v483 = vunpack.c.l.b16 %v403
      %v484 = vunpack.c.l.b16 %v404
      %v485 = vunpack.c.l.b16 %v405
      %v486 = vunpack.c.l.b16 %v406
      %v487 = vunpack.c.l.b16 %v407
      %v488 = vunpack.c.l.b16 %v408
      %v489 = vunpack.c.l.b16 %v409
      %v490 = vunpack.c.l.b16 %v410
      %v491 = vunpack.c.l.b16 %v411
      %v492 = vunpack.c.l.b16 %v412
      %v493 = vunpack.c.l.b16 %v413
      %v494 = vunpack.c.l.b16 %v414
      %v495 = vunpack.c.l.b16 %v415
      %v496 = vunpack.c.l.b16 %v416
      %v497 = vunpack.c.l.b16 %v417
      %v498 = vunpack.c.l.b16 %v418
      %v499 = vunpack.c.l.b16 %v419
      %v500 = vunpack.c.l.b16 %v420
      %v501 = vunpack.c.l.b16 %v421
      %v502 = vunpack.c.l.b16 %v422
      %v503 = vunpack.c.l.b16 %v423
      %v504 = vunpack.c.l.b16 %v424
      %v505 = vunpack.c.l.b16 %v425
      %v506 = vunpack.c.l.b16 %v426
      %v507 = vpack.c.b16 %v476, %v475
      %v508 = vpack.c.b16 %v478, %v477
      %v509 = vpack.c.b16 %v480, %v479
      %v510 = vpack.c.b16 %v482, %v481
      %v511 = vpack.c.b16 %v484, %v483
      %v512 = vpack.c.b16 %v486, %v485
      %v513 = vpack.c.b16 %v488, %v487
      %v514 = vpack.c.b16 %v490, %v489
      %v515 = vpack.c.b16 %v492, %v491
      %v516 = vpack.c.b16 %v494, %v493
      %v517 = vpack.c.b16 %v496, %v495
      %v518 = vpack.c.b16 %v498, %v497
      %v519 = vpack.c.b16 %v500, %v499
      %v520 = vpack.c.b16 %v502, %v501
      %v521 = vpack.c.b16 %v504, %v503
      %v522 = vpack.c.b16 %v506, %v505
      %v555 = vunpack.c.l.b16 %v427
      %v556 = vunpack.c.l.b16 %v428
      %v557 = vunpack.c.l.b16 %v429
      %v558 = vunpack.c.l.b16 %v430
      %v559 = vunpack.c.l.b16 %v431
      %v560 = vunpack.c.l.b16 %v432
      %v561 = vunpack.c.l.b16 %v433
      %v562 = vunpack.c.l.b16 %v434
      %v563 = vunpack.c.l.b16 %v435
      %v564 = vunpack.c.l.b16 %v436
      %v565 = vunpack.c.l.b16 %v437
      %v566 = vunpack.c.l.b16 %v438
      %v567 = vunpack.c.l.b16 %v439
      %v568 = vunpack.c.l.b16 %v440
      %v569 = vunpack.c.l.b16 %v441
      %v570 = vunpack.c.l.b16 %v442
      %v571 = vpack.c.b16 %v556, %v555
      %v572 = vpack.c.b16 %v558, %v557
      %v573 = vpack.c.b16 %v560, %v559
      %v574 = vpack.c.b16 %v562, %v561
      %v575 = vpack.c.b16 %v564, %v563
      %v576 = vpack.c.b16 %v566, %v565
      %v577 = vpack.c.b16 %v568, %v567
      %v578 = vpack.c.b16 %v570, %v569
      %587 = vmatprep.subr.bf16.mxu0 0
      %588 = vmatpush1.bf16.msra.mxu0 %v578
      %589 = vmatprep.subr.bf16.mxu0 0
      %590 = vmatpush1.bf16.msra.mxu0 %v577
      %591 = vmatprep.subr.bf16.mxu0 0
      %592 = vmatpush1.bf16.msra.mxu0 %v576
      %593 = vmatprep.subr.bf16.mxu0 0
      %594 = vmatpush1.bf16.msra.mxu0 %v575
      %595 = vmatprep.subr.bf16.mxu0 0
      %596 = vmatpush1.bf16.msra.mxu0 %v574
      %597 = vmatprep.subr.bf16.mxu0 0
      %598 = vmatpush1.bf16.msra.mxu0 %v573
      %599 = vmatprep.subr.bf16.mxu0 0
      %600 = vmatpush1.bf16.msra.mxu0 %v572
      %601 = vmatprep.subr.bf16.mxu0 0
      %602 = vmatpush1.bf16.msra.mxu0 %v571
      %603 = vmatprep.subr.bf16.mxu0 0
      %604 = vmatpush2.bf16.msra.mxu0 0
      %605 = vmatprep.subr.bf16.mxu0 0
      %606 = vmatpush2.bf16.msra.mxu0 0
      %607 = vmatprep.subr.bf16.mxu0 0
      %608 = vmatpush2.bf16.msra.mxu0 0
      %609 = vmatprep.subr.bf16.mxu0 0
      %610 = vmatpush2.bf16.msra.mxu0 0
      %611 = vmatprep.subr.bf16.mxu0 0
      %612 = vmatpush2.bf16.msra.mxu0 0
      %613 = vmatprep.subr.bf16.mxu0 0
      %614 = vmatpush2.bf16.msra.mxu0 0
      %615 = vmatprep.subr.bf16.mxu0 0
      %616 = vmatpush2.bf16.msra.mxu0 0
      %617 = vmatprep.subr.bf16.mxu0 0
      %618 = vmatpush2.bf16.msra.mxu0 0
      %619 = vmatprep.mubr.bf16.mxu0 0
      %620 = vmatmul.mubr.bf16.gmra.mxu0 %v507
      %v621 = vpop.f32.mrf.mxu0
      %v622 = vadd.f32 0.0, %v621
      %v623 = vpop.f32.mrf.mxu0
      %v624 = vpop.f32.mrf.mxu0
      %v625 = vadd.f32 0.0, %v624
      %v626 = vpop.f32.mrf.mxu0
      %627 = vmatprep.mubr.bf16.mxu0 0
      %628 = vmatmul.mubr.bf16.gmra.mxu0 %v508
      %v629 = vpop.f32.mrf.mxu0
      %v630 = vadd.f32 0.0, %v629
      %v631 = vpop.f32.mrf.mxu0
      %v632 = vpop.f32.mrf.mxu0
      %v633 = vadd.f32 0.0, %v632
      %v634 = vpop.f32.mrf.mxu0
      %635 = vmatprep.mubr.bf16.mxu0 0
      %636 = vmatmul.mubr.bf16.gmra.mxu0 %v509
      %v637 = vpop.f32.mrf.mxu0
      %v638 = vadd.f32 0.0, %v637
      %v639 = vpop.f32.mrf.mxu0
      %v640 = vpop.f32.mrf.mxu0
      %v641 = vadd.f32 0.0, %v640
      %v642 = vpop.f32.mrf.mxu0
      %643 = vmatprep.mubr.bf16.mxu0 0
      %644 = vmatmul.mubr.bf16.gmra.mxu0 %v510
      %v645 = vpop.f32.mrf.mxu0
      %v646 = vadd.f32 0.0, %v645
      %v647 = vpop.f32.mrf.mxu0
      %v648 = vpop.f32.mrf.mxu0
      %v649 = vadd.f32 0.0, %v648
      %v650 = vpop.f32.mrf.mxu0
      %651 = vmatprep.mubr.bf16.mxu0 0
      %652 = vmatmul.mubr.bf16.gmra.mxu0 %v511
      %v653 = vpop.f32.mrf.mxu0
      %v654 = vadd.f32 0.0, %v653
      %v655 = vpop.f32.mrf.mxu0
      %v656 = vpop.f32.mrf.mxu0
      %v657 = vadd.f32 0.0, %v656
      %v658 = vpop.f32.mrf.mxu0
      %659 = vmatprep.mubr.bf16.mxu0 0
      %660 = vmatmul.mubr.bf16.gmra.mxu0 %v512
      %v661 = vpop.f32.mrf.mxu0
      %v662 = vadd.f32 0.0, %v661
      %v663 = vpop.f32.mrf.mxu0
      %v664 = vpop.f32.mrf.mxu0
      %v665 = vadd.f32 0.0, %v664
      %v666 = vpop.f32.mrf.mxu0
      %667 = vmatprep.mubr.bf16.mxu0 0
      %668 = vmatmul.mubr.bf16.gmra.mxu0 %v513
      %v669 = vpop.f32.mrf.mxu0
      %v670 = vadd.f32 0.0, %v669
      %v671 = vpop.f32.mrf.mxu0
      %v672 = vpop.f32.mrf.mxu0
      %v673 = vadd.f32 0.0, %v672
      %v674 = vpop.f32.mrf.mxu0
      %675 = vmatprep.mubr.bf16.mxu0 0
      %676 = vmatmul.mubr.bf16.gmra.mxu0 %v514
      %v677 = vpop.f32.mrf.mxu0
      %v678 = vadd.f32 0.0, %v677
      %v679 = vpop.f32.mrf.mxu0
      %v680 = vpop.f32.mrf.mxu0
      %v681 = vadd.f32 0.0, %v680
      %v682 = vpop.f32.mrf.mxu0
      %683 = vmatprep.mubr.bf16.mxu0 0
      %684 = vmatmul.mubr.bf16.gmra.mxu0 %v515
      %v685 = vpop.f32.mrf.mxu0
      %v686 = vadd.f32 0.0, %v685
      %v687 = vpop.f32.mrf.mxu0
      %v688 = vpop.f32.mrf.mxu0
      %v689 = vadd.f32 0.0, %v688
      %v690 = vpop.f32.mrf.mxu0
      %691 = vmatprep.mubr.bf16.mxu0 0
      %692 = vmatmul.mubr.bf16.gmra.mxu0 %v516
      %v693 = vpop.f32.mrf.mxu0
      %v694 = vadd.f32 0.0, %v693
      %v695 = vpop.f32.mrf.mxu0
      %v696 = vpop.f32.mrf.mxu0
      %v697 = vadd.f32 0.0, %v696
      %v698 = vpop.f32.mrf.mxu0
      %699 = vmatprep.mubr.bf16.mxu0 0
      %700 = vmatmul.mubr.bf16.gmra.mxu0 %v517
      %v701 = vpop.f32.mrf.mxu0
      %v702 = vadd.f32 0.0, %v701
      %v703 = vpop.f32.mrf.mxu0
      %v704 = vpop.f32.mrf.mxu0
      %v705 = vadd.f32 0.0, %v704
      %v706 = vpop.f32.mrf.mxu0
      %707 = vmatprep.mubr.bf16.mxu0 0
      %708 = vmatmul.mubr.bf16.gmra.mxu0 %v518
      %v709 = vpop.f32.mrf.mxu0
      %v710 = vadd.f32 0.0, %v709
      %v711 = vpop.f32.mrf.mxu0
      %v712 = vpop.f32.mrf.mxu0
      %v713 = vadd.f32 0.0, %v712
      %v714 = vpop.f32.mrf.mxu0
      %715 = vmatprep.mubr.bf16.mxu0 0
      %716 = vmatmul.mubr.bf16.gmra.mxu0 %v519
      %v717 = vpop.f32.mrf.mxu0
      %v718 = vadd.f32 0.0, %v717
      %v719 = vpop.f32.mrf.mxu0
      %v720 = vpop.f32.mrf.mxu0
      %v721 = vadd.f32 0.0, %v720
      %v722 = vpop.f32.mrf.mxu0
      %723 = vmatprep.mubr.bf16.mxu0 0
      %724 = vmatmul.mubr.bf16.gmra.mxu0 %v520
      %v725 = vpop.f32.mrf.mxu0
      %v726 = vadd.f32 0.0, %v725
      %v727 = vpop.f32.mrf.mxu0
      %v728 = vpop.f32.mrf.mxu0
      %v729 = vadd.f32 0.0, %v728
      %v730 = vpop.f32.mrf.mxu0
      %731 = vmatprep.mubr.bf16.mxu0 0
      %732 = vmatmul.mubr.bf16.gmra.mxu0 %v521
      %v733 = vpop.f32.mrf.mxu0
      %v734 = vadd.f32 0.0, %v733
      %v735 = vpop.f32.mrf.mxu0
      %v736 = vpop.f32.mrf.mxu0
      %v737 = vadd.f32 0.0, %v736
      %v738 = vpop.f32.mrf.mxu0
      %739 = vmatprep.mubr.bf16.mxu0 0
      %740 = vmatmul.mubr.bf16.gmra.mxu0 %v522
      %v741 = vpop.f32.mrf.mxu0
      %v742 = vadd.f32 0.0, %v741
      %v743 = vpop.f32.mrf.mxu0
      %v744 = vpop.f32.mrf.mxu0
      %v745 = vadd.f32 0.0, %v744
      %v746 = vpop.f32.mrf.mxu0
      %747 = vdwg.mxu0
      %v748 = vadd.f32 %v363, %v622
      %v749 = vadd.f32 %v364, %v625
      %v750 = vadd.f32 %v365, %v630
      %v751 = vadd.f32 %v366, %v633
      %v752 = vadd.f32 %v367, %v638
      %v753 = vadd.f32 %v368, %v641
      %v754 = vadd.f32 %v369, %v646
      %v755 = vadd.f32 %v370, %v649
      %v756 = vadd.f32 %v371, %v654
      %v757 = vadd.f32 %v372, %v657
      %v758 = vadd.f32 %v373, %v662
      %v759 = vadd.f32 %v374, %v665
      %v760 = vadd.f32 %v375, %v670
      %v761 = vadd.f32 %v376, %v673
      %v762 = vadd.f32 %v377, %v678
      %v763 = vadd.f32 %v378, %v681
      %v764 = vadd.f32 %v379, %v686
      %v765 = vadd.f32 %v380, %v689
      %v766 = vadd.f32 %v381, %v694
      %v767 = vadd.f32 %v382, %v697
      %v768 = vadd.f32 %v383, %v702
      %v769 = vadd.f32 %v384, %v705
      %v770 = vadd.f32 %v385, %v710
      %v771 = vadd.f32 %v386, %v713
      %v772 = vadd.f32 %v387, %v718
      %v773 = vadd.f32 %v388, %v721
      %v774 = vadd.f32 %v389, %v726
      %v775 = vadd.f32 %v390, %v729
      %v776 = vadd.f32 %v391, %v734
      %v777 = vadd.f32 %v392, %v737
      %v778 = vadd.f32 %v393, %v742
      %v779 = vadd.f32 %v394, %v745
      %780 = vst [vmem:[#allocation2] sm:$0xff] %v748
      %781 = vst [vmem:[#allocation2 + $0x8] sm:$0xff] %v749
      %782 = vst [vmem:[#allocation2 + $0x10] sm:$0xff] %v750
      %783 = vst [vmem:[#allocation2 + $0x18] sm:$0xff] %v751
      %784 = vst [vmem:[#allocation2 + $0x20] sm:$0xff] %v752
      %785 = vst [vmem:[#allocation2 + $0x28] sm:$0xff] %v753
      %786 = vst [vmem:[#allocation2 + $0x30] sm:$0xff] %v754
      %787 = vst [vmem:[#allocation2 + $0x38] sm:$0xff] %v755
      %788 = vst [vmem:[#allocation2 + $0x40] sm:$0xff] %v756
      %789 = vst [vmem:[#allocation2 + $0x48] sm:$0xff] %v757
      %790 = vst [vmem:[#allocation2 + $0x50] sm:$0xff] %v758
      %791 = vst [vmem:[#allocation2 + $0x58] sm:$0xff] %v759
      %792 = vst [vmem:[#allocation2 + $0x60] sm:$0xff] %v760
      %793 = vst [vmem:[#allocation2 + $0x68] sm:$0xff] %v761
      %794 = vst [vmem:[#allocation2 + $0x70] sm:$0xff] %v762
      %795 = vst [vmem:[#allocation2 + $0x78] sm:$0xff] %v763
      %796 = vst [vmem:[#allocation2 + $0x80] sm:$0xff] %v764
      %797 = vst [vmem:[#allocation2 + $0x88] sm:$0xff] %v765
      %798 = vst [vmem:[#allocation2 + $0x90] sm:$0xff] %v766
      %799 = vst [vmem:[#allocation2 + $0x98] sm:$0xff] %v767
      %800 = vst [vmem:[#allocation2 + $0xa0] sm:$0xff] %v768
      %801 = vst [vmem:[#allocation2 + $0xa8] sm:$0xff] %v769
      %802 = vst [vmem:[#allocation2 + $0xb0] sm:$0xff] %v770
      %803 = vst [vmem:[#allocation2 + $0xb8] sm:$0xff] %v771
      %804 = vst [vmem:[#allocation2 + $0xc0] sm:$0xff] %v772
      %805 = vst [vmem:[#allocation2 + $0xc8] sm:$0xff] %v773
      %806 = vst [vmem:[#allocation2 + $0xd0] sm:$0xff] %v774
      %807 = vst [vmem:[#allocation2 + $0xd8] sm:$0xff] %v775
      %808 = vst [vmem:[#allocation2 + $0xe0] sm:$0xff] %v776
      %809 = vst [vmem:[#allocation2 + $0xe8] sm:$0xff] %v777
      %810 = vst [vmem:[#allocation2 + $0xf0] sm:$0xff] %v778
      %811 = vst [vmem:[#allocation2 + $0xf8] sm:$0xff] %v779
      // Predicated region
      $region41: #{forward.9} parent=35 // pred_check
        %p812 = pneg %p320
      $region42: #{forward.9} parent=35 // pred_check_branch
        %814 = sbr.rel (%p812) target = $region44
      $region43: #{forward.9} parent=35 // pred_region
        %v815 = vld [vmem:[#allocation2] sm:$0xff]
        %v816 = vld [vmem:[#allocation2 + $0x8] sm:$0xff]
        %v817 = vld [vmem:[#allocation2 + $0x10] sm:$0xff]
        %v818 = vld [vmem:[#allocation2 + $0x18] sm:$0xff]
        %v819 = vld [vmem:[#allocation2 + $0x20] sm:$0xff]
        %v820 = vld [vmem:[#allocation2 + $0x28] sm:$0xff]
        %v821 = vld [vmem:[#allocation2 + $0x30] sm:$0xff]
        %v822 = vld [vmem:[#allocation2 + $0x38] sm:$0xff]
        %v823 = vld [vmem:[#allocation2 + $0x40] sm:$0xff]
        %v824 = vld [vmem:[#allocation2 + $0x48] sm:$0xff]
        %v825 = vld [vmem:[#allocation2 + $0x50] sm:$0xff]
        %v826 = vld [vmem:[#allocation2 + $0x58] sm:$0xff]
        %v827 = vld [vmem:[#allocation2 + $0x60] sm:$0xff]
        %v828 = vld [vmem:[#allocation2 + $0x68] sm:$0xff]
        %v829 = vld [vmem:[#allocation2 + $0x70] sm:$0xff]
        %v830 = vld [vmem:[#allocation2 + $0x78] sm:$0xff]
        %v831 = vld [vmem:[#allocation2 + $0x80] sm:$0xff]
        %v832 = vld [vmem:[#allocation2 + $0x88] sm:$0xff]
        %v833 = vld [vmem:[#allocation2 + $0x90] sm:$0xff]
        %v834 = vld [vmem:[#allocation2 + $0x98] sm:$0xff]
        %v835 = vld [vmem:[#allocation2 + $0xa0] sm:$0xff]
        %v836 = vld [vmem:[#allocation2 + $0xa8] sm:$0xff]
        %v837 = vld [vmem:[#allocation2 + $0xb0] sm:$0xff]
        %v838 = vld [vmem:[#allocation2 + $0xb8] sm:$0xff]
        %v839 = vld [vmem:[#allocation2 + $0xc0] sm:$0xff]
        %v840 = vld [vmem:[#allocation2 + $0xc8] sm:$0xff]
        %v841 = vld [vmem:[#allocation2 + $0xd0] sm:$0xff]
        %v842 = vld [vmem:[#allocation2 + $0xd8] sm:$0xff]
        %v843 = vld [vmem:[#allocation2 + $0xe0] sm:$0xff]
        %v844 = vld [vmem:[#allocation2 + $0xe8] sm:$0xff]
        %v845 = vld [vmem:[#allocation2 + $0xf0] sm:$0xff]
        %v846 = vld [vmem:[#allocation2 + $0xf8] sm:$0xff]
        %v847 = vld [vmem:[%s308] sm:$0xf]
        %v848 = vld [vmem:[%s308 + $0x4] sm:$0xf]
        %v849 = vld [vmem:[%s308 + $0x8] sm:$0xf]
        %v850 = vld [vmem:[%s308 + $0xc] sm:$0xf]
        %v851 = vld [vmem:[%s308 + $0x10] sm:$0xf]
        %v852 = vld [vmem:[%s308 + $0x14] sm:$0xf]
        %v853 = vld [vmem:[%s308 + $0x18] sm:$0xf]
        %v854 = vld [vmem:[%s308 + $0x1c] sm:$0xf]
        %v855 = vld [vmem:[%s308 + $0x20] sm:$0xf]
        %v856 = vld [vmem:[%s308 + $0x24] sm:$0xf]
        %v857 = vld [vmem:[%s308 + $0x28] sm:$0xf]
        %v858 = vld [vmem:[%s308 + $0x2c] sm:$0xf]
        %v859 = vld [vmem:[%s308 + $0x30] sm:$0xf]
        %v860 = vld [vmem:[%s308 + $0x34] sm:$0xf]
        %v861 = vld [vmem:[%s308 + $0x38] sm:$0xf]
        %v862 = vld [vmem:[%s308 + $0x3c] sm:$0xf]
        %v863 = vld [vmem:[%s308 + $0x40] sm:$0xf]
        %v864 = vld [vmem:[%s308 + $0x44] sm:$0xf]
        %v865 = vld [vmem:[%s308 + $0x48] sm:$0xf]
        %v866 = vld [vmem:[%s308 + $0x4c] sm:$0xf]
        %v867 = vld [vmem:[%s308 + $0x50] sm:$0xf]
        %v868 = vld [vmem:[%s308 + $0x54] sm:$0xf]
        %v869 = vld [vmem:[%s308 + $0x58] sm:$0xf]
        %v870 = vld [vmem:[%s308 + $0x5c] sm:$0xf]
        %v871 = vld [vmem:[%s308 + $0x60] sm:$0xf]
        %v872 = vld [vmem:[%s308 + $0x64] sm:$0xf]
        %v873 = vld [vmem:[%s308 + $0x68] sm:$0xf]
        %v874 = vld [vmem:[%s308 + $0x6c] sm:$0xf]
        %v875 = vld [vmem:[%s308 + $0x70] sm:$0xf]
        %v876 = vld [vmem:[%s308 + $0x74] sm:$0xf]
        %v877 = vld [vmem:[%s308 + $0x78] sm:$0xf]
        %v878 = vld [vmem:[%s308 + $0x7c] sm:$0xf]
        %v879 = vunpack.c.l.bf16 %v847
        %v880 = vunpack.c.l.bf16 %v848
        %v881 = vunpack.c.l.bf16 %v849
        %v882 = vunpack.c.l.bf16 %v850
        %v883 = vunpack.c.l.bf16 %v851
        %v884 = vunpack.c.l.bf16 %v852
        %v885 = vunpack.c.l.bf16 %v853
        %v886 = vunpack.c.l.bf16 %v854
        %v887 = vunpack.c.l.bf16 %v855
        %v888 = vunpack.c.l.bf16 %v856
        %v889 = vunpack.c.l.bf16 %v857
        %v890 = vunpack.c.l.bf16 %v858
        %v891 = vunpack.c.l.bf16 %v859
        %v892 = vunpack.c.l.bf16 %v860
        %v893 = vunpack.c.l.bf16 %v861
        %v894 = vunpack.c.l.bf16 %v862
        %v895 = vunpack.c.l.bf16 %v863
        %v896 = vunpack.c.l.bf16 %v864
        %v897 = vunpack.c.l.bf16 %v865
        %v898 = vunpack.c.l.bf16 %v866
        %v899 = vunpack.c.l.bf16 %v867
        %v900 = vunpack.c.l.bf16 %v868
        %v901 = vunpack.c.l.bf16 %v869
        %v902 = vunpack.c.l.bf16 %v870
        %v903 = vunpack.c.l.bf16 %v871
        %v904 = vunpack.c.l.bf16 %v872
        %v905 = vunpack.c.l.bf16 %v873
        %v906 = vunpack.c.l.bf16 %v874
        %v907 = vunpack.c.l.bf16 %v875
        %v908 = vunpack.c.l.bf16 %v876
        %v909 = vunpack.c.l.bf16 %v877
        %v910 = vunpack.c.l.bf16 %v878
        %v911 = vadd.f32 %v815, %v879
        %v912 = vadd.f32 %v816, %v880
        %v913 = vadd.f32 %v817, %v881
        %v914 = vadd.f32 %v818, %v882
        %v915 = vadd.f32 %v819, %v883
        %v916 = vadd.f32 %v820, %v884
        %v917 = vadd.f32 %v821, %v885
        %v918 = vadd.f32 %v822, %v886
        %v919 = vadd.f32 %v823, %v887
        %v920 = vadd.f32 %v824, %v888
        %v921 = vadd.f32 %v825, %v889
        %v922 = vadd.f32 %v826, %v890
        %v923 = vadd.f32 %v827, %v891
        %v924 = vadd.f32 %v828, %v892
        %v925 = vadd.f32 %v829, %v893
        %v926 = vadd.f32 %v830, %v894
        %v927 = vadd.f32 %v831, %v895
        %v928 = vadd.f32 %v832, %v896
        %v929 = vadd.f32 %v833, %v897
        %v930 = vadd.f32 %v834, %v898
        %v931 = vadd.f32 %v835, %v899
        %v932 = vadd.f32 %v836, %v900
        %v933 = vadd.f32 %v837, %v901
        %v934 = vadd.f32 %v838, %v902
        %v935 = vadd.f32 %v839, %v903
        %v936 = vadd.f32 %v840, %v904
        %v937 = vadd.f32 %v841, %v905
        %v938 = vadd.f32 %v842, %v906
        %v939 = vadd.f32 %v843, %v907
        %v940 = vadd.f32 %v844, %v908
        %v941 = vadd.f32 %v845, %v909
        %v942 = vadd.f32 %v846, %v910
        %vm943 = vcmp.gt.f32.partialorder %v911, 0.0
        %vm944 = vcmp.gt.f32.partialorder %v912, 0.0
        %vm945 = vcmp.gt.f32.partialorder %v913, 0.0
        %vm946 = vcmp.gt.f32.partialorder %v914, 0.0
        %vm947 = vcmp.gt.f32.partialorder %v915, 0.0
        %vm948 = vcmp.gt.f32.partialorder %v916, 0.0
        %vm949 = vcmp.gt.f32.partialorder %v917, 0.0
        %vm950 = vcmp.gt.f32.partialorder %v918, 0.0
        %vm951 = vcmp.gt.f32.partialorder %v919, 0.0
        %vm952 = vcmp.gt.f32.partialorder %v920, 0.0
        %vm953 = vcmp.gt.f32.partialorder %v921, 0.0
        %vm954 = vcmp.gt.f32.partialorder %v922, 0.0
        %vm955 = vcmp.gt.f32.partialorder %v923, 0.0
        %vm956 = vcmp.gt.f32.partialorder %v924, 0.0
        %vm957 = vcmp.gt.f32.partialorder %v925, 0.0
        %vm958 = vcmp.gt.f32.partialorder %v926, 0.0
        %vm959 = vcmp.gt.f32.partialorder %v927, 0.0
        %vm960 = vcmp.gt.f32.partialorder %v928, 0.0
        %vm961 = vcmp.gt.f32.partialorder %v929, 0.0
        %vm962 = vcmp.gt.f32.partialorder %v930, 0.0
        %vm963 = vcmp.gt.f32.partialorder %v931, 0.0
        %vm964 = vcmp.gt.f32.partialorder %v932, 0.0
        %vm965 = vcmp.gt.f32.partialorder %v933, 0.0
        %vm966 = vcmp.gt.f32.partialorder %v934, 0.0
        %vm967 = vcmp.gt.f32.partialorder %v935, 0.0
        %vm968 = vcmp.gt.f32.partialorder %v936, 0.0
        %vm969 = vcmp.gt.f32.partialorder %v937, 0.0
        %vm970 = vcmp.gt.f32.partialorder %v938, 0.0
        %vm971 = vcmp.gt.f32.partialorder %v939, 0.0
        %vm972 = vcmp.gt.f32.partialorder %v940, 0.0
        %vm973 = vcmp.gt.f32.partialorder %v941, 0.0
        %vm974 = vcmp.gt.f32.partialorder %v942, 0.0
        %v975 = vmin.f32 %v911, 0.0
        %v976 = vmin.f32 %v912, 0.0
        %v977 = vmin.f32 %v913, 0.0
        %v978 = vmin.f32 %v914, 0.0
        %v979 = vmin.f32 %v915, 0.0
        %v980 = vmin.f32 %v916, 0.0
        %v981 = vmin.f32 %v917, 0.0
        %v982 = vmin.f32 %v918, 0.0
        %v983 = vmin.f32 %v919, 0.0
        %v984 = vmin.f32 %v920, 0.0
        %v985 = vmin.f32 %v921, 0.0
        %v986 = vmin.f32 %v922, 0.0
        %v987 = vmin.f32 %v923, 0.0
        %v988 = vmin.f32 %v924, 0.0
        %v989 = vmin.f32 %v925, 0.0
        %v990 = vmin.f32 %v926, 0.0
        %v991 = vmin.f32 %v927, 0.0
        %v992 = vmin.f32 %v928, 0.0
        %v993 = vmin.f32 %v929, 0.0
        %v994 = vmin.f32 %v930, 0.0
        %v995 = vmin.f32 %v931, 0.0
        %v996 = vmin.f32 %v932, 0.0
        %v997 = vmin.f32 %v933, 0.0
        %v998 = vmin.f32 %v934, 0.0
        %v999 = vmin.f32 %v935, 0.0
        %v1000 = vmin.f32 %v936, 0.0
        %v1001 = vmin.f32 %v937, 0.0
        %v1002 = vmin.f32 %v938, 0.0
        %v1003 = vmin.f32 %v939, 0.0
        %v1004 = vmin.f32 %v940, 0.0
        %v1005 = vmin.f32 %v941, 0.0
        %v1006 = vmin.f32 %v942, 0.0
        %v1007 = vmul.f32 %v975, 1.442695
        %v1008 = vpow.pop %v1007
        %v1009 = vmul.f32 %v976, 1.442695
        %v1010 = vpow.pop %v1009
        %v1011 = vmul.f32 %v977, 1.442695
        %v1012 = vpow.pop %v1011
        %v1013 = vmul.f32 %v978, 1.442695
        %v1014 = vpow.pop %v1013
        %v1015 = vmul.f32 %v979, 1.442695
        %v1016 = vpow.pop %v1015
        %v1017 = vmul.f32 %v980, 1.442695
        %v1018 = vpow.pop %v1017
        %v1019 = vmul.f32 %v981, 1.442695
        %v1020 = vpow.pop %v1019
        %v1021 = vmul.f32 %v982, 1.442695
        %v1022 = vpow.pop %v1021
        %v1023 = vmul.f32 %v983, 1.442695
        %v1024 = vpow.pop %v1023
        %v1025 = vmul.f32 %v984, 1.442695
        %v1026 = vpow.pop %v1025
        %v1027 = vmul.f32 %v985, 1.442695
        %v1028 = vpow.pop %v1027
        %v1029 = vmul.f32 %v986, 1.442695
        %v1030 = vpow.pop %v1029
        %v1031 = vmul.f32 %v987, 1.442695
        %v1032 = vpow.pop %v1031
        %v1033 = vmul.f32 %v988, 1.442695
        %v1034 = vpow.pop %v1033
        %v1035 = vmul.f32 %v989, 1.442695
        %v1036 = vpow.pop %v1035
        %v1037 = vmul.f32 %v990, 1.442695
        %v1038 = vpow.pop %v1037
        %v1039 = vmul.f32 %v991, 1.442695
        %v1040 = vpow.pop %v1039
        %v1041 = vmul.f32 %v992, 1.442695
        %v1042 = vpow.pop %v1041
        %v1043 = vmul.f32 %v993, 1.442695
        %v1044 = vpow.pop %v1043
        %v1045 = vmul.f32 %v994, 1.442695
        %v1046 = vpow.pop %v1045
        %v1047 = vmul.f32 %v995, 1.442695
        %v1048 = vpow.pop %v1047
        %v1049 = vmul.f32 %v996, 1.442695
        %v1050 = vpow.pop %v1049
        %v1051 = vmul.f32 %v997, 1.442695
        %v1052 = vpow.pop %v1051
        %v1053 = vmul.f32 %v998, 1.442695
        %v1054 = vpow.pop %v1053
        %v1055 = vmul.f32 %v999, 1.442695
        %v1056 = vpow.pop %v1055
        %v1057 = vmul.f32 %v1000, 1.442695
        %v1058 = vpow.pop %v1057
        %v1059 = vmul.f32 %v1001, 1.442695
        %v1060 = vpow.pop %v1059
        %v1061 = vmul.f32 %v1002, 1.442695
        %v1062 = vpow.pop %v1061
        %v1063 = vmul.f32 %v1003, 1.442695
        %v1064 = vpow.pop %v1063
        %v1065 = vmul.f32 %v1004, 1.442695
        %v1066 = vpow.pop %v1065
        %v1067 = vmul.f32 %v1005, 1.442695
        %v1068 = vpow.pop %v1067
        %v1069 = vmul.f32 %v1006, 1.442695
        %v1070 = vpow.pop %v1069
        %v1071 = vsub.f32 %v1008, 1.0
        %v1072 = vsub.f32 %v1010, 1.0
        %v1073 = vsub.f32 %v1012, 1.0
        %v1074 = vsub.f32 %v1014, 1.0
        %v1075 = vsub.f32 %v1016, 1.0
        %v1076 = vsub.f32 %v1018, 1.0
        %v1077 = vsub.f32 %v1020, 1.0
        %v1078 = vsub.f32 %v1022, 1.0
        %v1079 = vsub.f32 %v1024, 1.0
        %v1080 = vsub.f32 %v1026, 1.0
        %v1081 = vsub.f32 %v1028, 1.0
        %v1082 = vsub.f32 %v1030, 1.0
        %v1083 = vsub.f32 %v1032, 1.0
        %v1084 = vsub.f32 %v1034, 1.0
        %v1085 = vsub.f32 %v1036, 1.0
        %v1086 = vsub.f32 %v1038, 1.0
        %v1087 = vsub.f32 %v1040, 1.0
        %v1088 = vsub.f32 %v1042, 1.0
        %v1089 = vsub.f32 %v1044, 1.0
        %v1090 = vsub.f32 %v1046, 1.0
        %v1091 = vsub.f32 %v1048, 1.0
        %v1092 = vsub.f32 %v1050, 1.0
        %v1093 = vsub.f32 %v1052, 1.0
        %v1094 = vsub.f32 %v1054, 1.0
        %v1095 = vsub.f32 %v1056, 1.0
        %v1096 = vsub.f32 %v1058, 1.0
        %v1097 = vsub.f32 %v1060, 1.0
        %v1098 = vsub.f32 %v1062, 1.0
        %v1099 = vsub.f32 %v1064, 1.0
        %v1100 = vsub.f32 %v1066, 1.0
        %v1101 = vsub.f32 %v1068, 1.0
        %v1102 = vsub.f32 %v1070, 1.0
        %v1103 = vsel %vm943, %v911, %v1071
        %v1104 = vsel %vm944, %v912, %v1072
        %v1105 = vsel %vm945, %v913, %v1073
        %v1106 = vsel %vm946, %v914, %v1074
        %v1107 = vsel %vm947, %v915, %v1075
        %v1108 = vsel %vm948, %v916, %v1076
        %v1109 = vsel %vm949, %v917, %v1077
        %v1110 = vsel %vm950, %v918, %v1078
        %v1111 = vsel %vm951, %v919, %v1079
        %v1112 = vsel %vm952, %v920, %v1080
        %v1113 = vsel %vm953, %v921, %v1081
        %v1114 = vsel %vm954, %v922, %v1082
        %v1115 = vsel %vm955, %v923, %v1083
        %v1116 = vsel %vm956, %v924, %v1084
        %v1117 = vsel %vm957, %v925, %v1085
        %v1118 = vsel %vm958, %v926, %v1086
        %v1119 = vsel %vm959, %v927, %v1087
        %v1120 = vsel %vm960, %v928, %v1088
        %v1121 = vsel %vm961, %v929, %v1089
        %v1122 = vsel %vm962, %v930, %v1090
        %v1123 = vsel %vm963, %v931, %v1091
        %v1124 = vsel %vm964, %v932, %v1092
        %v1125 = vsel %vm965, %v933, %v1093
        %v1126 = vsel %vm966, %v934, %v1094
        %v1127 = vsel %vm967, %v935, %v1095
        %v1128 = vsel %vm968, %v936, %v1096
        %v1129 = vsel %vm969, %v937, %v1097
        %v1130 = vsel %vm970, %v938, %v1098
        %v1131 = vsel %vm971, %v939, %v1099
        %v1132 = vsel %vm972, %v940, %v1100
        %v1133 = vsel %vm973, %v941, %v1101
        %v1134 = vsel %vm974, %v942, %v1102
        %v1135 = vpack.c.bf16 %v1104, %v1103
        %v1136 = vpack.c.bf16 %v1106, %v1105
        %v1137 = vpack.c.bf16 %v1108, %v1107
        %v1138 = vpack.c.bf16 %v1110, %v1109
        %v1139 = vpack.c.bf16 %v1112, %v1111
        %v1140 = vpack.c.bf16 %v1114, %v1113
        %v1141 = vpack.c.bf16 %v1116, %v1115
        %v1142 = vpack.c.bf16 %v1118, %v1117
        %v1143 = vpack.c.bf16 %v1120, %v1119
        %v1144 = vpack.c.bf16 %v1122, %v1121
        %v1145 = vpack.c.bf16 %v1124, %v1123
        %v1146 = vpack.c.bf16 %v1126, %v1125
        %v1147 = vpack.c.bf16 %v1128, %v1127
        %v1148 = vpack.c.bf16 %v1130, %v1129
        %v1149 = vpack.c.bf16 %v1132, %v1131
        %v1150 = vpack.c.bf16 %v1134, %v1133
        %v1167 = vunpack.c.l.b16 %v1135
        %v1168 = vunpack.c.h.b16 %v1135
        %v1169 = vunpack.c.l.b16 %v1136
        %v1170 = vunpack.c.h.b16 %v1136
        %v1171 = vunpack.c.l.b16 %v1137
        %v1172 = vunpack.c.h.b16 %v1137
        %v1173 = vunpack.c.l.b16 %v1138
        %v1174 = vunpack.c.h.b16 %v1138
        %v1175 = vunpack.c.l.b16 %v1139
        %v1176 = vunpack.c.h.b16 %v1139
        %v1177 = vunpack.c.l.b16 %v1140
        %v1178 = vunpack.c.h.b16 %v1140
        %v1179 = vunpack.c.l.b16 %v1141
        %v1180 = vunpack.c.h.b16 %v1141
        %v1181 = vunpack.c.l.b16 %v1142
        %v1182 = vunpack.c.h.b16 %v1142
        %v1183 = vunpack.c.l.b16 %v1143
        %v1184 = vunpack.c.h.b16 %v1143
        %v1185 = vunpack.c.l.b16 %v1144
        %v1186 = vunpack.c.h.b16 %v1144
        %v1187 = vunpack.c.l.b16 %v1145
        %v1188 = vunpack.c.h.b16 %v1145
        %v1189 = vunpack.c.l.b16 %v1146
        %v1190 = vunpack.c.h.b16 %v1146
        %v1191 = vunpack.c.l.b16 %v1147
        %v1192 = vunpack.c.h.b16 %v1147
        %v1193 = vunpack.c.l.b16 %v1148
        %v1194 = vunpack.c.h.b16 %v1148
        %v1195 = vunpack.c.l.b16 %v1149
        %v1196 = vunpack.c.h.b16 %v1149
        %v1197 = vunpack.c.l.b16 %v1150
        %v1198 = vunpack.c.h.b16 %v1150
        %v1199 = vpack.c.b16 %v1167, %v1167
        %v1200 = vpack.c.b16 %v1168, %v1168
        %v1201 = vpack.c.b16 %v1169, %v1169
        %v1202 = vpack.c.b16 %v1170, %v1170
        %v1203 = vpack.c.b16 %v1171, %v1171
        %v1204 = vpack.c.b16 %v1172, %v1172
        %v1205 = vpack.c.b16 %v1173, %v1173
        %v1206 = vpack.c.b16 %v1174, %v1174
        %v1207 = vpack.c.b16 %v1175, %v1175
        %v1208 = vpack.c.b16 %v1176, %v1176
        %v1209 = vpack.c.b16 %v1177, %v1177
        %v1210 = vpack.c.b16 %v1178, %v1178
        %v1211 = vpack.c.b16 %v1179, %v1179
        %v1212 = vpack.c.b16 %v1180, %v1180
        %v1213 = vpack.c.b16 %v1181, %v1181
        %v1214 = vpack.c.b16 %v1182, %v1182
        %v1215 = vpack.c.b16 %v1183, %v1183
        %v1216 = vpack.c.b16 %v1184, %v1184
        %v1217 = vpack.c.b16 %v1185, %v1185
        %v1218 = vpack.c.b16 %v1186, %v1186
        %v1219 = vpack.c.b16 %v1187, %v1187
        %v1220 = vpack.c.b16 %v1188, %v1188
        %v1221 = vpack.c.b16 %v1189, %v1189
        %v1222 = vpack.c.b16 %v1190, %v1190
        %v1223 = vpack.c.b16 %v1191, %v1191
        %v1224 = vpack.c.b16 %v1192, %v1192
        %v1225 = vpack.c.b16 %v1193, %v1193
        %v1226 = vpack.c.b16 %v1194, %v1194
        %v1227 = vpack.c.b16 %v1195, %v1195
        %v1228 = vpack.c.b16 %v1196, %v1196
        %v1229 = vpack.c.b16 %v1197, %v1197
        %v1230 = vpack.c.b16 %v1198, %v1198
        %1263 = vst [vmem:[%s317] sm:$0xf] %v1199
        %1264 = vst [vmem:[%s317 + $0x4] sm:$0xf] %v1200
        %1265 = vst [vmem:[%s317 + $0x8] sm:$0xf] %v1201
        %1266 = vst [vmem:[%s317 + $0xc] sm:$0xf] %v1202
        %1267 = vst [vmem:[%s317 + $0x10] sm:$0xf] %v1203
        %1268 = vst [vmem:[%s317 + $0x14] sm:$0xf] %v1204
        %1269 = vst [vmem:[%s317 + $0x18] sm:$0xf] %v1205
        %1270 = vst [vmem:[%s317 + $0x1c] sm:$0xf] %v1206
        %1271 = vst [vmem:[%s317 + $0x20] sm:$0xf] %v1207
        %1272 = vst [vmem:[%s317 + $0x24] sm:$0xf] %v1208
        %1273 = vst [vmem:[%s317 + $0x28] sm:$0xf] %v1209
        %1274 = vst [vmem:[%s317 + $0x2c] sm:$0xf] %v1210
        %1275 = vst [vmem:[%s317 + $0x30] sm:$0xf] %v1211
        %1276 = vst [vmem:[%s317 + $0x34] sm:$0xf] %v1212
        %1277 = vst [vmem:[%s317 + $0x38] sm:$0xf] %v1213
        %1278 = vst [vmem:[%s317 + $0x3c] sm:$0xf] %v1214
        %1279 = vst [vmem:[%s317 + $0x40] sm:$0xf] %v1215
        %1280 = vst [vmem:[%s317 + $0x44] sm:$0xf] %v1216
        %1281 = vst [vmem:[%s317 + $0x48] sm:$0xf] %v1217
        %1282 = vst [vmem:[%s317 + $0x4c] sm:$0xf] %v1218
        %1283 = vst [vmem:[%s317 + $0x50] sm:$0xf] %v1219
        %1284 = vst [vmem:[%s317 + $0x54] sm:$0xf] %v1220
        %1285 = vst [vmem:[%s317 + $0x58] sm:$0xf] %v1221
        %1286 = vst [vmem:[%s317 + $0x5c] sm:$0xf] %v1222
        %1287 = vst [vmem:[%s317 + $0x60] sm:$0xf] %v1223
        %1288 = vst [vmem:[%s317 + $0x64] sm:$0xf] %v1224
        %1289 = vst [vmem:[%s317 + $0x68] sm:$0xf] %v1225
        %1290 = vst [vmem:[%s317 + $0x6c] sm:$0xf] %v1226
        %1291 = vst [vmem:[%s317 + $0x70] sm:$0xf] %v1227
        %1292 = vst [vmem:[%s317 + $0x74] sm:$0xf] %v1228
        %1293 = vst [vmem:[%s317 + $0x78] sm:$0xf] %v1229
        %1294 = vst [vmem:[%s317 + $0x7c] sm:$0xf] %v1230
      $region44: #{forward.9} parent=35 // pred_fallthru
        _
      %s1295 = smul.u32 32, %s20
      %p1296 = scmp.lt.s32.totalorder %s1295, 63
      %s1297 = scalar_select %p1296, %s1295, 63
      %p1298 = scmp.lt.s32.totalorder %s21, 0
      %s1299 = scalar_select %p1298, %s21, 0
      %s1300 = sadd.s32 %s1299, %s1297
      %s1301 = smul.addr %s1300, 4
      %s1302 = scalar_lea.vmem %s4, %s1301
      // Predicated region
      $region45: #{forward.9} parent=35 // pred_check
        %p1303 = pneg %p164
      $region46: #{forward.9} parent=35 // pred_check_branch
        %1305 = sbr.rel (%p1303) target = $region48
      $region47: #{forward.9} parent=35 // pred_region
        %s1306 = smul.u32 32, %s20
      $region48: #{forward.9} parent=35 // pred_fallthru
        _
    $region36: #{forward.9} parent=5 // pred_fallthru
      _
    %p1307 = scmp.le.s32.totalorder 2, %s10
    // Predicated region
    $region49: #{forward.9} parent=5 // pred_check
      %p1308 = pneg %p1307
    $region50: #{forward.9} parent=5 // pred_check_branch
      %1310 = sbr.rel (%p1308) target = $region52
    $region51: #{forward.9} parent=5 // pred_region
      %s1311 = ssub.s32 %s10, 2
      // Predicated region
      $region53: #{forward.9} parent=51 // pred_check
        %p1312 = pneg %p170
      $region54: #{forward.9} parent=51 // pred_check_branch
        %1314 = sbr.rel (%p1312) target = $region56
      $region55: #{forward.9} parent=51 // pred_region
        %s1315 = smul.u32 32, %s23
        %p1316 = scmp.lt.s32.totalorder %s1315, 63
        %s1317 = scalar_select %p1316, %s1315, 63
        %p1318 = scmp.lt.s32.totalorder %s24, 0
        %s1319 = scalar_select %p1318, %s24, 0
        %s1320 = sadd.s32 %s1319, %s1317
        %s1321 = smul.addr %s1320, 4
        %s1322 = scalar_lea.vmem %s4, %s1321
      $region56: #{forward.9} parent=51 // pred_fallthru
        _
    $region52: #{forward.9} parent=5 // pred_fallthru
      _
  $region6: #{forward.9} parent=0 // loop_footer
    %s14 = sadd.s32 1, %s10
  $region7: #{forward.9} parent=0 // loop_footer_branch
    %9 = sbr.rel target = $region3
  $region8: #{forward.9} parent=0 // loop_exit
    _

// kernel: forward.11
$region0: #{forward.11}
  #allocation0 [shape = 'u32[]', space=smem, size = 0x4, offset = 0x4, fixed_abs, tag = 'smem constant byte address 0x4 - core index']
  #allocation1 [shape = 'u32[144,128]{1,0:T(1,128)}', space=vmem, size = 0x12000, scoped, tag = 'internal scratch']
  #allocation2 [shape = 'f32[128,128]{1,0:T(8,128)}', space=vmem, size = 0x10000, scoped, tag = 'scratch operand']
  %s0 = inlined_call_operand.vmem [shape: bf16[128,384], index: 0, kind: input, shape index: {}]
  %s1 = inlined_call_operand.vmem [shape: bf16[384,128], index: 1, kind: input, shape index: {}]
  %s2 = inlined_call_operand.vmem [shape: f32[1,128], index: 2, kind: input, shape index: {}]
  %s3 = inlined_call_operand.vmem [shape: bf16[128,128], index: 3, kind: output, shape index: {}]
  %s4 = sld [smem:[#allocation0]]
  $region30: #{forward.11} parent=0
    _
  %s6 = ssub.s32 1, %s4
  %s7 = scalar_select 0, %s6, %s4
  // Predicated region
  $region2: #{forward.11} parent=0 // pred_check
    _
  $region3: #{forward.11} parent=0 // pred_check_branch
    %9 = sbr.rel (0) target = $region5
  $region4: #{forward.11} parent=0 // pred_region
    _
  $region5: #{forward.11} parent=0 // pred_fallthru
    _
  // Predicated region
  $region6: #{forward.11} parent=0 // pred_check
    _
  $region7: #{forward.11} parent=0 // pred_check_branch
    %11 = sbr.rel (0) target = $region9
  $region8: #{forward.11} parent=0 // pred_region
    _
  $region9: #{forward.11} parent=0 // pred_fallthru
    _
  // Predicated region
  $region10: #{forward.11} parent=0 // pred_check
    _
  $region11: #{forward.11} parent=0 // pred_check_branch
    %13 = sbr.rel (0) target = $region13
  $region12: #{forward.11} parent=0 // pred_region
    _
  $region13: #{forward.11} parent=0 // pred_fallthru
    _
  %p15 = scmp.eq.s32.totalorder 0, 0
  // Predicated region
  $region14: #{forward.11} parent=0 // pred_check
    %p16 = pneg %p15
  $region15: #{forward.11} parent=0 // pred_check_branch
    %18 = sbr.rel (%p16) target = $region17
  $region16: #{forward.11} parent=0 // pred_region
    %v19 = vld [vmem:[%s2] sm:$0x1]
    %v21 = vlaneseq
    %v22 = vshrl.u32 %v21, 7
    %v23 = vsub.s32 0, %v22
    %v24 = vrot.slane %v19, %v23
    %26 = vst [vmem:[#allocation2] sm:$0xff] %v24
    %27 = vst [vmem:[#allocation2 + $0x8] sm:$0xff] %v24
    %28 = vst [vmem:[#allocation2 + $0x10] sm:$0xff] %v24
    %29 = vst [vmem:[#allocation2 + $0x18] sm:$0xff] %v24
    %30 = vst [vmem:[#allocation2 + $0x20] sm:$0xff] %v24
    %31 = vst [vmem:[#allocation2 + $0x28] sm:$0xff] %v24
    %32 = vst [vmem:[#allocation2 + $0x30] sm:$0xff] %v24
    %33 = vst [vmem:[#allocation2 + $0x38] sm:$0xff] %v24
    %34 = vst [vmem:[#allocation2 + $0x40] sm:$0xff] %v24
    %35 = vst [vmem:[#allocation2 + $0x48] sm:$0xff] %v24
    %36 = vst [vmem:[#allocation2 + $0x50] sm:$0xff] %v24
    %37 = vst [vmem:[#allocation2 + $0x58] sm:$0xff] %v24
    %38 = vst [vmem:[#allocation2 + $0x60] sm:$0xff] %v24
    %39 = vst [vmem:[#allocation2 + $0x68] sm:$0xff] %v24
    %40 = vst [vmem:[#allocation2 + $0x70] sm:$0xff] %v24
    %41 = vst [vmem:[#allocation2 + $0x78] sm:$0xff] %v24
  $region17: #{forward.11} parent=0 // pred_fallthru
    _
  %v42 = vld [vmem:[#allocation2] sm:$0xff]
  %v43 = vld [vmem:[#allocation2 + $0x8] sm:$0xff]
  %v44 = vld [vmem:[#allocation2 + $0x10] sm:$0xff]
  %v45 = vld [vmem:[#allocation2 + $0x18] sm:$0xff]
  %v46 = vld [vmem:[#allocation2 + $0x20] sm:$0xff]
  %v47 = vld [vmem:[#allocation2 + $0x28] sm:$0xff]
  %v48 = vld [vmem:[#allocation2 + $0x30] sm:$0xff]
  %v49 = vld [vmem:[#allocation2 + $0x38] sm:$0xff]
  %v50 = vld [vmem:[#allocation2 + $0x40] sm:$0xff]
  %v51 = vld [vmem:[#allocation2 + $0x48] sm:$0xff]
  %v52 = vld [vmem:[#allocation2 + $0x50] sm:$0xff]
  %v53 = vld [vmem:[#allocation2 + $0x58] sm:$0xff]
  %v54 = vld [vmem:[#allocation2 + $0x60] sm:$0xff]
  %v55 = vld [vmem:[#allocation2 + $0x68] sm:$0xff]
  %v56 = vld [vmem:[#allocation2 + $0x70] sm:$0xff]
  %v57 = vld [vmem:[#allocation2 + $0x78] sm:$0xff]
  %v58 = vld [vmem:[%s0] sm:$0xff]
  %v59 = vld [vmem:[%s0 + $0x8] sm:$0xf]
  %v60 = vld [vmem:[%s0 + $0xc] sm:$0xff]
  %v61 = vld [vmem:[%s0 + $0x14] sm:$0xf]
  %v62 = vld [vmem:[%s0 + $0x18] sm:$0xff]
  %v63 = vld [vmem:[%s0 + $0x20] sm:$0xf]
  %v64 = vld [vmem:[%s0 + $0x24] sm:$0xff]
  %v65 = vld [vmem:[%s0 + $0x2c] sm:$0xf]
  %v66 = vld [vmem:[%s0 + $0x30] sm:$0xff]
  %v67 = vld [vmem:[%s0 + $0x38] sm:$0xf]
  %v68 = vld [vmem:[%s0 + $0x3c] sm:$0xff]
  %v69 = vld [vmem:[%s0 + $0x44] sm:$0xf]
  %v70 = vld [vmem:[%s0 + $0x48] sm:$0xff]
  %v71 = vld [vmem:[%s0 + $0x50] sm:$0xf]
  %v72 = vld [vmem:[%s0 + $0x54] sm:$0xff]
  %v73 = vld [vmem:[%s0 + $0x5c] sm:$0xf]
  %v74 = vld [vmem:[%s0 + $0x60] sm:$0xff]
  %v75 = vld [vmem:[%s0 + $0x68] sm:$0xf]
  %v76 = vld [vmem:[%s0 + $0x6c] sm:$0xff]
  %v77 = vld [vmem:[%s0 + $0x74] sm:$0xf]
  %v78 = vld [vmem:[%s0 + $0x78] sm:$0xff]
  %v79 = vld [vmem:[%s0 + $0x80] sm:$0xf]
  %v80 = vld [vmem:[%s0 + $0x84] sm:$0xff]
  %v81 = vld [vmem:[%s0 + $0x8c] sm:$0xf]
  %v82 = vld [vmem:[%s0 + $0x90] sm:$0xff]
  %v83 = vld [vmem:[%s0 + $0x98] sm:$0xf]
  %v84 = vld [vmem:[%s0 + $0x9c] sm:$0xff]
  %v85 = vld [vmem:[%s0 + $0xa4] sm:$0xf]
  %v86 = vld [vmem:[%s0 + $0xa8] sm:$0xff]
  %v87 = vld [vmem:[%s0 + $0xb0] sm:$0xf]
  %v88 = vld [vmem:[%s0 + $0xb4] sm:$0xff]
  %v89 = vld [vmem:[%s0 + $0xbc] sm:$0xf]
  %v90 = vld [vmem:[%s1] sm:$0xf]
  %v91 = vld [vmem:[%s1 + $0x4] sm:$0xf]
  %v92 = vld [vmem:[%s1 + $0x8] sm:$0xf]
  %v93 = vld [vmem:[%s1 + $0xc] sm:$0xf]
  %v94 = vld [vmem:[%s1 + $0x10] sm:$0xf]
  %v95 = vld [vmem:[%s1 + $0x14] sm:$0xf]
  %v96 = vld [vmem:[%s1 + $0x18] sm:$0xf]
  %v97 = vld [vmem:[%s1 + $0x1c] sm:$0xf]
  %v98 = vld [vmem:[%s1 + $0x20] sm:$0xf]
  %v99 = vld [vmem:[%s1 + $0x24] sm:$0xf]
  %v100 = vld [vmem:[%s1 + $0x28] sm:$0xf]
  %v101 = vld [vmem:[%s1 + $0x2c] sm:$0xf]
  %v102 = vld [vmem:[%s1 + $0x30] sm:$0xf]
  %v103 = vld [vmem:[%s1 + $0x34] sm:$0xf]
  %v104 = vld [vmem:[%s1 + $0x38] sm:$0xf]
  %v105 = vld [vmem:[%s1 + $0x3c] sm:$0xf]
  %v106 = vld [vmem:[%s1 + $0x40] sm:$0xf]
  %v107 = vld [vmem:[%s1 + $0x44] sm:$0xf]
  %v108 = vld [vmem:[%s1 + $0x48] sm:$0xf]
  %v109 = vld [vmem:[%s1 + $0x4c] sm:$0xf]
  %v110 = vld [vmem:[%s1 + $0x50] sm:$0xf]
  %v111 = vld [vmem:[%s1 + $0x54] sm:$0xf]
  %v112 = vld [vmem:[%s1 + $0x58] sm:$0xf]
  %v113 = vld [vmem:[%s1 + $0x5c] sm:$0xf]
  %v114 = vld [vmem:[%s1 + $0x60] sm:$0xf]
  %v115 = vld [vmem:[%s1 + $0x64] sm:$0xf]
  %v116 = vld [vmem:[%s1 + $0x68] sm:$0xf]
  %v117 = vld [vmem:[%s1 + $0x6c] sm:$0xf]
  %v118 = vld [vmem:[%s1 + $0x70] sm:$0xf]
  %v119 = vld [vmem:[%s1 + $0x74] sm:$0xf]
  %v120 = vld [vmem:[%s1 + $0x78] sm:$0xf]
  %v121 = vld [vmem:[%s1 + $0x7c] sm:$0xf]
  %v122 = vld [vmem:[%s1 + $0x80] sm:$0xf]
  %v123 = vld [vmem:[%s1 + $0x84] sm:$0xf]
  %v124 = vld [vmem:[%s1 + $0x88] sm:$0xf]
  %v125 = vld [vmem:[%s1 + $0x8c] sm:$0xf]
  %v126 = vld [vmem:[%s1 + $0x90] sm:$0xf]
  %v127 = vld [vmem:[%s1 + $0x94] sm:$0xf]
  %v128 = vld [vmem:[%s1 + $0x98] sm:$0xf]
  %v129 = vld [vmem:[%s1 + $0x9c] sm:$0xf]
  %v130 = vld [vmem:[%s1 + $0xa0] sm:$0xf]
  %v131 = vld [vmem:[%s1 + $0xa4] sm:$0xf]
  %v132 = vld [vmem:[%s1 + $0xa8] sm:$0xf]
  %v133 = vld [vmem:[%s1 + $0xac] sm:$0xf]
  %v134 = vld [vmem:[%s1 + $0xb0] sm:$0xf]
  %v135 = vld [vmem:[%s1 + $0xb4] sm:$0xf]
  %v136 = vld [vmem:[%s1 + $0xb8] sm:$0xf]
  %v137 = vld [vmem:[%s1 + $0xbc] sm:$0xf]
  %v170 = vunpack.c.l.b16 %v58
  %v171 = vunpack.c.h.b16 %v58
  %v172 = vunpack.c.l.b16 %v59
  %v173 = vunpack.c.l.b16 %v60
  %v174 = vunpack.c.h.b16 %v60
  %v175 = vunpack.c.l.b16 %v61
  %v176 = vunpack.c.l.b16 %v62
  %v177 = vunpack.c.h.b16 %v62
  %v178 = vunpack.c.l.b16 %v63
  %v179 = vunpack.c.l.b16 %v64
  %v180 = vunpack.c.h.b16 %v64
  %v181 = vunpack.c.l.b16 %v65
  %v182 = vunpack.c.l.b16 %v66
  %v183 = vunpack.c.h.b16 %v66
  %v184 = vunpack.c.l.b16 %v67
  %v185 = vunpack.c.l.b16 %v68
  %v186 = vunpack.c.h.b16 %v68
  %v187 = vunpack.c.l.b16 %v69
  %v188 = vunpack.c.l.b16 %v70
  %v189 = vunpack.c.h.b16 %v70
  %v190 = vunpack.c.l.b16 %v71
  %v191 = vunpack.c.l.b16 %v72
  %v192 = vunpack.c.h.b16 %v72
  %v193 = vunpack.c.l.b16 %v73
  %v194 = vunpack.c.l.b16 %v74
  %v195 = vunpack.c.h.b16 %v74
  %v196 = vunpack.c.l.b16 %v75
  %v197 = vunpack.c.l.b16 %v76
  %v198 = vunpack.c.h.b16 %v76
  %v199 = vunpack.c.l.b16 %v77
  %v200 = vunpack.c.l.b16 %v78
  %v201 = vunpack.c.h.b16 %v78
  %v202 = vunpack.c.l.b16 %v79
  %v203 = vunpack.c.l.b16 %v80
  %v204 = vunpack.c.h.b16 %v80
  %v205 = vunpack.c.l.b16 %v81
  %v206 = vunpack.c.l.b16 %v82
  %v207 = vunpack.c.h.b16 %v82
  %v208 = vunpack.c.l.b16 %v83
  %v209 = vunpack.c.l.b16 %v84
  %v210 = vunpack.c.h.b16 %v84
  %v211 = vunpack.c.l.b16 %v85
  %v212 = vunpack.c.l.b16 %v86
  %v213 = vunpack.c.h.b16 %v86
  %v214 = vunpack.c.l.b16 %v87
  %v215 = vunpack.c.l.b16 %v88
  %v216 = vunpack.c.h.b16 %v88
  %v217 = vunpack.c.l.b16 %v89
  %v218 = vpack.c.b16 %v173, %v170
  %v219 = vpack.c.b16 %v174, %v171
  %v220 = vpack.c.b16 %v175, %v172
  %v221 = vpack.c.b16 %v179, %v176
  %v222 = vpack.c.b16 %v180, %v177
  %v223 = vpack.c.b16 %v181, %v178
  %v224 = vpack.c.b16 %v185, %v182
  %v225 = vpack.c.b16 %v186, %v183
  %v226 = vpack.c.b16 %v187, %v184
  %v227 = vpack.c.b16 %v191, %v188
  %v228 = vpack.c.b16 %v192, %v189
  %v229 = vpack.c.b16 %v193, %v190
  %v230 = vpack.c.b16 %v197, %v194
  %v231 = vpack.c.b16 %v198, %v195
  %v232 = vpack.c.b16 %v199, %v196
  %v233 = vpack.c.b16 %v203, %v200
  %v234 = vpack.c.b16 %v204, %v201
  %v235 = vpack.c.b16 %v205, %v202
  %v236 = vpack.c.b16 %v209, %v206
  %v237 = vpack.c.b16 %v210, %v207
  %v238 = vpack.c.b16 %v211, %v208
  %v239 = vpack.c.b16 %v215, %v212
  %v240 = vpack.c.b16 %v216, %v213
  %v241 = vpack.c.b16 %v217, %v214
  %v314 = vunpack.c.l.b16 %v90
  %v315 = vunpack.c.l.b16 %v91
  %v316 = vunpack.c.l.b16 %v92
  %v317 = vunpack.c.l.b16 %v93
  %v318 = vunpack.c.l.b16 %v94
  %v319 = vunpack.c.l.b16 %v95
  %v320 = vunpack.c.l.b16 %v96
  %v321 = vunpack.c.l.b16 %v97
  %v322 = vunpack.c.l.b16 %v98
  %v323 = vunpack.c.l.b16 %v99
  %v324 = vunpack.c.l.b16 %v100
  %v325 = vunpack.c.l.b16 %v101
  %v326 = vunpack.c.l.b16 %v102
  %v327 = vunpack.c.l.b16 %v103
  %v328 = vunpack.c.l.b16 %v104
  %v329 = vunpack.c.l.b16 %v105
  %v330 = vunpack.c.l.b16 %v106
  %v331 = vunpack.c.l.b16 %v107
  %v332 = vunpack.c.l.b16 %v108
  %v333 = vunpack.c.l.b16 %v109
  %v334 = vunpack.c.l.b16 %v110
  %v335 = vunpack.c.l.b16 %v111
  %v336 = vunpack.c.l.b16 %v112
  %v337 = vunpack.c.l.b16 %v113
  %v338 = vunpack.c.l.b16 %v114
  %v339 = vunpack.c.l.b16 %v115
  %v340 = vunpack.c.l.b16 %v116
  %v341 = vunpack.c.l.b16 %v117
  %v342 = vunpack.c.l.b16 %v118
  %v343 = vunpack.c.l.b16 %v119
  %v344 = vunpack.c.l.b16 %v120
  %v345 = vunpack.c.l.b16 %v121
  %v346 = vunpack.c.l.b16 %v122
  %v347 = vunpack.c.l.b16 %v123
  %v348 = vunpack.c.l.b16 %v124
  %v349 = vunpack.c.l.b16 %v125
  %v350 = vunpack.c.l.b16 %v126
  %v351 = vunpack.c.l.b16 %v127
  %v352 = vunpack.c.l.b16 %v128
  %v353 = vunpack.c.l.b16 %v129
  %v354 = vunpack.c.l.b16 %v130
  %v355 = vunpack.c.l.b16 %v131
  %v356 = vunpack.c.l.b16 %v132
  %v357 = vunpack.c.l.b16 %v133
  %v358 = vunpack.c.l.b16 %v134
  %v359 = vunpack.c.l.b16 %v135
  %v360 = vunpack.c.l.b16 %v136
  %v361 = vunpack.c.l.b16 %v137
  %v362 = vpack.c.b16 %v315, %v314
  %v363 = vpack.c.b16 %v317, %v316
  %v364 = vpack.c.b16 %v319, %v318
  %v365 = vpack.c.b16 %v321, %v320
  %v366 = vpack.c.b16 %v323, %v322
  %v367 = vpack.c.b16 %v325, %v324
  %v368 = vpack.c.b16 %v327, %v326
  %v369 = vpack.c.b16 %v329, %v328
  %v370 = vpack.c.b16 %v331, %v330
  %v371 = vpack.c.b16 %v333, %v332
  %v372 = vpack.c.b16 %v335, %v334
  %v373 = vpack.c.b16 %v337, %v336
  %v374 = vpack.c.b16 %v339, %v338
  %v375 = vpack.c.b16 %v341, %v340
  %v376 = vpack.c.b16 %v343, %v342
  %v377 = vpack.c.b16 %v345, %v344
  %v378 = vpack.c.b16 %v347, %v346
  %v379 = vpack.c.b16 %v349, %v348
  %v380 = vpack.c.b16 %v351, %v350
  %v381 = vpack.c.b16 %v353, %v352
  %v382 = vpack.c.b16 %v355, %v354
  %v383 = vpack.c.b16 %v357, %v356
  %v384 = vpack.c.b16 %v359, %v358
  %v385 = vpack.c.b16 %v361, %v360
  %410 = vmatprep.subr.bf16.mxu0 0
  %411 = vmatpush1.bf16.msra.mxu0 %v369
  %412 = vmatprep.subr.bf16.mxu0 0
  %413 = vmatpush1.bf16.msra.mxu0 %v368
  %414 = vmatprep.subr.bf16.mxu0 0
  %415 = vmatpush1.bf16.msra.mxu0 %v367
  %416 = vmatprep.subr.bf16.mxu0 0
  %417 = vmatpush1.bf16.msra.mxu0 %v366
  %418 = vmatprep.subr.bf16.mxu0 0
  %419 = vmatpush1.bf16.msra.mxu0 %v365
  %420 = vmatprep.subr.bf16.mxu0 0
  %421 = vmatpush1.bf16.msra.mxu0 %v364
  %422 = vmatprep.subr.bf16.mxu0 0
  %423 = vmatpush1.bf16.msra.mxu0 %v363
  %424 = vmatprep.subr.bf16.mxu0 0
  %425 = vmatpush1.bf16.msra.mxu0 %v362
  %426 = vmatprep.subr.bf16.mxu0 0
  %427 = vmatpush2.bf16.msra.mxu0 %v377
  %428 = vmatprep.subr.bf16.mxu0 0
  %429 = vmatpush2.bf16.msra.mxu0 %v376
  %430 = vmatprep.subr.bf16.mxu0 0
  %431 = vmatpush2.bf16.msra.mxu0 %v375
  %432 = vmatprep.subr.bf16.mxu0 0
  %433 = vmatpush2.bf16.msra.mxu0 %v374
  %434 = vmatprep.subr.bf16.mxu0 0
  %435 = vmatpush2.bf16.msra.mxu0 %v373
  %436 = vmatprep.subr.bf16.mxu0 0
  %437 = vmatpush2.bf16.msra.mxu0 %v372
  %438 = vmatprep.subr.bf16.mxu0 0
  %439 = vmatpush2.bf16.msra.mxu0 %v371
  %440 = vmatprep.subr.bf16.mxu0 0
  %441 = vmatpush2.bf16.msra.mxu0 %v370
  %442 = vmatprep.mubr.bf16.mxu0 %v219
  %443 = vmatmul.mubr.bf16.gmra.mxu0 %v218
  %v444 = vpop.f32.mrf.mxu0
  %v445 = vadd.f32 0.0, %v444
  %v446 = vpop.f32.mrf.mxu0
  %v447 = vpop.f32.mrf.mxu0
  %v448 = vadd.f32 0.0, %v447
  %v449 = vpop.f32.mrf.mxu0
  %450 = vmatprep.mubr.bf16.mxu0 %v222
  %451 = vmatmul.mubr.bf16.gmra.mxu0 %v221
  %v452 = vpop.f32.mrf.mxu0
  %v453 = vadd.f32 0.0, %v452
  %v454 = vpop.f32.mrf.mxu0
  %v455 = vpop.f32.mrf.mxu0
  %v456 = vadd.f32 0.0, %v455
  %v457 = vpop.f32.mrf.mxu0
  %458 = vmatprep.mubr.bf16.mxu0 %v225
  %459 = vmatmul.mubr.bf16.gmra.mxu0 %v224
  %v460 = vpop.f32.mrf.mxu0
  %v461 = vadd.f32 0.0, %v460
  %v462 = vpop.f32.mrf.mxu0
  %v463 = vpop.f32.mrf.mxu0
  %v464 = vadd.f32 0.0, %v463
  %v465 = vpop.f32.mrf.mxu0
  %466 = vmatprep.mubr.bf16.mxu0 %v228
  %467 = vmatmul.mubr.bf16.gmra.mxu0 %v227
  %v468 = vpop.f32.mrf.mxu0
  %v469 = vadd.f32 0.0, %v468
  %v470 = vpop.f32.mrf.mxu0
  %v471 = vpop.f32.mrf.mxu0
  %v472 = vadd.f32 0.0, %v471
  %v473 = vpop.f32.mrf.mxu0
  %474 = vmatprep.mubr.bf16.mxu0 %v231
  %475 = vmatmul.mubr.bf16.gmra.mxu0 %v230
  %v476 = vpop.f32.mrf.mxu0
  %v477 = vadd.f32 0.0, %v476
  %v478 = vpop.f32.mrf.mxu0
  %v479 = vpop.f32.mrf.mxu0
  %v480 = vadd.f32 0.0, %v479
  %v481 = vpop.f32.mrf.mxu0
  %482 = vmatprep.mubr.bf16.mxu0 %v234
  %483 = vmatmul.mubr.bf16.gmra.mxu0 %v233
  %v484 = vpop.f32.mrf.mxu0
  %v485 = vadd.f32 0.0, %v484
  %v486 = vpop.f32.mrf.mxu0
  %v487 = vpop.f32.mrf.mxu0
  %v488 = vadd.f32 0.0, %v487
  %v489 = vpop.f32.mrf.mxu0
  %490 = vmatprep.mubr.bf16.mxu0 %v237
  %491 = vmatmul.mubr.bf16.gmra.mxu0 %v236
  %v492 = vpop.f32.mrf.mxu0
  %v493 = vadd.f32 0.0, %v492
  %v494 = vpop.f32.mrf.mxu0
  %v495 = vpop.f32.mrf.mxu0
  %v496 = vadd.f32 0.0, %v495
  %v497 = vpop.f32.mrf.mxu0
  %498 = vmatprep.mubr.bf16.mxu0 %v240
  %499 = vmatmul.mubr.bf16.gmra.mxu0 %v239
  %v500 = vpop.f32.mrf.mxu0
  %v501 = vadd.f32 0.0, %v500
  %v502 = vpop.f32.mrf.mxu0
  %v503 = vpop.f32.mrf.mxu0
  %v504 = vadd.f32 0.0, %v503
  %v505 = vpop.f32.mrf.mxu0
  %506 = vdwg.mxu0
  %507 = vmatprep.subr.bf16.mxu0 0
  %508 = vmatpush1.bf16.msra.mxu0 %v385
  %509 = vmatprep.subr.bf16.mxu0 0
  %510 = vmatpush1.bf16.msra.mxu0 %v384
  %511 = vmatprep.subr.bf16.mxu0 0
  %512 = vmatpush1.bf16.msra.mxu0 %v383
  %513 = vmatprep.subr.bf16.mxu0 0
  %514 = vmatpush1.bf16.msra.mxu0 %v382
  %515 = vmatprep.subr.bf16.mxu0 0
  %516 = vmatpush1.bf16.msra.mxu0 %v381
  %517 = vmatprep.subr.bf16.mxu0 0
  %518 = vmatpush1.bf16.msra.mxu0 %v380
  %519 = vmatprep.subr.bf16.mxu0 0
  %520 = vmatpush1.bf16.msra.mxu0 %v379
  %521 = vmatprep.subr.bf16.mxu0 0
  %522 = vmatpush1.bf16.msra.mxu0 %v378
  %523 = vmatprep.subr.bf16.mxu0 0
  %524 = vmatpush2.bf16.msra.mxu0 0
  %525 = vmatprep.subr.bf16.mxu0 0
  %526 = vmatpush2.bf16.msra.mxu0 0
  %527 = vmatprep.subr.bf16.mxu0 0
  %528 = vmatpush2.bf16.msra.mxu0 0
  %529 = vmatprep.subr.bf16.mxu0 0
  %530 = vmatpush2.bf16.msra.mxu0 0
  %531 = vmatprep.subr.bf16.mxu0 0
  %532 = vmatpush2.bf16.msra.mxu0 0
  %533 = vmatprep.subr.bf16.mxu0 0
  %534 = vmatpush2.bf16.msra.mxu0 0
  %535 = vmatprep.subr.bf16.mxu0 0
  %536 = vmatpush2.bf16.msra.mxu0 0
  %537 = vmatprep.subr.bf16.mxu0 0
  %538 = vmatpush2.bf16.msra.mxu0 0
  %539 = vmatprep.mubr.bf16.mxu0 0
  %540 = vmatmul.mubr.bf16.gmra.mxu0 %v220
  %v541 = vpop.f32.mrf.mxu0
  %v542 = vadd.f32 %v445, %v541
  %v543 = vpop.f32.mrf.mxu0
  %v544 = vpop.f32.mrf.mxu0
  %v545 = vadd.f32 %v448, %v544
  %v546 = vpop.f32.mrf.mxu0
  %547 = vmatprep.mubr.bf16.mxu0 0
  %548 = vmatmul.mubr.bf16.gmra.mxu0 %v223
  %v549 = vpop.f32.mrf.mxu0
  %v550 = vadd.f32 %v453, %v549
  %v551 = vpop.f32.mrf.mxu0
  %v552 = vpop.f32.mrf.mxu0
  %v553 = vadd.f32 %v456, %v552
  %v554 = vpop.f32.mrf.mxu0
  %555 = vmatprep.mubr.bf16.mxu0 0
  %556 = vmatmul.mubr.bf16.gmra.mxu0 %v226
  %v557 = vpop.f32.mrf.mxu0
  %v558 = vadd.f32 %v461, %v557
  %v559 = vpop.f32.mrf.mxu0
  %v560 = vpop.f32.mrf.mxu0
  %v561 = vadd.f32 %v464, %v560
  %v562 = vpop.f32.mrf.mxu0
  %563 = vmatprep.mubr.bf16.mxu0 0
  %564 = vmatmul.mubr.bf16.gmra.mxu0 %v229
  %v565 = vpop.f32.mrf.mxu0
  %v566 = vadd.f32 %v469, %v565
  %v567 = vpop.f32.mrf.mxu0
  %v568 = vpop.f32.mrf.mxu0
  %v569 = vadd.f32 %v472, %v568
  %v570 = vpop.f32.mrf.mxu0
  %571 = vmatprep.mubr.bf16.mxu0 0
  %572 = vmatmul.mubr.bf16.gmra.mxu0 %v232
  %v573 = vpop.f32.mrf.mxu0
  %v574 = vadd.f32 %v477, %v573
  %v575 = vpop.f32.mrf.mxu0
  %v576 = vpop.f32.mrf.mxu0
  %v577 = vadd.f32 %v480, %v576
  %v578 = vpop.f32.mrf.mxu0
  %579 = vmatprep.mubr.bf16.mxu0 0
  %580 = vmatmul.mubr.bf16.gmra.mxu0 %v235
  %v581 = vpop.f32.mrf.mxu0
  %v582 = vadd.f32 %v485, %v581
  %v583 = vpop.f32.mrf.mxu0
  %v584 = vpop.f32.mrf.mxu0
  %v585 = vadd.f32 %v488, %v584
  %v586 = vpop.f32.mrf.mxu0
  %587 = vmatprep.mubr.bf16.mxu0 0
  %588 = vmatmul.mubr.bf16.gmra.mxu0 %v238
  %v589 = vpop.f32.mrf.mxu0
  %v590 = vadd.f32 %v493, %v589
  %v591 = vpop.f32.mrf.mxu0
  %v592 = vpop.f32.mrf.mxu0
  %v593 = vadd.f32 %v496, %v592
  %v594 = vpop.f32.mrf.mxu0
  %595 = vmatprep.mubr.bf16.mxu0 0
  %596 = vmatmul.mubr.bf16.gmra.mxu0 %v241
  %v597 = vpop.f32.mrf.mxu0
  %v598 = vadd.f32 %v501, %v597
  %v599 = vpop.f32.mrf.mxu0
  %v600 = vpop.f32.mrf.mxu0
  %v601 = vadd.f32 %v504, %v600
  %v602 = vpop.f32.mrf.mxu0
  %603 = vdwg.mxu0
  %v604 = vadd.f32 %v42, %v542
  %v605 = vadd.f32 %v43, %v545
  %v606 = vadd.f32 %v44, %v550
  %v607 = vadd.f32 %v45, %v553
  %v608 = vadd.f32 %v46, %v558
  %v609 = vadd.f32 %v47, %v561
  %v610 = vadd.f32 %v48, %v566
  %v611 = vadd.f32 %v49, %v569
  %v612 = vadd.f32 %v50, %v574
  %v613 = vadd.f32 %v51, %v577
  %v614 = vadd.f32 %v52, %v582
  %v615 = vadd.f32 %v53, %v585
  %v616 = vadd.f32 %v54, %v590
  %v617 = vadd.f32 %v55, %v593
  %v618 = vadd.f32 %v56, %v598
  %v619 = vadd.f32 %v57, %v601
  %620 = vst [vmem:[#allocation2] sm:$0xff] %v604
  %621 = vst [vmem:[#allocation2 + $0x8] sm:$0xff] %v605
  %622 = vst [vmem:[#allocation2 + $0x10] sm:$0xff] %v606
  %623 = vst [vmem:[#allocation2 + $0x18] sm:$0xff] %v607
  %624 = vst [vmem:[#allocation2 + $0x20] sm:$0xff] %v608
  %625 = vst [vmem:[#allocation2 + $0x28] sm:$0xff] %v609
  %626 = vst [vmem:[#allocation2 + $0x30] sm:$0xff] %v610
  %627 = vst [vmem:[#allocation2 + $0x38] sm:$0xff] %v611
  %628 = vst [vmem:[#allocation2 + $0x40] sm:$0xff] %v612
  %629 = vst [vmem:[#allocation2 + $0x48] sm:$0xff] %v613
  %630 = vst [vmem:[#allocation2 + $0x50] sm:$0xff] %v614
  %631 = vst [vmem:[#allocation2 + $0x58] sm:$0xff] %v615
  %632 = vst [vmem:[#allocation2 + $0x60] sm:$0xff] %v616
  %633 = vst [vmem:[#allocation2 + $0x68] sm:$0xff] %v617
  %634 = vst [vmem:[#allocation2 + $0x70] sm:$0xff] %v618
  %635 = vst [vmem:[#allocation2 + $0x78] sm:$0xff] %v619
  // Predicated region
  $region18: #{forward.11} parent=0 // pred_check
    %p636 = pneg %p15
  $region19: #{forward.11} parent=0 // pred_check_branch
    %638 = sbr.rel (%p636) target = $region21
  $region20: #{forward.11} parent=0 // pred_region
    %v639 = vld [vmem:[#allocation2] sm:$0xff]
    %v640 = vld [vmem:[#allocation2 + $0x8] sm:$0xff]
    %v641 = vld [vmem:[#allocation2 + $0x10] sm:$0xff]
    %v642 = vld [vmem:[#allocation2 + $0x18] sm:$0xff]
    %v643 = vld [vmem:[#allocation2 + $0x20] sm:$0xff]
    %v644 = vld [vmem:[#allocation2 + $0x28] sm:$0xff]
    %v645 = vld [vmem:[#allocation2 + $0x30] sm:$0xff]
    %v646 = vld [vmem:[#allocation2 + $0x38] sm:$0xff]
    %v647 = vld [vmem:[#allocation2 + $0x40] sm:$0xff]
    %v648 = vld [vmem:[#allocation2 + $0x48] sm:$0xff]
    %v649 = vld [vmem:[#allocation2 + $0x50] sm:$0xff]
    %v650 = vld [vmem:[#allocation2 + $0x58] sm:$0xff]
    %v651 = vld [vmem:[#allocation2 + $0x60] sm:$0xff]
    %v652 = vld [vmem:[#allocation2 + $0x68] sm:$0xff]
    %v653 = vld [vmem:[#allocation2 + $0x70] sm:$0xff]
    %v654 = vld [vmem:[#allocation2 + $0x78] sm:$0xff]
    %vm655 = vcmp.gt.f32.partialorder %v639, 0.0
    %vm656 = vcmp.gt.f32.partialorder %v640, 0.0
    %vm657 = vcmp.gt.f32.partialorder %v641, 0.0
    %vm658 = vcmp.gt.f32.partialorder %v642, 0.0
    %vm659 = vcmp.gt.f32.partialorder %v643, 0.0
    %vm660 = vcmp.gt.f32.partialorder %v644, 0.0
    %vm661 = vcmp.gt.f32.partialorder %v645, 0.0
    %vm662 = vcmp.gt.f32.partialorder %v646, 0.0
    %vm663 = vcmp.gt.f32.partialorder %v647, 0.0
    %vm664 = vcmp.gt.f32.partialorder %v648, 0.0
    %vm665 = vcmp.gt.f32.partialorder %v649, 0.0
    %vm666 = vcmp.gt.f32.partialorder %v650, 0.0
    %vm667 = vcmp.gt.f32.partialorder %v651, 0.0
    %vm668 = vcmp.gt.f32.partialorder %v652, 0.0
    %vm669 = vcmp.gt.f32.partialorder %v653, 0.0
    %vm670 = vcmp.gt.f32.partialorder %v654, 0.0
    %v671 = vmin.f32 %v639, 0.0
    %v672 = vmin.f32 %v640, 0.0
    %v673 = vmin.f32 %v641, 0.0
    %v674 = vmin.f32 %v642, 0.0
    %v675 = vmin.f32 %v643, 0.0
    %v676 = vmin.f32 %v644, 0.0
    %v677 = vmin.f32 %v645, 0.0
    %v678 = vmin.f32 %v646, 0.0
    %v679 = vmin.f32 %v647, 0.0
    %v680 = vmin.f32 %v648, 0.0
    %v681 = vmin.f32 %v649, 0.0
    %v682 = vmin.f32 %v650, 0.0
    %v683 = vmin.f32 %v651, 0.0
    %v684 = vmin.f32 %v652, 0.0
    %v685 = vmin.f32 %v653, 0.0
    %v686 = vmin.f32 %v654, 0.0
    %v687 = vmul.f32 %v671, 1.442695
    %v688 = vpow.pop %v687
    %v689 = vmul.f32 %v672, 1.442695
    %v690 = vpow.pop %v689
    %v691 = vmul.f32 %v673, 1.442695
    %v692 = vpow.pop %v691
    %v693 = vmul.f32 %v674, 1.442695
    %v694 = vpow.pop %v693
    %v695 = vmul.f32 %v675, 1.442695
    %v696 = vpow.pop %v695
    %v697 = vmul.f32 %v676, 1.442695
    %v698 = vpow.pop %v697
    %v699 = vmul.f32 %v677, 1.442695
    %v700 = vpow.pop %v699
    %v701 = vmul.f32 %v678, 1.442695
    %v702 = vpow.pop %v701
    %v703 = vmul.f32 %v679, 1.442695
    %v704 = vpow.pop %v703
    %v705 = vmul.f32 %v680, 1.442695
    %v706 = vpow.pop %v705
    %v707 = vmul.f32 %v681, 1.442695
    %v708 = vpow.pop %v707
    %v709 = vmul.f32 %v682, 1.442695
    %v710 = vpow.pop %v709
    %v711 = vmul.f32 %v683, 1.442695
    %v712 = vpow.pop %v711
    %v713 = vmul.f32 %v684, 1.442695
    %v714 = vpow.pop %v713
    %v715 = vmul.f32 %v685, 1.442695
    %v716 = vpow.pop %v715
    %v717 = vmul.f32 %v686, 1.442695
    %v718 = vpow.pop %v717
    %v719 = vsub.f32 %v688, 1.0
    %v720 = vsub.f32 %v690, 1.0
    %v721 = vsub.f32 %v692, 1.0
    %v722 = vsub.f32 %v694, 1.0
    %v723 = vsub.f32 %v696, 1.0
    %v724 = vsub.f32 %v698, 1.0
    %v725 = vsub.f32 %v700, 1.0
    %v726 = vsub.f32 %v702, 1.0
    %v727 = vsub.f32 %v704, 1.0
    %v728 = vsub.f32 %v706, 1.0
    %v729 = vsub.f32 %v708, 1.0
    %v730 = vsub.f32 %v710, 1.0
    %v731 = vsub.f32 %v712, 1.0
    %v732 = vsub.f32 %v714, 1.0
    %v733 = vsub.f32 %v716, 1.0
    %v734 = vsub.f32 %v718, 1.0
    %v735 = vsel %vm655, %v639, %v719
    %v736 = vsel %vm656, %v640, %v720
    %v737 = vsel %vm657, %v641, %v721
    %v738 = vsel %vm658, %v642, %v722
    %v739 = vsel %vm659, %v643, %v723
    %v740 = vsel %vm660, %v644, %v724
    %v741 = vsel %vm661, %v645, %v725
    %v742 = vsel %vm662, %v646, %v726
    %v743 = vsel %vm663, %v647, %v727
    %v744 = vsel %vm664, %v648, %v728
    %v745 = vsel %vm665, %v649, %v729
    %v746 = vsel %vm666, %v650, %v730
    %v747 = vsel %vm667, %v651, %v731
    %v748 = vsel %vm668, %v652, %v732
    %v749 = vsel %vm669, %v653, %v733
    %v750 = vsel %vm670, %v654, %v734
    %v751 = vpack.c.bf16 %v736, %v735
    %v752 = vpack.c.bf16 %v738, %v737
    %v753 = vpack.c.bf16 %v740, %v739
    %v754 = vpack.c.bf16 %v742, %v741
    %v755 = vpack.c.bf16 %v744, %v743
    %v756 = vpack.c.bf16 %v746, %v745
    %v757 = vpack.c.bf16 %v748, %v747
    %v758 = vpack.c.bf16 %v750, %v749
    %v767 = vunpack.c.l.b16 %v751
    %v768 = vunpack.c.h.b16 %v751
    %v769 = vunpack.c.l.b16 %v752
    %v770 = vunpack.c.h.b16 %v752
    %v771 = vunpack.c.l.b16 %v753
    %v772 = vunpack.c.h.b16 %v753
    %v773 = vunpack.c.l.b16 %v754
    %v774 = vunpack.c.h.b16 %v754
    %v775 = vunpack.c.l.b16 %v755
    %v776 = vunpack.c.h.b16 %v755
    %v777 = vunpack.c.l.b16 %v756
    %v778 = vunpack.c.h.b16 %v756
    %v779 = vunpack.c.l.b16 %v757
    %v780 = vunpack.c.h.b16 %v757
    %v781 = vunpack.c.l.b16 %v758
    %v782 = vunpack.c.h.b16 %v758
    %v783 = vpack.c.b16 %v767, %v767
    %v784 = vpack.c.b16 %v768, %v768
    %v785 = vpack.c.b16 %v769, %v769
    %v786 = vpack.c.b16 %v770, %v770
    %v787 = vpack.c.b16 %v771, %v771
    %v788 = vpack.c.b16 %v772, %v772
    %v789 = vpack.c.b16 %v773, %v773
    %v790 = vpack.c.b16 %v774, %v774
    %v791 = vpack.c.b16 %v775, %v775
    %v792 = vpack.c.b16 %v776, %v776
    %v793 = vpack.c.b16 %v777, %v777
    %v794 = vpack.c.b16 %v778, %v778
    %v795 = vpack.c.b16 %v779, %v779
    %v796 = vpack.c.b16 %v780, %v780
    %v797 = vpack.c.b16 %v781, %v781
    %v798 = vpack.c.b16 %v782, %v782
    %815 = vst [vmem:[%s3] sm:$0xf] %v783
    %816 = vst [vmem:[%s3 + $0x4] sm:$0xf] %v784
    %817 = vst [vmem:[%s3 + $0x8] sm:$0xf] %v785
    %818 = vst [vmem:[%s3 + $0xc] sm:$0xf] %v786
    %819 = vst [vmem:[%s3 + $0x10] sm:$0xf] %v787
    %820 = vst [vmem:[%s3 + $0x14] sm:$0xf] %v788
    %821 = vst [vmem:[%s3 + $0x18] sm:$0xf] %v789
    %822 = vst [vmem:[%s3 + $0x1c] sm:$0xf] %v790
    %823 = vst [vmem:[%s3 + $0x20] sm:$0xf] %v791
    %824 = vst [vmem:[%s3 + $0x24] sm:$0xf] %v792
    %825 = vst [vmem:[%s3 + $0x28] sm:$0xf] %v793
    %826 = vst [vmem:[%s3 + $0x2c] sm:$0xf] %v794
    %827 = vst [vmem:[%s3 + $0x30] sm:$0xf] %v795
    %828 = vst [vmem:[%s3 + $0x34] sm:$0xf] %v796
    %829 = vst [vmem:[%s3 + $0x38] sm:$0xf] %v797
    %830 = vst [vmem:[%s3 + $0x3c] sm:$0xf] %v798
  $region21: #{forward.11} parent=0 // pred_fallthru
    _
  // Predicated region
  $region22: #{forward.11} parent=0 // pred_check
    _
  $region23: #{forward.11} parent=0 // pred_check_branch
    %832 = sbr.rel (0) target = $region25
  $region24: #{forward.11} parent=0 // pred_region
    _
  $region25: #{forward.11} parent=0 // pred_fallthru
    _
  // Predicated region
  $region26: #{forward.11} parent=0 // pred_check
    _
  $region27: #{forward.11} parent=0 // pred_check_branch
    %834 = sbr.rel (0) target = $region29
  $region28: #{forward.11} parent=0 // pred_region
    _
  $region29: #{forward.11} parent=0 // pred_fallthru
    _

// kernel: forward.12
$region0: #{forward.12}
  #allocation0 [shape = 'u32[]', space=smem, size = 0x4, offset = 0x4, fixed_abs, tag = 'smem constant byte address 0x4 - core index']
  #allocation1 [shape = 'u32[144,128]{1,0:T(1,128)}', space=vmem, size = 0x12000, scoped, tag = 'internal scratch']
  #allocation2 [shape = 'f32[128,128]{1,0:T(8,128)}', space=vmem, size = 0x10000, scoped, tag = 'scratch operand']
  %s0 = inlined_call_operand.vmem [shape: bf16[128,128], index: 0, kind: input, shape index: {}]
  %s1 = inlined_call_operand.vmem [shape: bf16[128,128], index: 1, kind: input, shape index: {}]
  %s2 = inlined_call_operand.vmem [shape: f32[1,128], index: 2, kind: input, shape index: {}]
  %s3 = inlined_call_operand.vmem [shape: bf16[128,128], index: 3, kind: output, shape index: {}]
  %s4 = sld [smem:[#allocation0]]
  $region30: #{forward.12} parent=0
    _
  %s6 = ssub.s32 1, %s4
  %s7 = scalar_select 0, %s6, %s4
  // Predicated region
  $region2: #{forward.12} parent=0 // pred_check
    _
  $region3: #{forward.12} parent=0 // pred_check_branch
    %9 = sbr.rel (0) target = $region5
  $region4: #{forward.12} parent=0 // pred_region
    _
  $region5: #{forward.12} parent=0 // pred_fallthru
    _
  // Predicated region
  $region6: #{forward.12} parent=0 // pred_check
    _
  $region7: #{forward.12} parent=0 // pred_check_branch
    %11 = sbr.rel (0) target = $region9
  $region8: #{forward.12} parent=0 // pred_region
    _
  $region9: #{forward.12} parent=0 // pred_fallthru
    _
  // Predicated region
  $region10: #{forward.12} parent=0 // pred_check
    _
  $region11: #{forward.12} parent=0 // pred_check_branch
    %13 = sbr.rel (0) target = $region13
  $region12: #{forward.12} parent=0 // pred_region
    _
  $region13: #{forward.12} parent=0 // pred_fallthru
    _
  %p15 = scmp.eq.s32.totalorder 0, 0
  // Predicated region
  $region14: #{forward.12} parent=0 // pred_check
    %p16 = pneg %p15
  $region15: #{forward.12} parent=0 // pred_check_branch
    %18 = sbr.rel (%p16) target = $region17
  $region16: #{forward.12} parent=0 // pred_region
    %v19 = vld [vmem:[%s2] sm:$0x1]
    %v21 = vlaneseq
    %v22 = vshrl.u32 %v21, 7
    %v23 = vsub.s32 0, %v22
    %v24 = vrot.slane %v19, %v23
    %26 = vst [vmem:[#allocation2] sm:$0xff] %v24
    %27 = vst [vmem:[#allocation2 + $0x8] sm:$0xff] %v24
    %28 = vst [vmem:[#allocation2 + $0x10] sm:$0xff] %v24
    %29 = vst [vmem:[#allocation2 + $0x18] sm:$0xff] %v24
    %30 = vst [vmem:[#allocation2 + $0x20] sm:$0xff] %v24
    %31 = vst [vmem:[#allocation2 + $0x28] sm:$0xff] %v24
    %32 = vst [vmem:[#allocation2 + $0x30] sm:$0xff] %v24
    %33 = vst [vmem:[#allocation2 + $0x38] sm:$0xff] %v24
    %34 = vst [vmem:[#allocation2 + $0x40] sm:$0xff] %v24
    %35 = vst [vmem:[#allocation2 + $0x48] sm:$0xff] %v24
    %36 = vst [vmem:[#allocation2 + $0x50] sm:$0xff] %v24
    %37 = vst [vmem:[#allocation2 + $0x58] sm:$0xff] %v24
    %38 = vst [vmem:[#allocation2 + $0x60] sm:$0xff] %v24
    %39 = vst [vmem:[#allocation2 + $0x68] sm:$0xff] %v24
    %40 = vst [vmem:[#allocation2 + $0x70] sm:$0xff] %v24
    %41 = vst [vmem:[#allocation2 + $0x78] sm:$0xff] %v24
  $region17: #{forward.12} parent=0 // pred_fallthru
    _
  %v42 = vld [vmem:[#allocation2] sm:$0xff]
  %v43 = vld [vmem:[#allocation2 + $0x8] sm:$0xff]
  %v44 = vld [vmem:[#allocation2 + $0x10] sm:$0xff]
  %v45 = vld [vmem:[#allocation2 + $0x18] sm:$0xff]
  %v46 = vld [vmem:[#allocation2 + $0x20] sm:$0xff]
  %v47 = vld [vmem:[#allocation2 + $0x28] sm:$0xff]
  %v48 = vld [vmem:[#allocation2 + $0x30] sm:$0xff]
  %v49 = vld [vmem:[#allocation2 + $0x38] sm:$0xff]
  %v50 = vld [vmem:[#allocation2 + $0x40] sm:$0xff]
  %v51 = vld [vmem:[#allocation2 + $0x48] sm:$0xff]
  %v52 = vld [vmem:[#allocation2 + $0x50] sm:$0xff]
  %v53 = vld [vmem:[#allocation2 + $0x58] sm:$0xff]
  %v54 = vld [vmem:[#allocation2 + $0x60] sm:$0xff]
  %v55 = vld [vmem:[#allocation2 + $0x68] sm:$0xff]
  %v56 = vld [vmem:[#allocation2 + $0x70] sm:$0xff]
  %v57 = vld [vmem:[#allocation2 + $0x78] sm:$0xff]
  %v58 = vld [vmem:[%s0] sm:$0xf]
  %v59 = vld [vmem:[%s0 + $0x4] sm:$0xf]
  %v60 = vld [vmem:[%s0 + $0x8] sm:$0xf]
  %v61 = vld [vmem:[%s0 + $0xc] sm:$0xf]
  %v62 = vld [vmem:[%s0 + $0x10] sm:$0xf]
  %v63 = vld [vmem:[%s0 + $0x14] sm:$0xf]
  %v64 = vld [vmem:[%s0 + $0x18] sm:$0xf]
  %v65 = vld [vmem:[%s0 + $0x1c] sm:$0xf]
  %v66 = vld [vmem:[%s0 + $0x20] sm:$0xf]
  %v67 = vld [vmem:[%s0 + $0x24] sm:$0xf]
  %v68 = vld [vmem:[%s0 + $0x28] sm:$0xf]
  %v69 = vld [vmem:[%s0 + $0x2c] sm:$0xf]
  %v70 = vld [vmem:[%s0 + $0x30] sm:$0xf]
  %v71 = vld [vmem:[%s0 + $0x34] sm:$0xf]
  %v72 = vld [vmem:[%s0 + $0x38] sm:$0xf]
  %v73 = vld [vmem:[%s0 + $0x3c] sm:$0xf]
  %v74 = vld [vmem:[%s1] sm:$0xf]
  %v75 = vld [vmem:[%s1 + $0x4] sm:$0xf]
  %v76 = vld [vmem:[%s1 + $0x8] sm:$0xf]
  %v77 = vld [vmem:[%s1 + $0xc] sm:$0xf]
  %v78 = vld [vmem:[%s1 + $0x10] sm:$0xf]
  %v79 = vld [vmem:[%s1 + $0x14] sm:$0xf]
  %v80 = vld [vmem:[%s1 + $0x18] sm:$0xf]
  %v81 = vld [vmem:[%s1 + $0x1c] sm:$0xf]
  %v82 = vld [vmem:[%s1 + $0x20] sm:$0xf]
  %v83 = vld [vmem:[%s1 + $0x24] sm:$0xf]
  %v84 = vld [vmem:[%s1 + $0x28] sm:$0xf]
  %v85 = vld [vmem:[%s1 + $0x2c] sm:$0xf]
  %v86 = vld [vmem:[%s1 + $0x30] sm:$0xf]
  %v87 = vld [vmem:[%s1 + $0x34] sm:$0xf]
  %v88 = vld [vmem:[%s1 + $0x38] sm:$0xf]
  %v89 = vld [vmem:[%s1 + $0x3c] sm:$0xf]
  %v106 = vunpack.c.l.b16 %v58
  %v107 = vunpack.c.l.b16 %v59
  %v108 = vunpack.c.l.b16 %v60
  %v109 = vunpack.c.l.b16 %v61
  %v110 = vunpack.c.l.b16 %v62
  %v111 = vunpack.c.l.b16 %v63
  %v112 = vunpack.c.l.b16 %v64
  %v113 = vunpack.c.l.b16 %v65
  %v114 = vunpack.c.l.b16 %v66
  %v115 = vunpack.c.l.b16 %v67
  %v116 = vunpack.c.l.b16 %v68
  %v117 = vunpack.c.l.b16 %v69
  %v118 = vunpack.c.l.b16 %v70
  %v119 = vunpack.c.l.b16 %v71
  %v120 = vunpack.c.l.b16 %v72
  %v121 = vunpack.c.l.b16 %v73
  %v122 = vpack.c.b16 %v107, %v106
  %v123 = vpack.c.b16 %v109, %v108
  %v124 = vpack.c.b16 %v111, %v110
  %v125 = vpack.c.b16 %v113, %v112
  %v126 = vpack.c.b16 %v115, %v114
  %v127 = vpack.c.b16 %v117, %v116
  %v128 = vpack.c.b16 %v119, %v118
  %v129 = vpack.c.b16 %v121, %v120
  %v154 = vunpack.c.l.b16 %v74
  %v155 = vunpack.c.l.b16 %v75
  %v156 = vunpack.c.l.b16 %v76
  %v157 = vunpack.c.l.b16 %v77
  %v158 = vunpack.c.l.b16 %v78
  %v159 = vunpack.c.l.b16 %v79
  %v160 = vunpack.c.l.b16 %v80
  %v161 = vunpack.c.l.b16 %v81
  %v162 = vunpack.c.l.b16 %v82
  %v163 = vunpack.c.l.b16 %v83
  %v164 = vunpack.c.l.b16 %v84
  %v165 = vunpack.c.l.b16 %v85
  %v166 = vunpack.c.l.b16 %v86
  %v167 = vunpack.c.l.b16 %v87
  %v168 = vunpack.c.l.b16 %v88
  %v169 = vunpack.c.l.b16 %v89
  %v170 = vpack.c.b16 %v155, %v154
  %v171 = vpack.c.b16 %v157, %v156
  %v172 = vpack.c.b16 %v159, %v158
  %v173 = vpack.c.b16 %v161, %v160
  %v174 = vpack.c.b16 %v163, %v162
  %v175 = vpack.c.b16 %v165, %v164
  %v176 = vpack.c.b16 %v167, %v166
  %v177 = vpack.c.b16 %v169, %v168
  %186 = vmatprep.subr.bf16.mxu0 0
  %187 = vmatpush1.bf16.msra.mxu0 %v177
  %188 = vmatprep.subr.bf16.mxu0 0
  %189 = vmatpush1.bf16.msra.mxu0 %v176
  %190 = vmatprep.subr.bf16.mxu0 0
  %191 = vmatpush1.bf16.msra.mxu0 %v175
  %192 = vmatprep.subr.bf16.mxu0 0
  %193 = vmatpush1.bf16.msra.mxu0 %v174
  %194 = vmatprep.subr.bf16.mxu0 0
  %195 = vmatpush1.bf16.msra.mxu0 %v173
  %196 = vmatprep.subr.bf16.mxu0 0
  %197 = vmatpush1.bf16.msra.mxu0 %v172
  %198 = vmatprep.subr.bf16.mxu0 0
  %199 = vmatpush1.bf16.msra.mxu0 %v171
  %200 = vmatprep.subr.bf16.mxu0 0
  %201 = vmatpush1.bf16.msra.mxu0 %v170
  %202 = vmatprep.subr.bf16.mxu0 0
  %203 = vmatpush2.bf16.msra.mxu0 0
  %204 = vmatprep.subr.bf16.mxu0 0
  %205 = vmatpush2.bf16.msra.mxu0 0
  %206 = vmatprep.subr.bf16.mxu0 0
  %207 = vmatpush2.bf16.msra.mxu0 0
  %208 = vmatprep.subr.bf16.mxu0 0
  %209 = vmatpush2.bf16.msra.mxu0 0
  %210 = vmatprep.subr.bf16.mxu0 0
  %211 = vmatpush2.bf16.msra.mxu0 0
  %212 = vmatprep.subr.bf16.mxu0 0
  %213 = vmatpush2.bf16.msra.mxu0 0
  %214 = vmatprep.subr.bf16.mxu0 0
  %215 = vmatpush2.bf16.msra.mxu0 0
  %216 = vmatprep.subr.bf16.mxu0 0
  %217 = vmatpush2.bf16.msra.mxu0 0
  %218 = vmatprep.mubr.bf16.mxu0 0
  %219 = vmatmul.mubr.bf16.gmra.mxu0 %v122
  %v220 = vpop.f32.mrf.mxu0
  %v221 = vadd.f32 0.0, %v220
  %v222 = vpop.f32.mrf.mxu0
  %v223 = vpop.f32.mrf.mxu0
  %v224 = vadd.f32 0.0, %v223
  %v225 = vpop.f32.mrf.mxu0
  %226 = vmatprep.mubr.bf16.mxu0 0
  %227 = vmatmul.mubr.bf16.gmra.mxu0 %v123
  %v228 = vpop.f32.mrf.mxu0
  %v229 = vadd.f32 0.0, %v228
  %v230 = vpop.f32.mrf.mxu0
  %v231 = vpop.f32.mrf.mxu0
  %v232 = vadd.f32 0.0, %v231
  %v233 = vpop.f32.mrf.mxu0
  %234 = vmatprep.mubr.bf16.mxu0 0
  %235 = vmatmul.mubr.bf16.gmra.mxu0 %v124
  %v236 = vpop.f32.mrf.mxu0
  %v237 = vadd.f32 0.0, %v236
  %v238 = vpop.f32.mrf.mxu0
  %v239 = vpop.f32.mrf.mxu0
  %v240 = vadd.f32 0.0, %v239
  %v241 = vpop.f32.mrf.mxu0
  %242 = vmatprep.mubr.bf16.mxu0 0
  %243 = vmatmul.mubr.bf16.gmra.mxu0 %v125
  %v244 = vpop.f32.mrf.mxu0
  %v245 = vadd.f32 0.0, %v244
  %v246 = vpop.f32.mrf.mxu0
  %v247 = vpop.f32.mrf.mxu0
  %v248 = vadd.f32 0.0, %v247
  %v249 = vpop.f32.mrf.mxu0
  %250 = vmatprep.mubr.bf16.mxu0 0
  %251 = vmatmul.mubr.bf16.gmra.mxu0 %v126
  %v252 = vpop.f32.mrf.mxu0
  %v253 = vadd.f32 0.0, %v252
  %v254 = vpop.f32.mrf.mxu0
  %v255 = vpop.f32.mrf.mxu0
  %v256 = vadd.f32 0.0, %v255
  %v257 = vpop.f32.mrf.mxu0
  %258 = vmatprep.mubr.bf16.mxu0 0
  %259 = vmatmul.mubr.bf16.gmra.mxu0 %v127
  %v260 = vpop.f32.mrf.mxu0
  %v261 = vadd.f32 0.0, %v260
  %v262 = vpop.f32.mrf.mxu0
  %v263 = vpop.f32.mrf.mxu0
  %v264 = vadd.f32 0.0, %v263
  %v265 = vpop.f32.mrf.mxu0
  %266 = vmatprep.mubr.bf16.mxu0 0
  %267 = vmatmul.mubr.bf16.gmra.mxu0 %v128
  %v268 = vpop.f32.mrf.mxu0
  %v269 = vadd.f32 0.0, %v268
  %v270 = vpop.f32.mrf.mxu0
  %v271 = vpop.f32.mrf.mxu0
  %v272 = vadd.f32 0.0, %v271
  %v273 = vpop.f32.mrf.mxu0
  %274 = vmatprep.mubr.bf16.mxu0 0
  %275 = vmatmul.mubr.bf16.gmra.mxu0 %v129
  %v276 = vpop.f32.mrf.mxu0
  %v277 = vadd.f32 0.0, %v276
  %v278 = vpop.f32.mrf.mxu0
  %v279 = vpop.f32.mrf.mxu0
  %v280 = vadd.f32 0.0, %v279
  %v281 = vpop.f32.mrf.mxu0
  %282 = vdwg.mxu0
  %v283 = vadd.f32 %v42, %v221
  %v284 = vadd.f32 %v43, %v224
  %v285 = vadd.f32 %v44, %v229
  %v286 = vadd.f32 %v45, %v232
  %v287 = vadd.f32 %v46, %v237
  %v288 = vadd.f32 %v47, %v240
  %v289 = vadd.f32 %v48, %v245
  %v290 = vadd.f32 %v49, %v248
  %v291 = vadd.f32 %v50, %v253
  %v292 = vadd.f32 %v51, %v256
  %v293 = vadd.f32 %v52, %v261
  %v294 = vadd.f32 %v53, %v264
  %v295 = vadd.f32 %v54, %v269
  %v296 = vadd.f32 %v55, %v272
  %v297 = vadd.f32 %v56, %v277
  %v298 = vadd.f32 %v57, %v280
  %299 = vst [vmem:[#allocation2] sm:$0xff] %v283
  %300 = vst [vmem:[#allocation2 + $0x8] sm:$0xff] %v284
  %301 = vst [vmem:[#allocation2 + $0x10] sm:$0xff] %v285
  %302 = vst [vmem:[#allocation2 + $0x18] sm:$0xff] %v286
  %303 = vst [vmem:[#allocation2 + $0x20] sm:$0xff] %v287
  %304 = vst [vmem:[#allocation2 + $0x28] sm:$0xff] %v288
  %305 = vst [vmem:[#allocation2 + $0x30] sm:$0xff] %v289
  %306 = vst [vmem:[#allocation2 + $0x38] sm:$0xff] %v290
  %307 = vst [vmem:[#allocation2 + $0x40] sm:$0xff] %v291
  %308 = vst [vmem:[#allocation2 + $0x48] sm:$0xff] %v292
  %309 = vst [vmem:[#allocation2 + $0x50] sm:$0xff] %v293
  %310 = vst [vmem:[#allocation2 + $0x58] sm:$0xff] %v294
  %311 = vst [vmem:[#allocation2 + $0x60] sm:$0xff] %v295
  %312 = vst [vmem:[#allocation2 + $0x68] sm:$0xff] %v296
  %313 = vst [vmem:[#allocation2 + $0x70] sm:$0xff] %v297
  %314 = vst [vmem:[#allocation2 + $0x78] sm:$0xff] %v298
  // Predicated region
  $region18: #{forward.12} parent=0 // pred_check
    %p315 = pneg %p15
  $region19: #{forward.12} parent=0 // pred_check_branch
    %317 = sbr.rel (%p315) target = $region21
  $region20: #{forward.12} parent=0 // pred_region
    %v318 = vld [vmem:[#allocation2] sm:$0xff]
    %v319 = vld [vmem:[#allocation2 + $0x8] sm:$0xff]
    %v320 = vld [vmem:[#allocation2 + $0x10] sm:$0xff]
    %v321 = vld [vmem:[#allocation2 + $0x18] sm:$0xff]
    %v322 = vld [vmem:[#allocation2 + $0x20] sm:$0xff]
    %v323 = vld [vmem:[#allocation2 + $0x28] sm:$0xff]
    %v324 = vld [vmem:[#allocation2 + $0x30] sm:$0xff]
    %v325 = vld [vmem:[#allocation2 + $0x38] sm:$0xff]
    %v326 = vld [vmem:[#allocation2 + $0x40] sm:$0xff]
    %v327 = vld [vmem:[#allocation2 + $0x48] sm:$0xff]
    %v328 = vld [vmem:[#allocation2 + $0x50] sm:$0xff]
    %v329 = vld [vmem:[#allocation2 + $0x58] sm:$0xff]
    %v330 = vld [vmem:[#allocation2 + $0x60] sm:$0xff]
    %v331 = vld [vmem:[#allocation2 + $0x68] sm:$0xff]
    %v332 = vld [vmem:[#allocation2 + $0x70] sm:$0xff]
    %v333 = vld [vmem:[#allocation2 + $0x78] sm:$0xff]
    %v334 = vpack.c.bf16 %v319, %v318
    %v335 = vpack.c.bf16 %v321, %v320
    %v336 = vpack.c.bf16 %v323, %v322
    %v337 = vpack.c.bf16 %v325, %v324
    %v338 = vpack.c.bf16 %v327, %v326
    %v339 = vpack.c.bf16 %v329, %v328
    %v340 = vpack.c.bf16 %v331, %v330
    %v341 = vpack.c.bf16 %v333, %v332
    %v350 = vunpack.c.l.b16 %v334
    %v351 = vunpack.c.h.b16 %v334
    %v352 = vunpack.c.l.b16 %v335
    %v353 = vunpack.c.h.b16 %v335
    %v354 = vunpack.c.l.b16 %v336
    %v355 = vunpack.c.h.b16 %v336
    %v356 = vunpack.c.l.b16 %v337
    %v357 = vunpack.c.h.b16 %v337
    %v358 = vunpack.c.l.b16 %v338
    %v359 = vunpack.c.h.b16 %v338
    %v360 = vunpack.c.l.b16 %v339
    %v361 = vunpack.c.h.b16 %v339
    %v362 = vunpack.c.l.b16 %v340
    %v363 = vunpack.c.h.b16 %v340
    %v364 = vunpack.c.l.b16 %v341
    %v365 = vunpack.c.h.b16 %v341
    %v366 = vpack.c.b16 %v350, %v350
    %v367 = vpack.c.b16 %v351, %v351
    %v368 = vpack.c.b16 %v352, %v352
    %v369 = vpack.c.b16 %v353, %v353
    %v370 = vpack.c.b16 %v354, %v354
    %v371 = vpack.c.b16 %v355, %v355
    %v372 = vpack.c.b16 %v356, %v356
    %v373 = vpack.c.b16 %v357, %v357
    %v374 = vpack.c.b16 %v358, %v358
    %v375 = vpack.c.b16 %v359, %v359
    %v376 = vpack.c.b16 %v360, %v360
    %v377 = vpack.c.b16 %v361, %v361
    %v378 = vpack.c.b16 %v362, %v362
    %v379 = vpack.c.b16 %v363, %v363
    %v380 = vpack.c.b16 %v364, %v364
    %v381 = vpack.c.b16 %v365, %v365
    %398 = vst [vmem:[%s3] sm:$0xf] %v366
    %399 = vst [vmem:[%s3 + $0x4] sm:$0xf] %v367
    %400 = vst [vmem:[%s3 + $0x8] sm:$0xf] %v368
    %401 = vst [vmem:[%s3 + $0xc] sm:$0xf] %v369
    %402 = vst [vmem:[%s3 + $0x10] sm:$0xf] %v370
    %403 = vst [vmem:[%s3 + $0x14] sm:$0xf] %v371
    %404 = vst [vmem:[%s3 + $0x18] sm:$0xf] %v372
    %405 = vst [vmem:[%s3 + $0x1c] sm:$0xf] %v373
    %406 = vst [vmem:[%s3 + $0x20] sm:$0xf] %v374
    %407 = vst [vmem:[%s3 + $0x24] sm:$0xf] %v375
    %408 = vst [vmem:[%s3 + $0x28] sm:$0xf] %v376
    %409 = vst [vmem:[%s3 + $0x2c] sm:$0xf] %v377
    %410 = vst [vmem:[%s3 + $0x30] sm:$0xf] %v378
    %411 = vst [vmem:[%s3 + $0x34] sm:$0xf] %v379
    %412 = vst [vmem:[%s3 + $0x38] sm:$0xf] %v380
    %413 = vst [vmem:[%s3 + $0x3c] sm:$0xf] %v381
  $region21: #{forward.12} parent=0 // pred_fallthru
    _
  // Predicated region
  $region22: #{forward.12} parent=0 // pred_check
    _
  $region23: #{forward.12} parent=0 // pred_check_branch
    %415 = sbr.rel (0) target = $region25
  $region24: #{forward.12} parent=0 // pred_region
    _
  $region25: #{forward.12} parent=0 // pred_fallthru
    _
  // Predicated region
  $region26: #{forward.12} parent=0 // pred_check
    _
  $region27: #{forward.12} parent=0 // pred_check_branch
    %417 = sbr.rel (0) target = $region29
  $region28: #{forward.12} parent=0 // pred_region
    _
  $region29: #{forward.12} parent=0 // pred_fallthru
    _

// kernel: forward.13
$region0: #{forward.13}
  #allocation0 [shape = 'u32[]', space=smem, size = 0x4, offset = 0x4, fixed_abs, tag = 'smem constant byte address 0x4 - core index']
  #allocation1 [shape = 'u32[144,128]{1,0:T(1,128)}', space=vmem, size = 0x12000, scoped, tag = 'internal scratch']
  #allocation2 [shape = 'f32[128,128]{1,0:T(8,128)}', space=vmem, size = 0x10000, scoped, tag = 'scratch operand']
  %s0 = inlined_call_operand.vmem [shape: bf16[128,128], index: 0, kind: input, shape index: {}]
  %s1 = inlined_call_operand.vmem [shape: bf16[128,128], index: 1, kind: input, shape index: {}]
  %s2 = inlined_call_operand.vmem [shape: f32[1,128], index: 2, kind: input, shape index: {}]
  %s3 = inlined_call_operand.vmem [shape: bf16[128,128], index: 3, kind: input, shape index: {}]
  %s4 = inlined_call_operand.vmem [shape: bf16[128,128], index: 4, kind: output, shape index: {}]
  %s5 = sld [smem:[#allocation0]]
  $region34: #{forward.13} parent=0
    _
  %s7 = ssub.s32 1, %s5
  %s8 = scalar_select 0, %s7, %s5
  // Predicated region
  $region2: #{forward.13} parent=0 // pred_check
    _
  $region3: #{forward.13} parent=0 // pred_check_branch
    %10 = sbr.rel (0) target = $region5
  $region4: #{forward.13} parent=0 // pred_region
    _
  $region5: #{forward.13} parent=0 // pred_fallthru
    _
  // Predicated region
  $region6: #{forward.13} parent=0 // pred_check
    _
  $region7: #{forward.13} parent=0 // pred_check_branch
    %12 = sbr.rel (0) target = $region9
  $region8: #{forward.13} parent=0 // pred_region
    _
  $region9: #{forward.13} parent=0 // pred_fallthru
    _
  // Predicated region
  $region10: #{forward.13} parent=0 // pred_check
    _
  $region11: #{forward.13} parent=0 // pred_check_branch
    %14 = sbr.rel (0) target = $region13
  $region12: #{forward.13} parent=0 // pred_region
    _
  $region13: #{forward.13} parent=0 // pred_fallthru
    _
  // Predicated region
  $region14: #{forward.13} parent=0 // pred_check
    _
  $region15: #{forward.13} parent=0 // pred_check_branch
    %16 = sbr.rel (0) target = $region17
  $region16: #{forward.13} parent=0 // pred_region
    _
  $region17: #{forward.13} parent=0 // pred_fallthru
    _
  %p18 = scmp.eq.s32.totalorder 0, 0
  // Predicated region
  $region18: #{forward.13} parent=0 // pred_check
    %p19 = pneg %p18
  $region19: #{forward.13} parent=0 // pred_check_branch
    %21 = sbr.rel (%p19) target = $region21
  $region20: #{forward.13} parent=0 // pred_region
    %v22 = vld [vmem:[%s2] sm:$0x1]
    %v24 = vlaneseq
    %v25 = vshrl.u32 %v24, 7
    %v26 = vsub.s32 0, %v25
    %v27 = vrot.slane %v22, %v26
    %29 = vst [vmem:[#allocation2] sm:$0xff] %v27
    %30 = vst [vmem:[#allocation2 + $0x8] sm:$0xff] %v27
    %31 = vst [vmem:[#allocation2 + $0x10] sm:$0xff] %v27
    %32 = vst [vmem:[#allocation2 + $0x18] sm:$0xff] %v27
    %33 = vst [vmem:[#allocation2 + $0x20] sm:$0xff] %v27
    %34 = vst [vmem:[#allocation2 + $0x28] sm:$0xff] %v27
    %35 = vst [vmem:[#allocation2 + $0x30] sm:$0xff] %v27
    %36 = vst [vmem:[#allocation2 + $0x38] sm:$0xff] %v27
    %37 = vst [vmem:[#allocation2 + $0x40] sm:$0xff] %v27
    %38 = vst [vmem:[#allocation2 + $0x48] sm:$0xff] %v27
    %39 = vst [vmem:[#allocation2 + $0x50] sm:$0xff] %v27
    %40 = vst [vmem:[#allocation2 + $0x58] sm:$0xff] %v27
    %41 = vst [vmem:[#allocation2 + $0x60] sm:$0xff] %v27
    %42 = vst [vmem:[#allocation2 + $0x68] sm:$0xff] %v27
    %43 = vst [vmem:[#allocation2 + $0x70] sm:$0xff] %v27
    %44 = vst [vmem:[#allocation2 + $0x78] sm:$0xff] %v27
  $region21: #{forward.13} parent=0 // pred_fallthru
    _
  %v45 = vld [vmem:[#allocation2] sm:$0xff]
  %v46 = vld [vmem:[#allocation2 + $0x8] sm:$0xff]
  %v47 = vld [vmem:[#allocation2 + $0x10] sm:$0xff]
  %v48 = vld [vmem:[#allocation2 + $0x18] sm:$0xff]
  %v49 = vld [vmem:[#allocation2 + $0x20] sm:$0xff]
  %v50 = vld [vmem:[#allocation2 + $0x28] sm:$0xff]
  %v51 = vld [vmem:[#allocation2 + $0x30] sm:$0xff]
  %v52 = vld [vmem:[#allocation2 + $0x38] sm:$0xff]
  %v53 = vld [vmem:[#allocation2 + $0x40] sm:$0xff]
  %v54 = vld [vmem:[#allocation2 + $0x48] sm:$0xff]
  %v55 = vld [vmem:[#allocation2 + $0x50] sm:$0xff]
  %v56 = vld [vmem:[#allocation2 + $0x58] sm:$0xff]
  %v57 = vld [vmem:[#allocation2 + $0x60] sm:$0xff]
  %v58 = vld [vmem:[#allocation2 + $0x68] sm:$0xff]
  %v59 = vld [vmem:[#allocation2 + $0x70] sm:$0xff]
  %v60 = vld [vmem:[#allocation2 + $0x78] sm:$0xff]
  %v61 = vld [vmem:[%s0] sm:$0xf]
  %v62 = vld [vmem:[%s0 + $0x4] sm:$0xf]
  %v63 = vld [vmem:[%s0 + $0x8] sm:$0xf]
  %v64 = vld [vmem:[%s0 + $0xc] sm:$0xf]
  %v65 = vld [vmem:[%s0 + $0x10] sm:$0xf]
  %v66 = vld [vmem:[%s0 + $0x14] sm:$0xf]
  %v67 = vld [vmem:[%s0 + $0x18] sm:$0xf]
  %v68 = vld [vmem:[%s0 + $0x1c] sm:$0xf]
  %v69 = vld [vmem:[%s0 + $0x20] sm:$0xf]
  %v70 = vld [vmem:[%s0 + $0x24] sm:$0xf]
  %v71 = vld [vmem:[%s0 + $0x28] sm:$0xf]
  %v72 = vld [vmem:[%s0 + $0x2c] sm:$0xf]
  %v73 = vld [vmem:[%s0 + $0x30] sm:$0xf]
  %v74 = vld [vmem:[%s0 + $0x34] sm:$0xf]
  %v75 = vld [vmem:[%s0 + $0x38] sm:$0xf]
  %v76 = vld [vmem:[%s0 + $0x3c] sm:$0xf]
  %v77 = vld [vmem:[%s1] sm:$0xf]
  %v78 = vld [vmem:[%s1 + $0x4] sm:$0xf]
  %v79 = vld [vmem:[%s1 + $0x8] sm:$0xf]
  %v80 = vld [vmem:[%s1 + $0xc] sm:$0xf]
  %v81 = vld [vmem:[%s1 + $0x10] sm:$0xf]
  %v82 = vld [vmem:[%s1 + $0x14] sm:$0xf]
  %v83 = vld [vmem:[%s1 + $0x18] sm:$0xf]
  %v84 = vld [vmem:[%s1 + $0x1c] sm:$0xf]
  %v85 = vld [vmem:[%s1 + $0x20] sm:$0xf]
  %v86 = vld [vmem:[%s1 + $0x24] sm:$0xf]
  %v87 = vld [vmem:[%s1 + $0x28] sm:$0xf]
  %v88 = vld [vmem:[%s1 + $0x2c] sm:$0xf]
  %v89 = vld [vmem:[%s1 + $0x30] sm:$0xf]
  %v90 = vld [vmem:[%s1 + $0x34] sm:$0xf]
  %v91 = vld [vmem:[%s1 + $0x38] sm:$0xf]
  %v92 = vld [vmem:[%s1 + $0x3c] sm:$0xf]
  %v109 = vunpack.c.l.b16 %v61
  %v110 = vunpack.c.l.b16 %v62
  %v111 = vunpack.c.l.b16 %v63
  %v112 = vunpack.c.l.b16 %v64
  %v113 = vunpack.c.l.b16 %v65
  %v114 = vunpack.c.l.b16 %v66
  %v115 = vunpack.c.l.b16 %v67
  %v116 = vunpack.c.l.b16 %v68
  %v117 = vunpack.c.l.b16 %v69
  %v118 = vunpack.c.l.b16 %v70
  %v119 = vunpack.c.l.b16 %v71
  %v120 = vunpack.c.l.b16 %v72
  %v121 = vunpack.c.l.b16 %v73
  %v122 = vunpack.c.l.b16 %v74
  %v123 = vunpack.c.l.b16 %v75
  %v124 = vunpack.c.l.b16 %v76
  %v125 = vpack.c.b16 %v110, %v109
  %v126 = vpack.c.b16 %v112, %v111
  %v127 = vpack.c.b16 %v114, %v113
  %v128 = vpack.c.b16 %v116, %v115
  %v129 = vpack.c.b16 %v118, %v117
  %v130 = vpack.c.b16 %v120, %v119
  %v131 = vpack.c.b16 %v122, %v121
  %v132 = vpack.c.b16 %v124, %v123
  %v157 = vunpack.c.l.b16 %v77
  %v158 = vunpack.c.l.b16 %v78
  %v159 = vunpack.c.l.b16 %v79
  %v160 = vunpack.c.l.b16 %v80
  %v161 = vunpack.c.l.b16 %v81
  %v162 = vunpack.c.l.b16 %v82
  %v163 = vunpack.c.l.b16 %v83
  %v164 = vunpack.c.l.b16 %v84
  %v165 = vunpack.c.l.b16 %v85
  %v166 = vunpack.c.l.b16 %v86
  %v167 = vunpack.c.l.b16 %v87
  %v168 = vunpack.c.l.b16 %v88
  %v169 = vunpack.c.l.b16 %v89
  %v170 = vunpack.c.l.b16 %v90
  %v171 = vunpack.c.l.b16 %v91
  %v172 = vunpack.c.l.b16 %v92
  %v173 = vpack.c.b16 %v158, %v157
  %v174 = vpack.c.b16 %v160, %v159
  %v175 = vpack.c.b16 %v162, %v161
  %v176 = vpack.c.b16 %v164, %v163
  %v177 = vpack.c.b16 %v166, %v165
  %v178 = vpack.c.b16 %v168, %v167
  %v179 = vpack.c.b16 %v170, %v169
  %v180 = vpack.c.b16 %v172, %v171
  %189 = vmatprep.subr.bf16.mxu0 0
  %190 = vmatpush1.bf16.msra.mxu0 %v180
  %191 = vmatprep.subr.bf16.mxu0 0
  %192 = vmatpush1.bf16.msra.mxu0 %v179
  %193 = vmatprep.subr.bf16.mxu0 0
  %194 = vmatpush1.bf16.msra.mxu0 %v178
  %195 = vmatprep.subr.bf16.mxu0 0
  %196 = vmatpush1.bf16.msra.mxu0 %v177
  %197 = vmatprep.subr.bf16.mxu0 0
  %198 = vmatpush1.bf16.msra.mxu0 %v176
  %199 = vmatprep.subr.bf16.mxu0 0
  %200 = vmatpush1.bf16.msra.mxu0 %v175
  %201 = vmatprep.subr.bf16.mxu0 0
  %202 = vmatpush1.bf16.msra.mxu0 %v174
  %203 = vmatprep.subr.bf16.mxu0 0
  %204 = vmatpush1.bf16.msra.mxu0 %v173
  %205 = vmatprep.subr.bf16.mxu0 0
  %206 = vmatpush2.bf16.msra.mxu0 0
  %207 = vmatprep.subr.bf16.mxu0 0
  %208 = vmatpush2.bf16.msra.mxu0 0
  %209 = vmatprep.subr.bf16.mxu0 0
  %210 = vmatpush2.bf16.msra.mxu0 0
  %211 = vmatprep.subr.bf16.mxu0 0
  %212 = vmatpush2.bf16.msra.mxu0 0
  %213 = vmatprep.subr.bf16.mxu0 0
  %214 = vmatpush2.bf16.msra.mxu0 0
  %215 = vmatprep.subr.bf16.mxu0 0
  %216 = vmatpush2.bf16.msra.mxu0 0
  %217 = vmatprep.subr.bf16.mxu0 0
  %218 = vmatpush2.bf16.msra.mxu0 0
  %219 = vmatprep.subr.bf16.mxu0 0
  %220 = vmatpush2.bf16.msra.mxu0 0
  %221 = vmatprep.mubr.bf16.mxu0 0
  %222 = vmatmul.mubr.bf16.gmra.mxu0 %v125
  %v223 = vpop.f32.mrf.mxu0
  %v224 = vadd.f32 0.0, %v223
  %v225 = vpop.f32.mrf.mxu0
  %v226 = vpop.f32.mrf.mxu0
  %v227 = vadd.f32 0.0, %v226
  %v228 = vpop.f32.mrf.mxu0
  %229 = vmatprep.mubr.bf16.mxu0 0
  %230 = vmatmul.mubr.bf16.gmra.mxu0 %v126
  %v231 = vpop.f32.mrf.mxu0
  %v232 = vadd.f32 0.0, %v231
  %v233 = vpop.f32.mrf.mxu0
  %v234 = vpop.f32.mrf.mxu0
  %v235 = vadd.f32 0.0, %v234
  %v236 = vpop.f32.mrf.mxu0
  %237 = vmatprep.mubr.bf16.mxu0 0
  %238 = vmatmul.mubr.bf16.gmra.mxu0 %v127
  %v239 = vpop.f32.mrf.mxu0
  %v240 = vadd.f32 0.0, %v239
  %v241 = vpop.f32.mrf.mxu0
  %v242 = vpop.f32.mrf.mxu0
  %v243 = vadd.f32 0.0, %v242
  %v244 = vpop.f32.mrf.mxu0
  %245 = vmatprep.mubr.bf16.mxu0 0
  %246 = vmatmul.mubr.bf16.gmra.mxu0 %v128
  %v247 = vpop.f32.mrf.mxu0
  %v248 = vadd.f32 0.0, %v247
  %v249 = vpop.f32.mrf.mxu0
  %v250 = vpop.f32.mrf.mxu0
  %v251 = vadd.f32 0.0, %v250
  %v252 = vpop.f32.mrf.mxu0
  %253 = vmatprep.mubr.bf16.mxu0 0
  %254 = vmatmul.mubr.bf16.gmra.mxu0 %v129
  %v255 = vpop.f32.mrf.mxu0
  %v256 = vadd.f32 0.0, %v255
  %v257 = vpop.f32.mrf.mxu0
  %v258 = vpop.f32.mrf.mxu0
  %v259 = vadd.f32 0.0, %v258
  %v260 = vpop.f32.mrf.mxu0
  %261 = vmatprep.mubr.bf16.mxu0 0
  %262 = vmatmul.mubr.bf16.gmra.mxu0 %v130
  %v263 = vpop.f32.mrf.mxu0
  %v264 = vadd.f32 0.0, %v263
  %v265 = vpop.f32.mrf.mxu0
  %v266 = vpop.f32.mrf.mxu0
  %v267 = vadd.f32 0.0, %v266
  %v268 = vpop.f32.mrf.mxu0
  %269 = vmatprep.mubr.bf16.mxu0 0
  %270 = vmatmul.mubr.bf16.gmra.mxu0 %v131
  %v271 = vpop.f32.mrf.mxu0
  %v272 = vadd.f32 0.0, %v271
  %v273 = vpop.f32.mrf.mxu0
  %v274 = vpop.f32.mrf.mxu0
  %v275 = vadd.f32 0.0, %v274
  %v276 = vpop.f32.mrf.mxu0
  %277 = vmatprep.mubr.bf16.mxu0 0
  %278 = vmatmul.mubr.bf16.gmra.mxu0 %v132
  %v279 = vpop.f32.mrf.mxu0
  %v280 = vadd.f32 0.0, %v279
  %v281 = vpop.f32.mrf.mxu0
  %v282 = vpop.f32.mrf.mxu0
  %v283 = vadd.f32 0.0, %v282
  %v284 = vpop.f32.mrf.mxu0
  %285 = vdwg.mxu0
  %v286 = vadd.f32 %v45, %v224
  %v287 = vadd.f32 %v46, %v227
  %v288 = vadd.f32 %v47, %v232
  %v289 = vadd.f32 %v48, %v235
  %v290 = vadd.f32 %v49, %v240
  %v291 = vadd.f32 %v50, %v243
  %v292 = vadd.f32 %v51, %v248
  %v293 = vadd.f32 %v52, %v251
  %v294 = vadd.f32 %v53, %v256
  %v295 = vadd.f32 %v54, %v259
  %v296 = vadd.f32 %v55, %v264
  %v297 = vadd.f32 %v56, %v267
  %v298 = vadd.f32 %v57, %v272
  %v299 = vadd.f32 %v58, %v275
  %v300 = vadd.f32 %v59, %v280
  %v301 = vadd.f32 %v60, %v283
  %302 = vst [vmem:[#allocation2] sm:$0xff] %v286
  %303 = vst [vmem:[#allocation2 + $0x8] sm:$0xff] %v287
  %304 = vst [vmem:[#allocation2 + $0x10] sm:$0xff] %v288
  %305 = vst [vmem:[#allocation2 + $0x18] sm:$0xff] %v289
  %306 = vst [vmem:[#allocation2 + $0x20] sm:$0xff] %v290
  %307 = vst [vmem:[#allocation2 + $0x28] sm:$0xff] %v291
  %308 = vst [vmem:[#allocation2 + $0x30] sm:$0xff] %v292
  %309 = vst [vmem:[#allocation2 + $0x38] sm:$0xff] %v293
  %310 = vst [vmem:[#allocation2 + $0x40] sm:$0xff] %v294
  %311 = vst [vmem:[#allocation2 + $0x48] sm:$0xff] %v295
  %312 = vst [vmem:[#allocation2 + $0x50] sm:$0xff] %v296
  %313 = vst [vmem:[#allocation2 + $0x58] sm:$0xff] %v297
  %314 = vst [vmem:[#allocation2 + $0x60] sm:$0xff] %v298
  %315 = vst [vmem:[#allocation2 + $0x68] sm:$0xff] %v299
  %316 = vst [vmem:[#allocation2 + $0x70] sm:$0xff] %v300
  %317 = vst [vmem:[#allocation2 + $0x78] sm:$0xff] %v301
  // Predicated region
  $region22: #{forward.13} parent=0 // pred_check
    %p318 = pneg %p18
  $region23: #{forward.13} parent=0 // pred_check_branch
    %320 = sbr.rel (%p318) target = $region25
  $region24: #{forward.13} parent=0 // pred_region
    %v321 = vld [vmem:[#allocation2] sm:$0xff]
    %v322 = vld [vmem:[#allocation2 + $0x8] sm:$0xff]
    %v323 = vld [vmem:[#allocation2 + $0x10] sm:$0xff]
    %v324 = vld [vmem:[#allocation2 + $0x18] sm:$0xff]
    %v325 = vld [vmem:[#allocation2 + $0x20] sm:$0xff]
    %v326 = vld [vmem:[#allocation2 + $0x28] sm:$0xff]
    %v327 = vld [vmem:[#allocation2 + $0x30] sm:$0xff]
    %v328 = vld [vmem:[#allocation2 + $0x38] sm:$0xff]
    %v329 = vld [vmem:[#allocation2 + $0x40] sm:$0xff]
    %v330 = vld [vmem:[#allocation2 + $0x48] sm:$0xff]
    %v331 = vld [vmem:[#allocation2 + $0x50] sm:$0xff]
    %v332 = vld [vmem:[#allocation2 + $0x58] sm:$0xff]
    %v333 = vld [vmem:[#allocation2 + $0x60] sm:$0xff]
    %v334 = vld [vmem:[#allocation2 + $0x68] sm:$0xff]
    %v335 = vld [vmem:[#allocation2 + $0x70] sm:$0xff]
    %v336 = vld [vmem:[#allocation2 + $0x78] sm:$0xff]
    %v337 = vld [vmem:[%s3] sm:$0xf]
    %v338 = vld [vmem:[%s3 + $0x4] sm:$0xf]
    %v339 = vld [vmem:[%s3 + $0x8] sm:$0xf]
    %v340 = vld [vmem:[%s3 + $0xc] sm:$0xf]
    %v341 = vld [vmem:[%s3 + $0x10] sm:$0xf]
    %v342 = vld [vmem:[%s3 + $0x14] sm:$0xf]
    %v343 = vld [vmem:[%s3 + $0x18] sm:$0xf]
    %v344 = vld [vmem:[%s3 + $0x1c] sm:$0xf]
    %v345 = vld [vmem:[%s3 + $0x20] sm:$0xf]
    %v346 = vld [vmem:[%s3 + $0x24] sm:$0xf]
    %v347 = vld [vmem:[%s3 + $0x28] sm:$0xf]
    %v348 = vld [vmem:[%s3 + $0x2c] sm:$0xf]
    %v349 = vld [vmem:[%s3 + $0x30] sm:$0xf]
    %v350 = vld [vmem:[%s3 + $0x34] sm:$0xf]
    %v351 = vld [vmem:[%s3 + $0x38] sm:$0xf]
    %v352 = vld [vmem:[%s3 + $0x3c] sm:$0xf]
    %v353 = vunpack.c.l.bf16 %v337
    %v354 = vunpack.c.l.bf16 %v338
    %v355 = vunpack.c.l.bf16 %v339
    %v356 = vunpack.c.l.bf16 %v340
    %v357 = vunpack.c.l.bf16 %v341
    %v358 = vunpack.c.l.bf16 %v342
    %v359 = vunpack.c.l.bf16 %v343
    %v360 = vunpack.c.l.bf16 %v344
    %v361 = vunpack.c.l.bf16 %v345
    %v362 = vunpack.c.l.bf16 %v346
    %v363 = vunpack.c.l.bf16 %v347
    %v364 = vunpack.c.l.bf16 %v348
    %v365 = vunpack.c.l.bf16 %v349
    %v366 = vunpack.c.l.bf16 %v350
    %v367 = vunpack.c.l.bf16 %v351
    %v368 = vunpack.c.l.bf16 %v352
    %v369 = vadd.f32 %v321, %v353
    %v370 = vadd.f32 %v322, %v354
    %v371 = vadd.f32 %v323, %v355
    %v372 = vadd.f32 %v324, %v356
    %v373 = vadd.f32 %v325, %v357
    %v374 = vadd.f32 %v326, %v358
    %v375 = vadd.f32 %v327, %v359
    %v376 = vadd.f32 %v328, %v360
    %v377 = vadd.f32 %v329, %v361
    %v378 = vadd.f32 %v330, %v362
    %v379 = vadd.f32 %v331, %v363
    %v380 = vadd.f32 %v332, %v364
    %v381 = vadd.f32 %v333, %v365
    %v382 = vadd.f32 %v334, %v366
    %v383 = vadd.f32 %v335, %v367
    %v384 = vadd.f32 %v336, %v368
    %vm385 = vcmp.gt.f32.partialorder %v369, 0.0
    %vm386 = vcmp.gt.f32.partialorder %v370, 0.0
    %vm387 = vcmp.gt.f32.partialorder %v371, 0.0
    %vm388 = vcmp.gt.f32.partialorder %v372, 0.0
    %vm389 = vcmp.gt.f32.partialorder %v373, 0.0
    %vm390 = vcmp.gt.f32.partialorder %v374, 0.0
    %vm391 = vcmp.gt.f32.partialorder %v375, 0.0
    %vm392 = vcmp.gt.f32.partialorder %v376, 0.0
    %vm393 = vcmp.gt.f32.partialorder %v377, 0.0
    %vm394 = vcmp.gt.f32.partialorder %v378, 0.0
    %vm395 = vcmp.gt.f32.partialorder %v379, 0.0
    %vm396 = vcmp.gt.f32.partialorder %v380, 0.0
    %vm397 = vcmp.gt.f32.partialorder %v381, 0.0
    %vm398 = vcmp.gt.f32.partialorder %v382, 0.0
    %vm399 = vcmp.gt.f32.partialorder %v383, 0.0
    %vm400 = vcmp.gt.f32.partialorder %v384, 0.0
    %v401 = vmin.f32 %v369, 0.0
    %v402 = vmin.f32 %v370, 0.0
    %v403 = vmin.f32 %v371, 0.0
    %v404 = vmin.f32 %v372, 0.0
    %v405 = vmin.f32 %v373, 0.0
    %v406 = vmin.f32 %v374, 0.0
    %v407 = vmin.f32 %v375, 0.0
    %v408 = vmin.f32 %v376, 0.0
    %v409 = vmin.f32 %v377, 0.0
    %v410 = vmin.f32 %v378, 0.0
    %v411 = vmin.f32 %v379, 0.0
    %v412 = vmin.f32 %v380, 0.0
    %v413 = vmin.f32 %v381, 0.0
    %v414 = vmin.f32 %v382, 0.0
    %v415 = vmin.f32 %v383, 0.0
    %v416 = vmin.f32 %v384, 0.0
    %v417 = vmul.f32 %v401, 1.442695
    %v418 = vpow.pop %v417
    %v419 = vmul.f32 %v402, 1.442695
    %v420 = vpow.pop %v419
    %v421 = vmul.f32 %v403, 1.442695
    %v422 = vpow.pop %v421
    %v423 = vmul.f32 %v404, 1.442695
    %v424 = vpow.pop %v423
    %v425 = vmul.f32 %v405, 1.442695
    %v426 = vpow.pop %v425
    %v427 = vmul.f32 %v406, 1.442695
    %v428 = vpow.pop %v427
    %v429 = vmul.f32 %v407, 1.442695
    %v430 = vpow.pop %v429
    %v431 = vmul.f32 %v408, 1.442695
    %v432 = vpow.pop %v431
    %v433 = vmul.f32 %v409, 1.442695
    %v434 = vpow.pop %v433
    %v435 = vmul.f32 %v410, 1.442695
    %v436 = vpow.pop %v435
    %v437 = vmul.f32 %v411, 1.442695
    %v438 = vpow.pop %v437
    %v439 = vmul.f32 %v412, 1.442695
    %v440 = vpow.pop %v439
    %v441 = vmul.f32 %v413, 1.442695
    %v442 = vpow.pop %v441
    %v443 = vmul.f32 %v414, 1.442695
    %v444 = vpow.pop %v443
    %v445 = vmul.f32 %v415, 1.442695
    %v446 = vpow.pop %v445
    %v447 = vmul.f32 %v416, 1.442695
    %v448 = vpow.pop %v447
    %v449 = vsub.f32 %v418, 1.0
    %v450 = vsub.f32 %v420, 1.0
    %v451 = vsub.f32 %v422, 1.0
    %v452 = vsub.f32 %v424, 1.0
    %v453 = vsub.f32 %v426, 1.0
    %v454 = vsub.f32 %v428, 1.0
    %v455 = vsub.f32 %v430, 1.0
    %v456 = vsub.f32 %v432, 1.0
    %v457 = vsub.f32 %v434, 1.0
    %v458 = vsub.f32 %v436, 1.0
    %v459 = vsub.f32 %v438, 1.0
    %v460 = vsub.f32 %v440, 1.0
    %v461 = vsub.f32 %v442, 1.0
    %v462 = vsub.f32 %v444, 1.0
    %v463 = vsub.f32 %v446, 1.0
    %v464 = vsub.f32 %v448, 1.0
    %v465 = vsel %vm385, %v369, %v449
    %v466 = vsel %vm386, %v370, %v450
    %v467 = vsel %vm387, %v371, %v451
    %v468 = vsel %vm388, %v372, %v452
    %v469 = vsel %vm389, %v373, %v453
    %v470 = vsel %vm390, %v374, %v454
    %v471 = vsel %vm391, %v375, %v455
    %v472 = vsel %vm392, %v376, %v456
    %v473 = vsel %vm393, %v377, %v457
    %v474 = vsel %vm394, %v378, %v458
    %v475 = vsel %vm395, %v379, %v459
    %v476 = vsel %vm396, %v380, %v460
    %v477 = vsel %vm397, %v381, %v461
    %v478 = vsel %vm398, %v382, %v462
    %v479 = vsel %vm399, %v383, %v463
    %v480 = vsel %vm400, %v384, %v464
    %v481 = vpack.c.bf16 %v466, %v465
    %v482 = vpack.c.bf16 %v468, %v467
    %v483 = vpack.c.bf16 %v470, %v469
    %v484 = vpack.c.bf16 %v472, %v471
    %v485 = vpack.c.bf16 %v474, %v473
    %v486 = vpack.c.bf16 %v476, %v475
    %v487 = vpack.c.bf16 %v478, %v477
    %v488 = vpack.c.bf16 %v480, %v479
    %v497 = vunpack.c.l.b16 %v481
    %v498 = vunpack.c.h.b16 %v481
    %v499 = vunpack.c.l.b16 %v482
    %v500 = vunpack.c.h.b16 %v482
    %v501 = vunpack.c.l.b16 %v483
    %v502 = vunpack.c.h.b16 %v483
    %v503 = vunpack.c.l.b16 %v484
    %v504 = vunpack.c.h.b16 %v484
    %v505 = vunpack.c.l.b16 %v485
    %v506 = vunpack.c.h.b16 %v485
    %v507 = vunpack.c.l.b16 %v486
    %v508 = vunpack.c.h.b16 %v486
    %v509 = vunpack.c.l.b16 %v487
    %v510 = vunpack.c.h.b16 %v487
    %v511 = vunpack.c.l.b16 %v488
    %v512 = vunpack.c.h.b16 %v488
    %v513 = vpack.c.b16 %v497, %v497
    %v514 = vpack.c.b16 %v498, %v498
    %v515 = vpack.c.b16 %v499, %v499
    %v516 = vpack.c.b16 %v500, %v500
    %v517 = vpack.c.b16 %v501, %v501
    %v518 = vpack.c.b16 %v502, %v502
    %v519 = vpack.c.b16 %v503, %v503
    %v520 = vpack.c.b16 %v504, %v504
    %v521 = vpack.c.b16 %v505, %v505
    %v522 = vpack.c.b16 %v506, %v506
    %v523 = vpack.c.b16 %v507, %v507
    %v524 = vpack.c.b16 %v508, %v508
    %v525 = vpack.c.b16 %v509, %v509
    %v526 = vpack.c.b16 %v510, %v510
    %v527 = vpack.c.b16 %v511, %v511
    %v528 = vpack.c.b16 %v512, %v512
    %545 = vst [vmem:[%s4] sm:$0xf] %v513
    %546 = vst [vmem:[%s4 + $0x4] sm:$0xf] %v514
    %547 = vst [vmem:[%s4 + $0x8] sm:$0xf] %v515
    %548 = vst [vmem:[%s4 + $0xc] sm:$0xf] %v516
    %549 = vst [vmem:[%s4 + $0x10] sm:$0xf] %v517
    %550 = vst [vmem:[%s4 + $0x14] sm:$0xf] %v518
    %551 = vst [vmem:[%s4 + $0x18] sm:$0xf] %v519
    %552 = vst [vmem:[%s4 + $0x1c] sm:$0xf] %v520
    %553 = vst [vmem:[%s4 + $0x20] sm:$0xf] %v521
    %554 = vst [vmem:[%s4 + $0x24] sm:$0xf] %v522
    %555 = vst [vmem:[%s4 + $0x28] sm:$0xf] %v523
    %556 = vst [vmem:[%s4 + $0x2c] sm:$0xf] %v524
    %557 = vst [vmem:[%s4 + $0x30] sm:$0xf] %v525
    %558 = vst [vmem:[%s4 + $0x34] sm:$0xf] %v526
    %559 = vst [vmem:[%s4 + $0x38] sm:$0xf] %v527
    %560 = vst [vmem:[%s4 + $0x3c] sm:$0xf] %v528
  $region25: #{forward.13} parent=0 // pred_fallthru
    _
  // Predicated region
  $region26: #{forward.13} parent=0 // pred_check
    _
  $region27: #{forward.13} parent=0 // pred_check_branch
    %562 = sbr.rel (0) target = $region29
  $region28: #{forward.13} parent=0 // pred_region
    _
  $region29: #{forward.13} parent=0 // pred_fallthru
    _
  // Predicated region
  $region30: #{forward.13} parent=0 // pred_check
    _
  $region31: #{forward.13} parent=0 // pred_check_branch
    %564 = sbr.rel (0) target = $region33
  $region32: #{forward.13} parent=0 // pred_region
    _
  $region33: #{forward.13} parent=0 // pred_fallthru
    _

</llo_original>
